<compile_context>
chip_gen: v6e
topology: v6e:2x2x1
jax: 0.10.0
libtpu: 0.0.40
codegen_flags: <defaults>
</compile_context>

<pallas_src>
import numpy as np
import jax
import jax.numpy as jnp
from jax.experimental import pallas as pl
from jax.experimental.pallas import tpu as pltpu


# ---------------------------------------------------------------------------
# Kernel 1: per-point MLP (3 -> 64 -> 128 -> 1024, ReLU) + max over points.
# Grid = (B, N // tile_n).  The (8, 1024) running max lives in VMEM scratch;
# the (1, 1, 1024) pooled output block is written only at the last point tile.
# ---------------------------------------------------------------------------
def stn3d_pointmlp_kernel(x_ref,
                          w1, c1, w2, c2, w3, c3,      # point MLP (BN folded)
                          pooled_ref, mx_ref):
    nt = pl.program_id(1)
    ep = mx_ref.dtype                                  # epilogue dtype (bf16/f32)

    @pl.when(nt == 0)
    def _():
        # Post-ReLU activations are >= 0, so 0 is a valid max identity.
        mx_ref[...] = jnp.zeros_like(mx_ref)

    # --- per-point MLP on this tile of points (bf16 matmul, f32 accum) ------
    x = x_ref[0].astype(jnp.bfloat16)                                  # (tn, 3)
    h = jnp.dot(x, w1[...], preferred_element_type=jnp.float32) + c1[...]
    h = jnp.maximum(h, 0.0).astype(jnp.bfloat16)                       # (tn, 64)
    h = jnp.dot(h, w2[...], preferred_element_type=jnp.float32) + c2[...]
    h = jnp.maximum(h, 0.0).astype(jnp.bfloat16)                       # (tn, 128)
    acc = jnp.dot(h, w3[...], preferred_element_type=jnp.float32)      # (tn,1024) f32
    # Epilogue (bias, ReLU, running max) in ep dtype: bf16 on v6e/v7x, f32 on v5e.
    h3 = jnp.maximum(acc.astype(ep) + c3[...].astype(ep), 0)           # (tn, 1024)

    # Dense-sublane running max: elementwise (VPU) maxima into an (8,1024) acc.
    part = h3.reshape(-1, 8, h3.shape[-1]).max(axis=0)                 # (8, 1024)
    mx_ref[...] = jnp.maximum(mx_ref[...], part)

    # Single 8 -> 1 cross-sublane reduce per batch element, at the last tile.
    @pl.when(nt == pl.num_programs(1) - 1)
    def _():
        pooled = jnp.max(mx_ref[...], axis=0, keepdims=True)           # (1, 1024)
        pooled_ref[...] = pooled.reshape(pooled_ref.shape).astype(pooled_ref.dtype)


# ---------------------------------------------------------------------------
# Kernel 2: FC head 1024 -> 512 -> 256 -> k*k (+ identity), run ONCE with M=B.
# All operands fit in VMEM; no grid.
# ---------------------------------------------------------------------------
def stn3d_head_kernel(g_ref, w4, c4, w5, c5, w6, b6i, o_ref):
    g = g_ref[...].astype(jnp.bfloat16)                                # (B, 1024)
    f = jnp.dot(g, w4[...], preferred_element_type=jnp.float32) + c4[...]
    f = jnp.maximum(f, 0.0).astype(jnp.bfloat16)                       # (B, 512)
    f = jnp.dot(f, w5[...], preferred_element_type=jnp.float32) + c5[...]
    f = jnp.maximum(f, 0.0).astype(jnp.bfloat16)                       # (B, 256)
    out = jnp.dot(f, w6[...], preferred_element_type=jnp.float32) + b6i[...]
    o_ref[...] = out.astype(o_ref.dtype)                               # (B, k*k)


def _default_epilogue_dtype():
    """bf16 epilogue on chips with a bf16 VPU (v6e/v7x); f32 on v2-v5."""
    try:
        kind = jax.devices()[0].device_kind.lower()
    except Exception:
        return jnp.bfloat16
    if any(tag in kind for tag in ("v2", "v3", "v4", "v5")):
        return jnp.float32
    return jnp.bfloat16


# ---------------------------------------------------------------------------
# Parameter setup (deterministic, synthetic).
# Inference BN is folded:  y = relu((x @ (W * scale)) + shift),
# weights are stored in bf16, shifts in f32.
# ---------------------------------------------------------------------------
def init_params(key, k=3, zero_init_last=True):
    assert k == 3, "This script implements the k == 3 configuration of STN3d."
    dims = [(3, 64), (64, 128), (128, 1024), (1024, 512), (512, 256)]
    p = {}
    keys = jax.random.split(key, len(dims) + 1)
    eps = 1e-5
    for i, ((fan_in, fan_out), kk_) in enumerate(zip(dims, keys[:-1]), start=1):
        kw, kb, kg, kbt, km, kv = jax.random.split(kk_, 6)
        w = jax.random.normal(kw, (fan_in, fan_out), jnp.float32) / np.sqrt(fan_in)
        b = jax.random.normal(kb, (fan_out,), jnp.float32) * 0.05
        gamma = jax.random.uniform(kg, (fan_out,), jnp.float32, minval=0.5, maxval=1.5)
        beta = jax.random.normal(kbt, (fan_out,), jnp.float32) * 0.1
        mean = jax.random.normal(km, (fan_out,), jnp.float32) * 0.1
        var = jax.random.uniform(kv, (fan_out,), jnp.float32, minval=0.5, maxval=1.5)
        scale = gamma / jnp.sqrt(var + eps)
        shift = (b - mean) * scale + beta
        p[f"w{i}"] = (w * scale[None, :]).astype(jnp.bfloat16)   # BN scale folded in
        p[f"c{i}"] = shift.reshape(1, fan_out)                   # f32 shift
    # Last linear (256 -> k*k).  The module zero-initializes weight & bias;
    # zero_init_last=False substitutes small random values so the numerical
    # check exercises the whole pipeline instead of trivially returning iden.
    kw6, kb6 = jax.random.split(keys[-1])
    if zero_init_last:
        w6 = jnp.zeros((256, k * k), jnp.float32)
        b6 = jnp.zeros((1, k * k), jnp.float32)
    else:
        w6 = jax.random.normal(kw6, (256, k * k), jnp.float32) * 0.02
        b6 = jax.random.normal(kb6, (1, k * k), jnp.float32) * 0.02
    p["w6"] = w6.astype(jnp.bfloat16)
    p["b6_iden"] = b6 + jnp.eye(k, dtype=jnp.float32).reshape(1, k * k)
    return p


# ---------------------------------------------------------------------------
# Wrapper
# ---------------------------------------------------------------------------
def stn3d_forward(x_nchw, p, tile_n=512, epilogue_dtype=None):
    B, C, N, k = x_nchw.shape
    assert C == 1 and k == 3
    if epilogue_dtype is None:
        epilogue_dtype = _default_epilogue_dtype()
    tile_n = min(tile_n, N)
    assert N % tile_n == 0 and tile_n % 8 == 0, \
        "num_points must be a multiple of tile_n, tile_n a multiple of 8"
    pts = x_nchw[:, 0, :, :]   # (B, N, 3) channels-last layout for the kernel
    kk = k * k

    const = lambda b, nt: (0, 0)   # weights: VMEM-resident across the grid

    # Only large tile_n sweeps need extra scoped VMEM; budget against v7x's
    # 64 MiB physical (32 MiB default scoped) — 48 MiB is a safe raise there.
    vmem_limit = 48 * 1024 * 1024 if tile_n > 1024 else None

    pooled = pl.pallas_call(
        stn3d_pointmlp_kernel,
        out_shape=jax.ShapeDtypeStruct((B, 1, 1024), jnp.bfloat16),
        grid_spec=pltpu.PrefetchScalarGridSpec(
            num_scalar_prefetch=0,
            grid=(B, N // tile_n),
            in_specs=[
                pl.BlockSpec((1, tile_n, 3), lambda b, nt: (b, nt, 0)),
                pl.BlockSpec((3, 64), const),     pl.BlockSpec((1, 64), const),
                pl.BlockSpec((64, 128), const),   pl.BlockSpec((1, 128), const),
                pl.BlockSpec((128, 1024), const), pl.BlockSpec((1, 1024), const),
            ],
            out_specs=pl.BlockSpec((1, 1, 1024), lambda b, nt: (b, 0, 0)),
            scratch_shapes=[pltpu.VMEM((8, 1024), epilogue_dtype)],
        ),
        compiler_params=pltpu.CompilerParams(
            dimension_semantics=("parallel", "arbitrary"),
            vmem_limit_bytes=vmem_limit),
    )(pts, p["w1"], p["c1"], p["w2"], p["c2"], p["w3"], p["c3"])

    # FC head once for the whole batch (M = B); all operands fit in VMEM.
    out = pl.pallas_call(
        stn3d_head_kernel,
        out_shape=jax.ShapeDtypeStruct((B, kk), jnp.float32),
    )(pooled.reshape(B, 1024),
      p["w4"], p["c4"], p["w5"], p["c5"], p["w6"], p["b6_iden"])

    return out.reshape(B, k, k)


# Reference that mirrors the kernel's numerics (bf16 matmuls, f32 accumulation,
# ep-dtype layer-3 epilogue) so the comparison validates the Pallas code.
def ref_forward(x_nchw, p, epilogue_dtype):
    pts = x_nchw[:, 0, :, :]

    def lin(h, w, c):
        return jnp.dot(h.astype(jnp.bfloat16), w,
                       preferred_element_type=jnp.float32) + c

    h = jax.nn.relu(lin(pts, p["w1"], p["c1"]))
    h = jax.nn.relu(lin(h, p["w2"], p["c2"]))
    acc = jnp.dot(h.astype(jnp.bfloat16), p["w3"],
                  preferred_element_type=jnp.float32)
    h3 = jnp.maximum(acc.astype(epilogue_dtype)
                     + p["c3"].astype(epilogue_dtype), 0)
    g = jnp.max(h3, axis=1).astype(jnp.bfloat16)   # MaxPool over points, bf16 pooled
    f = jax.nn.relu(lin(g, p["w4"], p["c4"]))
    f = jax.nn.relu(lin(f, p["w5"], p["c5"]))
    out = lin(f, p["w6"], p["b6_iden"])
    return out.reshape(-1, 3, 3)


if __name__ == "__main__":
    key = jax.random.PRNGKey(0)
    k_params, k_x = jax.random.split(key)

    B, num_points, k = 2, 512, 3
    # zero_init_last=False: the module zero-inits the last Linear (output would
    # then be exactly the identity); nonzero values make the check meaningful.
    params = init_params(k_params, k=k, zero_init_last=False)
    # PyTorch NCHW input: (B, channels=1, num_points, k=3)
    x = jax.random.normal(k_x, (B, 1, num_points, k), jnp.float32)

    ep_dtype = _default_epilogue_dtype()
    out = jax.block_until_ready(stn3d_forward(x, params, tile_n=512,
                                              epilogue_dtype=ep_dtype))
    ref = jax.block_until_ready(ref_forward(x, params, ep_dtype))

    assert out.shape == (B, k, k)
    np.testing.assert_allclose(np.asarray(out), np.asarray(ref),
                               rtol=2e-2, atol=2e-2)

    print("KERNEL_OK")
</pallas_src>

<mosaic_0001>
module attributes {stable_mosaic.version = 11 : i64} {
  func.func @stn3d_pointmlp_kernel(%arg0: i32, %arg1: i32, %arg2: memref<1x512x3xf32, #tpu.memory_space<vmem>>, %arg3: memref<3x64xbf16, #tpu.memory_space<vmem>>, %arg4: memref<1x64xf32, #tpu.memory_space<vmem>>, %arg5: memref<64x128xbf16, #tpu.memory_space<vmem>>, %arg6: memref<1x128xf32, #tpu.memory_space<vmem>>, %arg7: memref<128x1024xbf16, #tpu.memory_space<vmem>>, %arg8: memref<1x1024xf32, #tpu.memory_space<vmem>>, %arg9: memref<1x1x1024xbf16, #tpu.memory_space<vmem>>, %arg10: memref<8x1024xbf16, #tpu.memory_space<vmem>>) attributes {dimension_semantics = [#tpu.dimension_semantics<parallel>, #tpu.dimension_semantics<arbitrary>], iteration_bounds = array<i64: 2, 1>, scalar_prefetch = 0 : i64, scratch_operands = 1 : i64, tpu.core_type = #tpu.core_type<tc>, window_params = [{transform_indices = @transform_0, window_bounds = array<i64: 1, 512, 3>}, {pipeline_mode = #tpu.pipeline_mode<synchronous>, transform_indices = @transform_1, window_bounds = array<i64: 3, 64>}, {pipeline_mode = #tpu.pipeline_mode<synchronous>, transform_indices = @transform_2, window_bounds = array<i64: 1, 64>}, {pipeline_mode = #tpu.pipeline_mode<synchronous>, transform_indices = @transform_3, window_bounds = array<i64: 64, 128>}, {pipeline_mode = #tpu.pipeline_mode<synchronous>, transform_indices = @transform_4, window_bounds = array<i64: 1, 128>}, {pipeline_mode = #tpu.pipeline_mode<synchronous>, transform_indices = @transform_5, window_bounds = array<i64: 128, 1024>}, {pipeline_mode = #tpu.pipeline_mode<synchronous>, transform_indices = @transform_6, window_bounds = array<i64: 1, 1024>}, {transform_indices = @transform_7, window_bounds = array<i64: 1, 1, 1024>}]} {
    %c0_i32 = arith.constant 0 : i32
    %0 = arith.cmpi eq, %arg1, %c0_i32 : i32
    %1 = arith.extui %0 : i1 to i32
    %c0_i32_0 = arith.constant 0 : i32
    %2 = arith.cmpi ne, %1, %c0_i32_0 : i32
    scf.if %2 {
      %cst_27 = arith.constant 0.000000e+00 : bf16
      %39 = vector.broadcast %cst_27 : bf16 to vector<8x1024xbf16>
      %c0_28 = arith.constant 0 : index
      %c0_29 = arith.constant 0 : index
      %40 = vector.load %arg10[%c0_28, %c0_29] : memref<8x1024xbf16, #tpu.memory_space<vmem>>, vector<8x1024xbf16>
      tpu.vector_store %arg10[%c0_28, %c0_29], %39 {strides = array<i32>} : memref<8x1024xbf16, #tpu.memory_space<vmem>>, vector<8x1024xbf16>,
    } else {
    }
    %c0 = arith.constant 0 : index
    %c0_1 = arith.constant 0 : index
    %c0_2 = arith.constant 0 : index
    %3 = vector.load %arg2[%c0, %c0_1, %c0_2] : memref<1x512x3xf32, #tpu.memory_space<vmem>>, vector<1x512x3xf32>
    %4 = vector.shape_cast %3 : vector<1x512x3xf32> to vector<512x3xf32>
    %5 = arith.truncf %4 : vector<512x3xf32> to vector<512x3xbf16>
    %c0_3 = arith.constant 0 : index
    %c0_4 = arith.constant 0 : index
    %6 = vector.load %arg3[%c0_3, %c0_4] : memref<3x64xbf16, #tpu.memory_space<vmem>>, vector<3x64xbf16>
    %cst = arith.constant dense<0.000000e+00> : vector<512x64xf32>
    %7 = tpu.matmul %5, %6, %cst {dimension_numbers = #tpu.dot_dimension_numbers<[1], [0], [0], [1], [0, 0, 1, 1], [], []>} : vector<512x3xbf16>, vector<3x64xbf16>, vector<512x64xf32> -> vector<512x64xf32>
    %c0_5 = arith.constant 0 : index
    %c0_6 = arith.constant 0 : index
    %8 = vector.load %arg4[%c0_5, %c0_6] : memref<1x64xf32, #tpu.memory_space<vmem>>, vector<1x64xf32>
    %9 = vector.broadcast %8 : vector<1x64xf32> to vector<512x64xf32>
    %10 = arith.addf %7, %9 : vector<512x64xf32>
    %cst_7 = arith.constant 0.000000e+00 : f32
    %11 = vector.broadcast %cst_7 : f32 to vector<512x64xf32>
    %12 = arith.maximumf %10, %11 : vector<512x64xf32>
    %13 = arith.truncf %12 : vector<512x64xf32> to vector<512x64xbf16>
    %c0_8 = arith.constant 0 : index
    %c0_9 = arith.constant 0 : index
    %14 = vector.load %arg5[%c0_8, %c0_9] : memref<64x128xbf16, #tpu.memory_space<vmem>>, vector<64x128xbf16>
    %cst_10 = arith.constant dense<0.000000e+00> : vector<512x128xf32>
    %15 = tpu.matmul %13, %14, %cst_10 {dimension_numbers = #tpu.dot_dimension_numbers<[1], [0], [0], [1], [0, 0, 1, 1], [], []>} : vector<512x64xbf16>, vector<64x128xbf16>, vector<512x128xf32> -> vector<512x128xf32>
    %c0_11 = arith.constant 0 : index
    %c0_12 = arith.constant 0 : index
    %16 = vector.load %arg6[%c0_11, %c0_12] : memref<1x128xf32, #tpu.memory_space<vmem>>, vector<1x128xf32>
    %17 = vector.broadcast %16 : vector<1x128xf32> to vector<512x128xf32>
    %18 = arith.addf %15, %17 : vector<512x128xf32>
    %cst_13 = arith.constant 0.000000e+00 : f32
    %19 = vector.broadcast %cst_13 : f32 to vector<512x128xf32>
    %20 = arith.maximumf %18, %19 : vector<512x128xf32>
    %21 = arith.truncf %20 : vector<512x128xf32> to vector<512x128xbf16>
    %c0_14 = arith.constant 0 : index
    %c0_15 = arith.constant 0 : index
    %22 = vector.load %arg7[%c0_14, %c0_15] : memref<128x1024xbf16, #tpu.memory_space<vmem>>, vector<128x1024xbf16>
    %cst_16 = arith.constant dense<0.000000e+00> : vector<512x1024xf32>
    %23 = tpu.matmul %21, %22, %cst_16 {dimension_numbers = #tpu.dot_dimension_numbers<[1], [0], [0], [1], [0, 0, 1, 1], [], []>} : vector<512x128xbf16>, vector<128x1024xbf16>, vector<512x1024xf32> -> vector<512x1024xf32>
    %24 = arith.truncf %23 : vector<512x1024xf32> to vector<512x1024xbf16>
    %c0_17 = arith.constant 0 : index
    %c0_18 = arith.constant 0 : index
    %25 = vector.load %arg8[%c0_17, %c0_18] : memref<1x1024xf32, #tpu.memory_space<vmem>>, vector<1x1024xf32>
    %26 = arith.truncf %25 : vector<1x1024xf32> to vector<1x1024xbf16>
    %27 = vector.broadcast %26 : vector<1x1024xbf16> to vector<512x1024xbf16>
    %28 = arith.addf %24, %27 : vector<512x1024xbf16>
    %cst_19 = arith.constant 0.000000e+00 : bf16
    %29 = vector.broadcast %cst_19 : bf16 to vector<512x1024xbf16>
    %30 = arith.maximumf %28, %29 : vector<512x1024xbf16>
    %31 = vector.shape_cast %30 : vector<512x1024xbf16> to vector<64x8x1024xbf16>
    %cst_20 = arith.constant dense<0xFF80> : vector<8x1024xbf16>
    %32 = vector.multi_reduction <maximumf>, %31, %cst_20 [0] : vector<64x8x1024xbf16> to vector<8x1024xbf16>
    %c0_21 = arith.constant 0 : index
    %c0_22 = arith.constant 0 : index
    %33 = vector.load %arg10[%c0_21, %c0_22] : memref<8x1024xbf16, #tpu.memory_space<vmem>>, vector<8x1024xbf16>
    %34 = arith.maximumf %33, %32 : vector<8x1024xbf16>
    %c0_23 = arith.constant 0 : index
    %c0_24 = arith.constant 0 : index
    %35 = vector.load %arg10[%c0_23, %c0_24] : memref<8x1024xbf16, #tpu.memory_space<vmem>>, vector<8x1024xbf16>
    tpu.vector_store %arg10[%c0_23, %c0_24], %34 {strides = array<i32>} : memref<8x1024xbf16, #tpu.memory_space<vmem>>, vector<8x1024xbf16>,
    %c0_i32_25 = arith.constant 0 : i32
    %36 = arith.cmpi eq, %arg1, %c0_i32_25 : i32
    %37 = arith.extui %36 : i1 to i32
    %c0_i32_26 = arith.constant 0 : i32
    %38 = arith.cmpi ne, %37, %c0_i32_26 : i32
    scf.if %38 {
      %c0_27 = arith.constant 0 : index
      %c0_28 = arith.constant 0 : index
      %39 = vector.load %arg10[%c0_27, %c0_28] : memref<8x1024xbf16, #tpu.memory_space<vmem>>, vector<8x1024xbf16>
      %cst_29 = arith.constant dense<0xFF80> : vector<1024xbf16>
      %40 = vector.multi_reduction <maximumf>, %39, %cst_29 [0] : vector<8x1024xbf16> to vector<1024xbf16>
      %41 = vector.shape_cast %40 : vector<1024xbf16> to vector<1x1024xbf16>
      %42 = vector.shape_cast %41 : vector<1x1024xbf16> to vector<1x1x1024xbf16>
      %c0_30 = arith.constant 0 : index
      %c0_31 = arith.constant 0 : index
      %c0_32 = arith.constant 0 : index
      %43 = vector.load %arg9[%c0_30, %c0_31, %c0_32] : memref<1x1x1024xbf16, #tpu.memory_space<vmem>>, vector<1x1x1024xbf16>
      tpu.vector_store %arg9[%c0_30, %c0_31, %c0_32], %42 {strides = array<i32>} : memref<1x1x1024xbf16, #tpu.memory_space<vmem>>, vector<1x1x1024xbf16>,
    } else {
    }
    return
  }
  func.func @transform_0(%arg0: i32, %arg1: i32) -> (i32, i32, i32) {
    %c0_i32 = arith.constant 0 : i32
    %c0_i32_0 = arith.constant 0 : i32
    return %arg0, %arg1, %c0_i32 : i32, i32, i32
  }
  func.func @transform_1(%arg0: i32, %arg1: i32) -> (i32, i32) {
    %c0_i32 = arith.constant 0 : i32
    %c0_i32_0 = arith.constant 0 : i32
    %c0_i32_1 = arith.constant 0 : i32
    return %c0_i32, %c0_i32_0 : i32, i32
  }
  func.func @transform_2(%arg0: i32, %arg1: i32) -> (i32, i32) {
    %c0_i32 = arith.constant 0 : i32
    %c0_i32_0 = arith.constant 0 : i32
    %c0_i32_1 = arith.constant 0 : i32
    return %c0_i32, %c0_i32_0 : i32, i32
  }
  func.func @transform_3(%arg0: i32, %arg1: i32) -> (i32, i32) {
    %c0_i32 = arith.constant 0 : i32
    %c0_i32_0 = arith.constant 0 : i32
    %c0_i32_1 = arith.constant 0 : i32
    return %c0_i32, %c0_i32_0 : i32, i32
  }
  func.func @transform_4(%arg0: i32, %arg1: i32) -> (i32, i32) {
    %c0_i32 = arith.constant 0 : i32
    %c0_i32_0 = arith.constant 0 : i32
    %c0_i32_1 = arith.constant 0 : i32
    return %c0_i32, %c0_i32_0 : i32, i32
  }
  func.func @transform_5(%arg0: i32, %arg1: i32) -> (i32, i32) {
    %c0_i32 = arith.constant 0 : i32
    %c0_i32_0 = arith.constant 0 : i32
    %c0_i32_1 = arith.constant 0 : i32
    return %c0_i32, %c0_i32_0 : i32, i32
  }
  func.func @transform_6(%arg0: i32, %arg1: i32) -> (i32, i32) {
    %c0_i32 = arith.constant 0 : i32
    %c0_i32_0 = arith.constant 0 : i32
    %c0_i32_1 = arith.constant 0 : i32
    return %c0_i32, %c0_i32_0 : i32, i32
  }
  func.func @transform_7(%arg0: i32, %arg1: i32) -> (i32, i32, i32) {
    %c0_i32 = arith.constant 0 : i32
    %c0_i32_0 = arith.constant 0 : i32
    %c0_i32_1 = arith.constant 0 : i32
    return %arg0, %c0_i32, %c0_i32_0 : i32, i32, i32
  }
}

</mosaic_0001>

<llo_original>
// kernel: tpu_custom_call.1
$region0: #{tpu_custom_call.1}
  #allocation0 [shape = 'u32[]', space=smem, size = 0x4, offset = 0x4, fixed_abs, tag = 'smem constant byte address 0x4 - core index']
  #allocation1 [shape = 'u32[144,128]{1,0:T(1,128)}', space=vmem, size = 0x12000, scoped, tag = 'internal scratch']
  #allocation2 [shape = 'bf16[8,1024]{1,0:T(8,128)(2,1)}', space=vmem, size = 0x4000, scoped, tag = 'scratch operand']
  %s0 = inlined_call_operand.vmem [shape: f32[2,512,3], index: 0, kind: input, shape index: {}]
  %s1 = inlined_call_operand.vmem [shape: bf16[3,64], index: 1, kind: input, shape index: {}]
  %s2 = inlined_call_operand.vmem [shape: f32[1,64], index: 2, kind: input, shape index: {}]
  %s3 = inlined_call_operand.vmem [shape: bf16[64,128], index: 3, kind: input, shape index: {}]
  %s4 = inlined_call_operand.vmem [shape: f32[1,128], index: 4, kind: input, shape index: {}]
  %s5 = inlined_call_operand.vmem [shape: bf16[128,1024], index: 5, kind: input, shape index: {}]
  %s6 = inlined_call_operand.vmem [shape: f32[1,1024], index: 6, kind: input, shape index: {}]
  %s7 = inlined_call_operand.vmem [shape: bf16[2,1,1024], index: 7, kind: output, shape index: {}]
  %s8 = sld [smem:[#allocation0]]
  $region69: #{tpu_custom_call.1} parent=0
    _
  %s10 = ssub.s32 1, %s8
  %s11 = scalar_select 0, %s10, %s8
  loop: start=0, step=1, limit=4
  $region2: #{tpu_custom_call.1} parent=0 // loop_pre_header
    _
  $region3: #{tpu_custom_call.1} parent=0 // loop_header
    %s13 = sphi 0, %s17
    %p14 = scmp.ge.s32.totalorder %s13, 4
    %s20 = sphi 0, %s32
    %s21 = sphi 0, %s28
    %s22 = sphi 0, %s20
    %s23 = sphi 0, %s21
    %s24 = sphi 0, %s22
    %s25 = sphi 0, %s23
    %s37 = sphi 0, %s39
    %s40 = sphi 0, %s37
    %s41 = sphi 0, %s40
    %s57 = sphi 0, %s41
    %s61 = sphi 0, %s61
    %s63 = sphi 0, %s61
    %s64 = sphi 0, %s63
    %s78 = sphi 0, %s64
    %s82 = sphi 0, %s82
    %s84 = sphi 0, %s82
    %s85 = sphi 0, %s84
    %s99 = sphi 0, %s85
    %s103 = sphi 0, %s103
    %s105 = sphi 0, %s103
    %s106 = sphi 0, %s105
    %s120 = sphi 0, %s106
    %s124 = sphi 0, %s124
    %s126 = sphi 0, %s124
    %s127 = sphi 0, %s126
    %s141 = sphi 0, %s127
    %s145 = sphi 0, %s145
    %s147 = sphi 0, %s145
    %s148 = sphi 0, %s147
    %s162 = sphi 0, %s148
    %s166 = sphi 0, %s166
    %s168 = sphi 0, %s166
    %s169 = sphi 0, %s168
    %s183 = sphi 0, %s169
    %s189 = sphi 0, %s191
    %s192 = sphi 0, %s189
    %s193 = sphi 0, %s192
    %s209 = sphi 0, %s193
  $region4: #{tpu_custom_call.1} parent=0 // loop_header_branch
    %16 = sbr.rel (%p14) target = $region8
  $region5: #{tpu_custom_call.1} parent=0 // loop_body
    %s18 = ssub.s32 %s13, 1
    %s19 = ssub.s32 %s13, 2
    %s26 = sadd.s32 1, %s21
    %p27 = scmp.ge.s32.totalorder %s26, 1
    %s28 = scalar_select %p27, 0, %s26
    %s29 = sadd.s32 1, %s20
    %s30 = scalar_select %p27, %s29, %s20
    %p31 = scmp.ge.s32.totalorder %s30, 2
    %s32 = scalar_select %p31, 0, %s30
    %s33 = ssub.s32 %s20, %s32
    %s34 = ssub.s32 %s21, %s28
    %s35 = sor.u32 %s33, %s34
    %p36 = scmp.eq.s32.totalorder %s35, 0
    %s38 = sadd.s32 %s37, 1
    %s39 = scalar_select %p36, %s37, %s38
    %p42 = pneg %p36
    %p43 = scmp.eq.s32.totalorder %s13, 1
    %p44 = por %p42, %p43
    %p45 = scmp.ne.s32.totalorder %s37, %s40
    %p46 = scmp.eq.s32.totalorder %s13, 0
    %p47 = por %p45, %p46
    %p48 = scmp.ne.s32.totalorder %s37, %s40
    %p49 = scmp.eq.s32.totalorder %s18, 1
    %p50 = por %p48, %p49
    %p51 = scmp.ne.s32.totalorder %s40, %s41
    %p52 = scmp.eq.s32.totalorder %s18, 0
    %p53 = por %p51, %p52
    %p54 = scmp.ne.s32.totalorder %s40, %s41
    %p55 = scmp.eq.s32.totalorder %s19, 1
    %p56 = por %p54, %p55
    %p58 = scmp.ne.s32.totalorder %s41, %s57
    %p59 = scmp.eq.s32.totalorder %s19, 0
    %p60 = por %p58, %p59
    %s62 = sadd.s32 %s61, 1
    %p65 = scmp.eq.s32.totalorder %s13, 1
    %p66 = scmp.ne.s32.totalorder %s61, %s63
    %p67 = scmp.eq.s32.totalorder %s13, 0
    %p68 = por %p66, %p67
    %p69 = scmp.ne.s32.totalorder %s61, %s63
    %p70 = scmp.eq.s32.totalorder %s18, 1
    %p71 = por %p69, %p70
    %p72 = scmp.ne.s32.totalorder %s63, %s64
    %p73 = scmp.eq.s32.totalorder %s18, 0
    %p74 = por %p72, %p73
    %p75 = scmp.ne.s32.totalorder %s63, %s64
    %p76 = scmp.eq.s32.totalorder %s19, 1
    %p77 = por %p75, %p76
    %p79 = scmp.ne.s32.totalorder %s64, %s78
    %p80 = scmp.eq.s32.totalorder %s19, 0
    %p81 = por %p79, %p80
    %s83 = sadd.s32 %s82, 1
    %p86 = scmp.eq.s32.totalorder %s13, 1
    %p87 = scmp.ne.s32.totalorder %s82, %s84
    %p88 = scmp.eq.s32.totalorder %s13, 0
    %p89 = por %p87, %p88
    %p90 = scmp.ne.s32.totalorder %s82, %s84
    %p91 = scmp.eq.s32.totalorder %s18, 1
    %p92 = por %p90, %p91
    %p93 = scmp.ne.s32.totalorder %s84, %s85
    %p94 = scmp.eq.s32.totalorder %s18, 0
    %p95 = por %p93, %p94
    %p96 = scmp.ne.s32.totalorder %s84, %s85
    %p97 = scmp.eq.s32.totalorder %s19, 1
    %p98 = por %p96, %p97
    %p100 = scmp.ne.s32.totalorder %s85, %s99
    %p101 = scmp.eq.s32.totalorder %s19, 0
    %p102 = por %p100, %p101
    %s104 = sadd.s32 %s103, 1
    %p107 = scmp.eq.s32.totalorder %s13, 1
    %p108 = scmp.ne.s32.totalorder %s103, %s105
    %p109 = scmp.eq.s32.totalorder %s13, 0
    %p110 = por %p108, %p109
    %p111 = scmp.ne.s32.totalorder %s103, %s105
    %p112 = scmp.eq.s32.totalorder %s18, 1
    %p113 = por %p111, %p112
    %p114 = scmp.ne.s32.totalorder %s105, %s106
    %p115 = scmp.eq.s32.totalorder %s18, 0
    %p116 = por %p114, %p115
    %p117 = scmp.ne.s32.totalorder %s105, %s106
    %p118 = scmp.eq.s32.totalorder %s19, 1
    %p119 = por %p117, %p118
    %p121 = scmp.ne.s32.totalorder %s106, %s120
    %p122 = scmp.eq.s32.totalorder %s19, 0
    %p123 = por %p121, %p122
    %s125 = sadd.s32 %s124, 1
    %p128 = scmp.eq.s32.totalorder %s13, 1
    %p129 = scmp.ne.s32.totalorder %s124, %s126
    %p130 = scmp.eq.s32.totalorder %s13, 0
    %p131 = por %p129, %p130
    %p132 = scmp.ne.s32.totalorder %s124, %s126
    %p133 = scmp.eq.s32.totalorder %s18, 1
    %p134 = por %p132, %p133
    %p135 = scmp.ne.s32.totalorder %s126, %s127
    %p136 = scmp.eq.s32.totalorder %s18, 0
    %p137 = por %p135, %p136
    %p138 = scmp.ne.s32.totalorder %s126, %s127
    %p139 = scmp.eq.s32.totalorder %s19, 1
    %p140 = por %p138, %p139
    %p142 = scmp.ne.s32.totalorder %s127, %s141
    %p143 = scmp.eq.s32.totalorder %s19, 0
    %p144 = por %p142, %p143
    %s146 = sadd.s32 %s145, 1
    %p149 = scmp.eq.s32.totalorder %s13, 1
    %p150 = scmp.ne.s32.totalorder %s145, %s147
    %p151 = scmp.eq.s32.totalorder %s13, 0
    %p152 = por %p150, %p151
    %p153 = scmp.ne.s32.totalorder %s145, %s147
    %p154 = scmp.eq.s32.totalorder %s18, 1
    %p155 = por %p153, %p154
    %p156 = scmp.ne.s32.totalorder %s147, %s148
    %p157 = scmp.eq.s32.totalorder %s18, 0
    %p158 = por %p156, %p157
    %p159 = scmp.ne.s32.totalorder %s147, %s148
    %p160 = scmp.eq.s32.totalorder %s19, 1
    %p161 = por %p159, %p160
    %p163 = scmp.ne.s32.totalorder %s148, %s162
    %p164 = scmp.eq.s32.totalorder %s19, 0
    %p165 = por %p163, %p164
    %s167 = sadd.s32 %s166, 1
    %p170 = scmp.eq.s32.totalorder %s13, 1
    %p171 = scmp.ne.s32.totalorder %s166, %s168
    %p172 = scmp.eq.s32.totalorder %s13, 0
    %p173 = por %p171, %p172
    %p174 = scmp.ne.s32.totalorder %s166, %s168
    %p175 = scmp.eq.s32.totalorder %s18, 1
    %p176 = por %p174, %p175
    %p177 = scmp.ne.s32.totalorder %s168, %s169
    %p178 = scmp.eq.s32.totalorder %s18, 0
    %p179 = por %p177, %p178
    %p180 = scmp.ne.s32.totalorder %s168, %s169
    %p181 = scmp.eq.s32.totalorder %s19, 1
    %p182 = por %p180, %p181
    %p184 = scmp.ne.s32.totalorder %s169, %s183
    %p185 = scmp.eq.s32.totalorder %s19, 0
    %p186 = por %p184, %p185
    %s187 = ssub.s32 %s20, %s32
    %p188 = scmp.eq.s32.totalorder %s187, 0
    %s190 = sadd.s32 %s189, 1
    %s191 = scalar_select %p188, %s189, %s190
    %p194 = pneg %p188
    %p195 = scmp.eq.s32.totalorder %s13, 1
    %p196 = por %p194, %p195
    %p197 = scmp.ne.s32.totalorder %s189, %s192
    %p198 = scmp.eq.s32.totalorder %s13, 0
    %p199 = por %p197, %p198
    %p200 = scmp.ne.s32.totalorder %s189, %s192
    %p201 = scmp.eq.s32.totalorder %s18, 1
    %p202 = por %p200, %p201
    %p203 = scmp.ne.s32.totalorder %s192, %s193
    %p204 = scmp.eq.s32.totalorder %s18, 0
    %p205 = por %p203, %p204
    %p206 = scmp.ne.s32.totalorder %s192, %s193
    %p207 = scmp.eq.s32.totalorder %s19, 1
    %p208 = por %p206, %p207
    %p210 = scmp.ne.s32.totalorder %s193, %s209
    %p211 = scmp.eq.s32.totalorder %s19, 0
    %p212 = por %p210, %p211
    %p213 = scmp.le.s32.totalorder 1, %s13
    %p214 = scmp.lt.s32.totalorder %s13, 3
    %p215 = pnand %p213, %p214
    %p216 = pneg %p215
    // Predicated region
    $region9: #{tpu_custom_call.1} parent=5 // pred_check
      _
    $region10: #{tpu_custom_call.1} parent=5 // pred_check_branch
      %218 = sbr.rel (%p215) target = $region12
    $region11: #{tpu_custom_call.1} parent=5 // pred_region
      %s219 = ssub.s32 %s13, 1
      // Predicated region
      $region13: #{tpu_custom_call.1} parent=11 // pred_check
        %p220 = pneg %p74
      $region14: #{tpu_custom_call.1} parent=11 // pred_check_branch
        %222 = sbr.rel (%p220) target = $region16
      $region15: #{tpu_custom_call.1} parent=11 // pred_region
        _
      $region16: #{tpu_custom_call.1} parent=11 // pred_fallthru
        _
      // Predicated region
      $region17: #{tpu_custom_call.1} parent=11 // pred_check
        %p223 = pneg %p95
      $region18: #{tpu_custom_call.1} parent=11 // pred_check_branch
        %225 = sbr.rel (%p223) target = $region20
      $region19: #{tpu_custom_call.1} parent=11 // pred_region
        _
      $region20: #{tpu_custom_call.1} parent=11 // pred_fallthru
        _
      // Predicated region
      $region21: #{tpu_custom_call.1} parent=11 // pred_check
        %p226 = pneg %p116
      $region22: #{tpu_custom_call.1} parent=11 // pred_check_branch
        %228 = sbr.rel (%p226) target = $region24
      $region23: #{tpu_custom_call.1} parent=11 // pred_region
        _
      $region24: #{tpu_custom_call.1} parent=11 // pred_fallthru
        _
      // Predicated region
      $region25: #{tpu_custom_call.1} parent=11 // pred_check
        %p229 = pneg %p137
      $region26: #{tpu_custom_call.1} parent=11 // pred_check_branch
        %231 = sbr.rel (%p229) target = $region28
      $region27: #{tpu_custom_call.1} parent=11 // pred_region
        _
      $region28: #{tpu_custom_call.1} parent=11 // pred_fallthru
        _
      // Predicated region
      $region29: #{tpu_custom_call.1} parent=11 // pred_check
        %p232 = pneg %p158
      $region30: #{tpu_custom_call.1} parent=11 // pred_check_branch
        %234 = sbr.rel (%p232) target = $region32
      $region31: #{tpu_custom_call.1} parent=11 // pred_region
        _
      $region32: #{tpu_custom_call.1} parent=11 // pred_fallthru
        _
      // Predicated region
      $region33: #{tpu_custom_call.1} parent=11 // pred_check
        %p235 = pneg %p179
      $region34: #{tpu_custom_call.1} parent=11 // pred_check_branch
        %237 = sbr.rel (%p235) target = $region36
      $region35: #{tpu_custom_call.1} parent=11 // pred_region
        _
      $region36: #{tpu_custom_call.1} parent=11 // pred_fallthru
        _
    $region12: #{tpu_custom_call.1} parent=5 // pred_fallthru
      _
    %p238 = scmp.lt.s32.totalorder %s13, 2
    // Predicated region
    $region37: #{tpu_custom_call.1} parent=5 // pred_check
      %p239 = pneg %p238
    $region38: #{tpu_custom_call.1} parent=5 // pred_check_branch
      %241 = sbr.rel (%p239) target = $region40
    $region39: #{tpu_custom_call.1} parent=5 // pred_region
      // Predicated region
      $region41: #{tpu_custom_call.1} parent=39 // pred_check
        %p242 = pneg %p47
      $region42: #{tpu_custom_call.1} parent=39 // pred_check_branch
        %244 = sbr.rel (%p242) target = $region44
      $region43: #{tpu_custom_call.1} parent=39 // pred_region
        %s245 = smul.u32 64, %s21
        %p246 = scmp.lt.s32.totalorder %s20, 1
        %s247 = scalar_select %p246, %s20, 1
        %p248 = scmp.lt.s32.totalorder %s245, 63
        %s249 = scalar_select %p248, %s245, 63
        %s250 = smul.addr %s247, 64
        %s251 = sadd.s32 %s249, %s250
        %s252 = smul.addr %s251, 8
        %s253 = scalar_lea.vmem %s0, %s252
        %s254 = smul.u32 64, %s21
      $region44: #{tpu_custom_call.1} parent=39 // pred_fallthru
        _
    $region40: #{tpu_custom_call.1} parent=5 // pred_fallthru
      _
    %p255 = scmp.le.s32.totalorder 1, %s13
    %p256 = scmp.lt.s32.totalorder %s13, 3
    %p257 = pnand %p255, %p256
    %p258 = pneg %p257
    // Predicated region
    $region45: #{tpu_custom_call.1} parent=5 // pred_check
      _
    $region46: #{tpu_custom_call.1} parent=5 // pred_check_branch
      %260 = sbr.rel (%p257) target = $region48
    $region47: #{tpu_custom_call.1} parent=5 // pred_region
      %s261 = ssub.s32 %s13, 1
      %s262 = smul.u32 64, %s23
      %p263 = scmp.lt.s32.totalorder %s22, 1
      %s264 = scalar_select %p263, %s22, 1
      %p265 = scmp.lt.s32.totalorder %s262, 63
      %s266 = scalar_select %p265, %s262, 63
      %s267 = smul.addr %s264, 64
      %s268 = sadd.s32 %s266, %s267
      %s269 = smul.addr %s268, 8
      %s270 = scalar_lea.vmem %s0, %s269
      %p271 = pneg %p53
      %p272 = pneg %p50
      %p273 = pneg %p74
      %p274 = pneg %p71
      %p275 = pneg %p95
      %p276 = pneg %p92
      %p277 = pneg %p116
      %p278 = pneg %p113
      %p279 = pneg %p137
      %p280 = pneg %p134
      %p281 = pneg %p158
      %p282 = pneg %p155
      %p283 = pneg %p179
      %p284 = pneg %p176
      %p285 = pneg %p205
      %p286 = pneg %p202
      %p287 = scmp.lt.s32.totalorder %s22, 1
      %s288 = scalar_select %p287, %s22, 1
      %s289 = smul.addr %s288, 8
      %s290 = scalar_lea.vmem %s7, %s289
      %s291 = smul.u32 64, %s23
      %p292 = scmp.lt.s32.totalorder %s22, 1
      %s293 = scalar_select %p292, %s22, 1
      %p294 = scmp.lt.s32.totalorder %s291, 63
      %s295 = scalar_select %p294, %s291, 63
      %s296 = smul.addr %s293, 64
      %s297 = sadd.s32 %s295, %s296
      %s298 = smul.addr %s297, 8
      %s299 = scalar_lea.vmem %s0, %s298
      %s300 = smul.u32 64, %s23
      %p301 = scmp.lt.s32.totalorder %s22, 1
      %s302 = scalar_select %p301, %s22, 1
      %s303 = smul.addr %s302, 8
      %s304 = scalar_lea.vmem %s7, %s303
      %p307 = scmp.eq.s32.totalorder %s23, 0
      // Predicated region
      $region49: #{tpu_custom_call.1} parent=47 // pred_check
        %p308 = pneg %p307
      $region50: #{tpu_custom_call.1} parent=47 // pred_check_branch
        %310 = sbr.rel (%p308) target = $region52
      $region51: #{tpu_custom_call.1} parent=47 // pred_region
        %311 = vst [vmem:[#allocation2] sm:$0xff] 0
        %312 = vst [vmem:[#allocation2 + $0x8] sm:$0xff] 0
        %313 = vst [vmem:[#allocation2 + $0x10] sm:$0xff] 0
        %314 = vst [vmem:[#allocation2 + $0x18] sm:$0xff] 0
      $region52: #{tpu_custom_call.1} parent=47 // pred_fallthru
        _
      %v315 = vld [vmem:[%s299] sm:$0xff]
      %v316 = vld [vmem:[%s299 + $0x8] sm:$0xff]
      %v317 = vld [vmem:[%s299 + $0x10] sm:$0xff]
      %v318 = vld [vmem:[%s299 + $0x18] sm:$0xff]
      %v319 = vld [vmem:[%s299 + $0x20] sm:$0xff]
      %v320 = vld [vmem:[%s299 + $0x28] sm:$0xff]
      %v321 = vld [vmem:[%s299 + $0x30] sm:$0xff]
      %v322 = vld [vmem:[%s299 + $0x38] sm:$0xff]
      %v323 = vld [vmem:[%s299 + $0x40] sm:$0xff]
      %v324 = vld [vmem:[%s299 + $0x48] sm:$0xff]
      %v325 = vld [vmem:[%s299 + $0x50] sm:$0xff]
      %v326 = vld [vmem:[%s299 + $0x58] sm:$0xff]
      %v327 = vld [vmem:[%s299 + $0x60] sm:$0xff]
      %v328 = vld [vmem:[%s299 + $0x68] sm:$0xff]
      %v329 = vld [vmem:[%s299 + $0x70] sm:$0xff]
      %v330 = vld [vmem:[%s299 + $0x78] sm:$0xff]
      %v331 = vld [vmem:[%s299 + $0x80] sm:$0xff]
      %v332 = vld [vmem:[%s299 + $0x88] sm:$0xff]
      %v333 = vld [vmem:[%s299 + $0x90] sm:$0xff]
      %v334 = vld [vmem:[%s299 + $0x98] sm:$0xff]
      %v335 = vld [vmem:[%s299 + $0xa0] sm:$0xff]
      %v336 = vld [vmem:[%s299 + $0xa8] sm:$0xff]
      %v337 = vld [vmem:[%s299 + $0xb0] sm:$0xff]
      %v338 = vld [vmem:[%s299 + $0xb8] sm:$0xff]
      %v339 = vld [vmem:[%s299 + $0xc0] sm:$0xff]
      %v340 = vld [vmem:[%s299 + $0xc8] sm:$0xff]
      %v341 = vld [vmem:[%s299 + $0xd0] sm:$0xff]
      %v342 = vld [vmem:[%s299 + $0xd8] sm:$0xff]
      %v343 = vld [vmem:[%s299 + $0xe0] sm:$0xff]
      %v344 = vld [vmem:[%s299 + $0xe8] sm:$0xff]
      %v345 = vld [vmem:[%s299 + $0xf0] sm:$0xff]
      %v346 = vld [vmem:[%s299 + $0xf8] sm:$0xff]
      %v347 = vld [vmem:[%s299 + $0x100] sm:$0xff]
      %v348 = vld [vmem:[%s299 + $0x108] sm:$0xff]
      %v349 = vld [vmem:[%s299 + $0x110] sm:$0xff]
      %v350 = vld [vmem:[%s299 + $0x118] sm:$0xff]
      %v351 = vld [vmem:[%s299 + $0x120] sm:$0xff]
      %v352 = vld [vmem:[%s299 + $0x128] sm:$0xff]
      %v353 = vld [vmem:[%s299 + $0x130] sm:$0xff]
      %v354 = vld [vmem:[%s299 + $0x138] sm:$0xff]
      %v355 = vld [vmem:[%s299 + $0x140] sm:$0xff]
      %v356 = vld [vmem:[%s299 + $0x148] sm:$0xff]
      %v357 = vld [vmem:[%s299 + $0x150] sm:$0xff]
      %v358 = vld [vmem:[%s299 + $0x158] sm:$0xff]
      %v359 = vld [vmem:[%s299 + $0x160] sm:$0xff]
      %v360 = vld [vmem:[%s299 + $0x168] sm:$0xff]
      %v361 = vld [vmem:[%s299 + $0x170] sm:$0xff]
      %v362 = vld [vmem:[%s299 + $0x178] sm:$0xff]
      %v363 = vld [vmem:[%s299 + $0x180] sm:$0xff]
      %v364 = vld [vmem:[%s299 + $0x188] sm:$0xff]
      %v365 = vld [vmem:[%s299 + $0x190] sm:$0xff]
      %v366 = vld [vmem:[%s299 + $0x198] sm:$0xff]
      %v367 = vld [vmem:[%s299 + $0x1a0] sm:$0xff]
      %v368 = vld [vmem:[%s299 + $0x1a8] sm:$0xff]
      %v369 = vld [vmem:[%s299 + $0x1b0] sm:$0xff]
      %v370 = vld [vmem:[%s299 + $0x1b8] sm:$0xff]
      %v371 = vld [vmem:[%s299 + $0x1c0] sm:$0xff]
      %v372 = vld [vmem:[%s299 + $0x1c8] sm:$0xff]
      %v373 = vld [vmem:[%s299 + $0x1d0] sm:$0xff]
      %v374 = vld [vmem:[%s299 + $0x1d8] sm:$0xff]
      %v375 = vld [vmem:[%s299 + $0x1e0] sm:$0xff]
      %v376 = vld [vmem:[%s299 + $0x1e8] sm:$0xff]
      %v377 = vld [vmem:[%s299 + $0x1f0] sm:$0xff]
      %v378 = vld [vmem:[%s299 + $0x1f8] sm:$0xff]
      %v379 = vpack.c.bf16 %v316, %v315
      %v380 = vpack.c.bf16 %v318, %v317
      %v381 = vpack.c.bf16 %v320, %v319
      %v382 = vpack.c.bf16 %v322, %v321
      %v383 = vpack.c.bf16 %v324, %v323
      %v384 = vpack.c.bf16 %v326, %v325
      %v385 = vpack.c.bf16 %v328, %v327
      %v386 = vpack.c.bf16 %v330, %v329
      %v387 = vpack.c.bf16 %v332, %v331
      %v388 = vpack.c.bf16 %v334, %v333
      %v389 = vpack.c.bf16 %v336, %v335
      %v390 = vpack.c.bf16 %v338, %v337
      %v391 = vpack.c.bf16 %v340, %v339
      %v392 = vpack.c.bf16 %v342, %v341
      %v393 = vpack.c.bf16 %v344, %v343
      %v394 = vpack.c.bf16 %v346, %v345
      %v395 = vpack.c.bf16 %v348, %v347
      %v396 = vpack.c.bf16 %v350, %v349
      %v397 = vpack.c.bf16 %v352, %v351
      %v398 = vpack.c.bf16 %v354, %v353
      %v399 = vpack.c.bf16 %v356, %v355
      %v400 = vpack.c.bf16 %v358, %v357
      %v401 = vpack.c.bf16 %v360, %v359
      %v402 = vpack.c.bf16 %v362, %v361
      %v403 = vpack.c.bf16 %v364, %v363
      %v404 = vpack.c.bf16 %v366, %v365
      %v405 = vpack.c.bf16 %v368, %v367
      %v406 = vpack.c.bf16 %v370, %v369
      %v407 = vpack.c.bf16 %v372, %v371
      %v408 = vpack.c.bf16 %v374, %v373
      %v409 = vpack.c.bf16 %v376, %v375
      %v410 = vpack.c.bf16 %v378, %v377
      %v411 = vld [vmem:[%s1] sm:$0x3]
      %v412 = vld [vmem:[%s2] sm:$0x1]
      %v414 = vlaneseq
      %v415 = vshrl.u32 %v414, 7
      %v416 = vsub.s32 0, %v415
      %v417 = vrot.slane %v412, %v416
      %vm419 = vcmask 23552
      %v421 = vsel %vm419, %v379, 0
      %v424 = vsel %vm419, %v380, 0
      %v427 = vsel %vm419, %v381, 0
      %v430 = vsel %vm419, %v382, 0
      %v433 = vsel %vm419, %v383, 0
      %v436 = vsel %vm419, %v384, 0
      %v439 = vsel %vm419, %v385, 0
      %v442 = vsel %vm419, %v386, 0
      %v445 = vsel %vm419, %v387, 0
      %v448 = vsel %vm419, %v388, 0
      %v451 = vsel %vm419, %v389, 0
      %v454 = vsel %vm419, %v390, 0
      %v457 = vsel %vm419, %v391, 0
      %v460 = vsel %vm419, %v392, 0
      %v463 = vsel %vm419, %v393, 0
      %v466 = vsel %vm419, %v394, 0
      %v469 = vsel %vm419, %v395, 0
      %v472 = vsel %vm419, %v396, 0
      %v475 = vsel %vm419, %v397, 0
      %v478 = vsel %vm419, %v398, 0
      %v481 = vsel %vm419, %v399, 0
      %v484 = vsel %vm419, %v400, 0
      %v487 = vsel %vm419, %v401, 0
      %v490 = vsel %vm419, %v402, 0
      %v493 = vsel %vm419, %v403, 0
      %v496 = vsel %vm419, %v404, 0
      %v499 = vsel %vm419, %v405, 0
      %v502 = vsel %vm419, %v406, 0
      %v505 = vsel %vm419, %v407, 0
      %v508 = vsel %vm419, %v408, 0
      %v511 = vsel %vm419, %v409, 0
      %v514 = vsel %vm419, %v410, 0
      %vm516 = vcmask 1040384
      %vm517 = vcmask 1041408
      %v518 = vsel %vm516, 4294967295, 65535
      %v519 = vsel %vm517, %v518, 0
      %v521 = vand.u32 %v411, %v519
      %523 = vmatprep.subr.bf16.mxu0 0
      %524 = vmatpush1.bf16.msra.mxu0 0
      %525 = vmatprep.subr.bf16.mxu0 0
      %526 = vmatpush1.bf16.msra.mxu0 0
      %527 = vmatprep.subr.bf16.mxu0 0
      %528 = vmatpush1.bf16.msra.mxu0 0
      %529 = vmatprep.subr.bf16.mxu0 0
      %530 = vmatpush1.bf16.msra.mxu0 0
      %531 = vmatprep.subr.bf16.mxu0 0
      %532 = vmatpush1.bf16.msra.mxu0 0
      %533 = vmatprep.subr.bf16.mxu0 0
      %534 = vmatpush1.bf16.msra.mxu0 0
      %535 = vmatprep.subr.bf16.mxu0 0
      %536 = vmatpush1.bf16.msra.mxu0 0
      %537 = vmatprep.subr.bf16.mxu0 0
      %538 = vmatpush1.bf16.msra.mxu0 %v521
      %539 = vmatprep.subr.bf16.mxu0 0
      %540 = vmatpush2.bf16.msra.mxu0 0
      %541 = vmatprep.subr.bf16.mxu0 0
      %542 = vmatpush2.bf16.msra.mxu0 0
      %543 = vmatprep.subr.bf16.mxu0 0
      %544 = vmatpush2.bf16.msra.mxu0 0
      %545 = vmatprep.subr.bf16.mxu0 0
      %546 = vmatpush2.bf16.msra.mxu0 0
      %547 = vmatprep.subr.bf16.mxu0 0
      %548 = vmatpush2.bf16.msra.mxu0 0
      %549 = vmatprep.subr.bf16.mxu0 0
      %550 = vmatpush2.bf16.msra.mxu0 0
      %551 = vmatprep.subr.bf16.mxu0 0
      %552 = vmatpush2.bf16.msra.mxu0 0
      %553 = vmatprep.subr.bf16.mxu0 0
      %554 = vmatpush2.bf16.msra.mxu0 0
      %555 = vmatprep.mubr.bf16.mxu0 0
      %556 = vmatmul.mubr.bf16.gmra.mxu0 %v421
      %v557 = vpop.f32.mrf.mxu0
      %v558 = vadd.f32 %v417, %v557
      %v559 = vpop.f32.mrf.mxu0
      %v560 = vpop.f32.mrf.mxu0
      %v561 = vadd.f32 %v417, %v560
      %v562 = vpop.f32.mrf.mxu0
      %563 = vmatprep.mubr.bf16.mxu0 0
      %564 = vmatmul.mubr.bf16.gmra.mxu0 %v424
      %v565 = vpop.f32.mrf.mxu0
      %v566 = vadd.f32 %v417, %v565
      %v567 = vpop.f32.mrf.mxu0
      %v568 = vpop.f32.mrf.mxu0
      %v569 = vadd.f32 %v417, %v568
      %v570 = vpop.f32.mrf.mxu0
      %571 = vmatprep.mubr.bf16.mxu0 0
      %572 = vmatmul.mubr.bf16.gmra.mxu0 %v427
      %v573 = vpop.f32.mrf.mxu0
      %v574 = vadd.f32 %v417, %v573
      %v575 = vpop.f32.mrf.mxu0
      %v576 = vpop.f32.mrf.mxu0
      %v577 = vadd.f32 %v417, %v576
      %v578 = vpop.f32.mrf.mxu0
      %579 = vmatprep.mubr.bf16.mxu0 0
      %580 = vmatmul.mubr.bf16.gmra.mxu0 %v430
      %v581 = vpop.f32.mrf.mxu0
      %v582 = vadd.f32 %v417, %v581
      %v583 = vpop.f32.mrf.mxu0
      %v584 = vpop.f32.mrf.mxu0
      %v585 = vadd.f32 %v417, %v584
      %v586 = vpop.f32.mrf.mxu0
      %587 = vmatprep.mubr.bf16.mxu0 0
      %588 = vmatmul.mubr.bf16.gmra.mxu0 %v433
      %v589 = vpop.f32.mrf.mxu0
      %v590 = vadd.f32 %v417, %v589
      %v591 = vpop.f32.mrf.mxu0
      %v592 = vpop.f32.mrf.mxu0
      %v593 = vadd.f32 %v417, %v592
      %v594 = vpop.f32.mrf.mxu0
      %595 = vmatprep.mubr.bf16.mxu0 0
      %596 = vmatmul.mubr.bf16.gmra.mxu0 %v436
      %v597 = vpop.f32.mrf.mxu0
      %v598 = vadd.f32 %v417, %v597
      %v599 = vpop.f32.mrf.mxu0
      %v600 = vpop.f32.mrf.mxu0
      %v601 = vadd.f32 %v417, %v600
      %v602 = vpop.f32.mrf.mxu0
      %603 = vmatprep.mubr.bf16.mxu0 0
      %604 = vmatmul.mubr.bf16.gmra.mxu0 %v439
      %v605 = vpop.f32.mrf.mxu0
      %v606 = vadd.f32 %v417, %v605
      %v607 = vpop.f32.mrf.mxu0
      %v608 = vpop.f32.mrf.mxu0
      %v609 = vadd.f32 %v417, %v608
      %v610 = vpop.f32.mrf.mxu0
      %611 = vmatprep.mubr.bf16.mxu0 0
      %612 = vmatmul.mubr.bf16.gmra.mxu0 %v442
      %v613 = vpop.f32.mrf.mxu0
      %v614 = vadd.f32 %v417, %v613
      %v615 = vpop.f32.mrf.mxu0
      %v616 = vpop.f32.mrf.mxu0
      %v617 = vadd.f32 %v417, %v616
      %v618 = vpop.f32.mrf.mxu0
      %619 = vmatprep.mubr.bf16.mxu0 0
      %620 = vmatmul.mubr.bf16.gmra.mxu0 %v445
      %v621 = vpop.f32.mrf.mxu0
      %v622 = vadd.f32 %v417, %v621
      %v623 = vpop.f32.mrf.mxu0
      %v624 = vpop.f32.mrf.mxu0
      %v625 = vadd.f32 %v417, %v624
      %v626 = vpop.f32.mrf.mxu0
      %627 = vmatprep.mubr.bf16.mxu0 0
      %628 = vmatmul.mubr.bf16.gmra.mxu0 %v448
      %v629 = vpop.f32.mrf.mxu0
      %v630 = vadd.f32 %v417, %v629
      %v631 = vpop.f32.mrf.mxu0
      %v632 = vpop.f32.mrf.mxu0
      %v633 = vadd.f32 %v417, %v632
      %v634 = vpop.f32.mrf.mxu0
      %635 = vmatprep.mubr.bf16.mxu0 0
      %636 = vmatmul.mubr.bf16.gmra.mxu0 %v451
      %v637 = vpop.f32.mrf.mxu0
      %v638 = vadd.f32 %v417, %v637
      %v639 = vpop.f32.mrf.mxu0
      %v640 = vpop.f32.mrf.mxu0
      %v641 = vadd.f32 %v417, %v640
      %v642 = vpop.f32.mrf.mxu0
      %643 = vmatprep.mubr.bf16.mxu0 0
      %644 = vmatmul.mubr.bf16.gmra.mxu0 %v454
      %v645 = vpop.f32.mrf.mxu0
      %v646 = vadd.f32 %v417, %v645
      %v647 = vpop.f32.mrf.mxu0
      %v648 = vpop.f32.mrf.mxu0
      %v649 = vadd.f32 %v417, %v648
      %v650 = vpop.f32.mrf.mxu0
      %651 = vmatprep.mubr.bf16.mxu0 0
      %652 = vmatmul.mubr.bf16.gmra.mxu0 %v457
      %v653 = vpop.f32.mrf.mxu0
      %v654 = vadd.f32 %v417, %v653
      %v655 = vpop.f32.mrf.mxu0
      %v656 = vpop.f32.mrf.mxu0
      %v657 = vadd.f32 %v417, %v656
      %v658 = vpop.f32.mrf.mxu0
      %659 = vmatprep.mubr.bf16.mxu0 0
      %660 = vmatmul.mubr.bf16.gmra.mxu0 %v460
      %v661 = vpop.f32.mrf.mxu0
      %v662 = vadd.f32 %v417, %v661
      %v663 = vpop.f32.mrf.mxu0
      %v664 = vpop.f32.mrf.mxu0
      %v665 = vadd.f32 %v417, %v664
      %v666 = vpop.f32.mrf.mxu0
      %667 = vmatprep.mubr.bf16.mxu0 0
      %668 = vmatmul.mubr.bf16.gmra.mxu0 %v463
      %v669 = vpop.f32.mrf.mxu0
      %v670 = vadd.f32 %v417, %v669
      %v671 = vpop.f32.mrf.mxu0
      %v672 = vpop.f32.mrf.mxu0
      %v673 = vadd.f32 %v417, %v672
      %v674 = vpop.f32.mrf.mxu0
      %675 = vmatprep.mubr.bf16.mxu0 0
      %676 = vmatmul.mubr.bf16.gmra.mxu0 %v466
      %v677 = vpop.f32.mrf.mxu0
      %v678 = vadd.f32 %v417, %v677
      %v679 = vpop.f32.mrf.mxu0
      %v680 = vpop.f32.mrf.mxu0
      %v681 = vadd.f32 %v417, %v680
      %v682 = vpop.f32.mrf.mxu0
      %683 = vmatprep.mubr.bf16.mxu0 0
      %684 = vmatmul.mubr.bf16.gmra.mxu0 %v469
      %v685 = vpop.f32.mrf.mxu0
      %v686 = vadd.f32 %v417, %v685
      %v687 = vpop.f32.mrf.mxu0
      %v688 = vpop.f32.mrf.mxu0
      %v689 = vadd.f32 %v417, %v688
      %v690 = vpop.f32.mrf.mxu0
      %691 = vmatprep.mubr.bf16.mxu0 0
      %692 = vmatmul.mubr.bf16.gmra.mxu0 %v472
      %v693 = vpop.f32.mrf.mxu0
      %v694 = vadd.f32 %v417, %v693
      %v695 = vpop.f32.mrf.mxu0
      %v696 = vpop.f32.mrf.mxu0
      %v697 = vadd.f32 %v417, %v696
      %v698 = vpop.f32.mrf.mxu0
      %699 = vmatprep.mubr.bf16.mxu0 0
      %700 = vmatmul.mubr.bf16.gmra.mxu0 %v475
      %v701 = vpop.f32.mrf.mxu0
      %v702 = vadd.f32 %v417, %v701
      %v703 = vpop.f32.mrf.mxu0
      %v704 = vpop.f32.mrf.mxu0
      %v705 = vadd.f32 %v417, %v704
      %v706 = vpop.f32.mrf.mxu0
      %707 = vmatprep.mubr.bf16.mxu0 0
      %708 = vmatmul.mubr.bf16.gmra.mxu0 %v478
      %v709 = vpop.f32.mrf.mxu0
      %v710 = vadd.f32 %v417, %v709
      %v711 = vpop.f32.mrf.mxu0
      %v712 = vpop.f32.mrf.mxu0
      %v713 = vadd.f32 %v417, %v712
      %v714 = vpop.f32.mrf.mxu0
      %715 = vmatprep.mubr.bf16.mxu0 0
      %716 = vmatmul.mubr.bf16.gmra.mxu0 %v481
      %v717 = vpop.f32.mrf.mxu0
      %v718 = vadd.f32 %v417, %v717
      %v719 = vpop.f32.mrf.mxu0
      %v720 = vpop.f32.mrf.mxu0
      %v721 = vadd.f32 %v417, %v720
      %v722 = vpop.f32.mrf.mxu0
      %723 = vmatprep.mubr.bf16.mxu0 0
      %724 = vmatmul.mubr.bf16.gmra.mxu0 %v484
      %v725 = vpop.f32.mrf.mxu0
      %v726 = vadd.f32 %v417, %v725
      %v727 = vpop.f32.mrf.mxu0
      %v728 = vpop.f32.mrf.mxu0
      %v729 = vadd.f32 %v417, %v728
      %v730 = vpop.f32.mrf.mxu0
      %731 = vmatprep.mubr.bf16.mxu0 0
      %732 = vmatmul.mubr.bf16.gmra.mxu0 %v487
      %v733 = vpop.f32.mrf.mxu0
      %v734 = vadd.f32 %v417, %v733
      %v735 = vpop.f32.mrf.mxu0
      %v736 = vpop.f32.mrf.mxu0
      %v737 = vadd.f32 %v417, %v736
      %v738 = vpop.f32.mrf.mxu0
      %739 = vmatprep.mubr.bf16.mxu0 0
      %740 = vmatmul.mubr.bf16.gmra.mxu0 %v490
      %v741 = vpop.f32.mrf.mxu0
      %v742 = vadd.f32 %v417, %v741
      %v743 = vpop.f32.mrf.mxu0
      %v744 = vpop.f32.mrf.mxu0
      %v745 = vadd.f32 %v417, %v744
      %v746 = vpop.f32.mrf.mxu0
      %747 = vmatprep.mubr.bf16.mxu0 0
      %748 = vmatmul.mubr.bf16.gmra.mxu0 %v493
      %v749 = vpop.f32.mrf.mxu0
      %v750 = vadd.f32 %v417, %v749
      %v751 = vpop.f32.mrf.mxu0
      %v752 = vpop.f32.mrf.mxu0
      %v753 = vadd.f32 %v417, %v752
      %v754 = vpop.f32.mrf.mxu0
      %755 = vmatprep.mubr.bf16.mxu0 0
      %756 = vmatmul.mubr.bf16.gmra.mxu0 %v496
      %v757 = vpop.f32.mrf.mxu0
      %v758 = vadd.f32 %v417, %v757
      %v759 = vpop.f32.mrf.mxu0
      %v760 = vpop.f32.mrf.mxu0
      %v761 = vadd.f32 %v417, %v760
      %v762 = vpop.f32.mrf.mxu0
      %763 = vmatprep.mubr.bf16.mxu0 0
      %764 = vmatmul.mubr.bf16.gmra.mxu0 %v499
      %v765 = vpop.f32.mrf.mxu0
      %v766 = vadd.f32 %v417, %v765
      %v767 = vpop.f32.mrf.mxu0
      %v768 = vpop.f32.mrf.mxu0
      %v769 = vadd.f32 %v417, %v768
      %v770 = vpop.f32.mrf.mxu0
      %771 = vmatprep.mubr.bf16.mxu0 0
      %772 = vmatmul.mubr.bf16.gmra.mxu0 %v502
      %v773 = vpop.f32.mrf.mxu0
      %v774 = vadd.f32 %v417, %v773
      %v775 = vpop.f32.mrf.mxu0
      %v776 = vpop.f32.mrf.mxu0
      %v777 = vadd.f32 %v417, %v776
      %v778 = vpop.f32.mrf.mxu0
      %779 = vmatprep.mubr.bf16.mxu0 0
      %780 = vmatmul.mubr.bf16.gmra.mxu0 %v505
      %v781 = vpop.f32.mrf.mxu0
      %v782 = vadd.f32 %v417, %v781
      %v783 = vpop.f32.mrf.mxu0
      %v784 = vpop.f32.mrf.mxu0
      %v785 = vadd.f32 %v417, %v784
      %v786 = vpop.f32.mrf.mxu0
      %787 = vmatprep.mubr.bf16.mxu0 0
      %788 = vmatmul.mubr.bf16.gmra.mxu0 %v508
      %v789 = vpop.f32.mrf.mxu0
      %v790 = vadd.f32 %v417, %v789
      %v791 = vpop.f32.mrf.mxu0
      %v792 = vpop.f32.mrf.mxu0
      %v793 = vadd.f32 %v417, %v792
      %v794 = vpop.f32.mrf.mxu0
      %795 = vmatprep.mubr.bf16.mxu0 0
      %796 = vmatmul.mubr.bf16.gmra.mxu0 %v511
      %v797 = vpop.f32.mrf.mxu0
      %v798 = vadd.f32 %v417, %v797
      %v799 = vpop.f32.mrf.mxu0
      %v800 = vpop.f32.mrf.mxu0
      %v801 = vadd.f32 %v417, %v800
      %v802 = vpop.f32.mrf.mxu0
      %803 = vmatprep.mubr.bf16.mxu0 0
      %804 = vmatmul.mubr.bf16.gmra.mxu0 %v514
      %v805 = vpop.f32.mrf.mxu0
      %v806 = vadd.f32 %v417, %v805
      %v807 = vpop.f32.mrf.mxu0
      %v808 = vpop.f32.mrf.mxu0
      %v809 = vadd.f32 %v417, %v808
      %v810 = vpop.f32.mrf.mxu0
      %811 = vdwg.mxu0
      %v812 = vmax.f32 %v558, 0.0
      %v813 = vmax.f32 %v561, 0.0
      %v814 = vmax.f32 %v566, 0.0
      %v815 = vmax.f32 %v569, 0.0
      %v816 = vmax.f32 %v574, 0.0
      %v817 = vmax.f32 %v577, 0.0
      %v818 = vmax.f32 %v582, 0.0
      %v819 = vmax.f32 %v585, 0.0
      %v820 = vmax.f32 %v590, 0.0
      %v821 = vmax.f32 %v593, 0.0
      %v822 = vmax.f32 %v598, 0.0
      %v823 = vmax.f32 %v601, 0.0
      %v824 = vmax.f32 %v606, 0.0
      %v825 = vmax.f32 %v609, 0.0
      %v826 = vmax.f32 %v614, 0.0
      %v827 = vmax.f32 %v617, 0.0
      %v828 = vmax.f32 %v622, 0.0
      %v829 = vmax.f32 %v625, 0.0
      %v830 = vmax.f32 %v630, 0.0
      %v831 = vmax.f32 %v633, 0.0
      %v832 = vmax.f32 %v638, 0.0
      %v833 = vmax.f32 %v641, 0.0
      %v834 = vmax.f32 %v646, 0.0
      %v835 = vmax.f32 %v649, 0.0
      %v836 = vmax.f32 %v654, 0.0
      %v837 = vmax.f32 %v657, 0.0
      %v838 = vmax.f32 %v662, 0.0
      %v839 = vmax.f32 %v665, 0.0
      %v840 = vmax.f32 %v670, 0.0
      %v841 = vmax.f32 %v673, 0.0
      %v842 = vmax.f32 %v678, 0.0
      %v843 = vmax.f32 %v681, 0.0
      %v844 = vmax.f32 %v686, 0.0
      %v845 = vmax.f32 %v689, 0.0
      %v846 = vmax.f32 %v694, 0.0
      %v847 = vmax.f32 %v697, 0.0
      %v848 = vmax.f32 %v702, 0.0
      %v849 = vmax.f32 %v705, 0.0
      %v850 = vmax.f32 %v710, 0.0
      %v851 = vmax.f32 %v713, 0.0
      %v852 = vmax.f32 %v718, 0.0
      %v853 = vmax.f32 %v721, 0.0
      %v854 = vmax.f32 %v726, 0.0
      %v855 = vmax.f32 %v729, 0.0
      %v856 = vmax.f32 %v734, 0.0
      %v857 = vmax.f32 %v737, 0.0
      %v858 = vmax.f32 %v742, 0.0
      %v859 = vmax.f32 %v745, 0.0
      %v860 = vmax.f32 %v750, 0.0
      %v861 = vmax.f32 %v753, 0.0
      %v862 = vmax.f32 %v758, 0.0
      %v863 = vmax.f32 %v761, 0.0
      %v864 = vmax.f32 %v766, 0.0
      %v865 = vmax.f32 %v769, 0.0
      %v866 = vmax.f32 %v774, 0.0
      %v867 = vmax.f32 %v777, 0.0
      %v868 = vmax.f32 %v782, 0.0
      %v869 = vmax.f32 %v785, 0.0
      %v870 = vmax.f32 %v790, 0.0
      %v871 = vmax.f32 %v793, 0.0
      %v872 = vmax.f32 %v798, 0.0
      %v873 = vmax.f32 %v801, 0.0
      %v874 = vmax.f32 %v806, 0.0
      %v875 = vmax.f32 %v809, 0.0
      %v876 = vpack.c.bf16 %v813, %v812
      %v877 = vpack.c.bf16 %v815, %v814
      %v878 = vpack.c.bf16 %v817, %v816
      %v879 = vpack.c.bf16 %v819, %v818
      %v880 = vpack.c.bf16 %v821, %v820
      %v881 = vpack.c.bf16 %v823, %v822
      %v882 = vpack.c.bf16 %v825, %v824
      %v883 = vpack.c.bf16 %v827, %v826
      %v884 = vpack.c.bf16 %v829, %v828
      %v885 = vpack.c.bf16 %v831, %v830
      %v886 = vpack.c.bf16 %v833, %v832
      %v887 = vpack.c.bf16 %v835, %v834
      %v888 = vpack.c.bf16 %v837, %v836
      %v889 = vpack.c.bf16 %v839, %v838
      %v890 = vpack.c.bf16 %v841, %v840
      %v891 = vpack.c.bf16 %v843, %v842
      %v892 = vpack.c.bf16 %v845, %v844
      %v893 = vpack.c.bf16 %v847, %v846
      %v894 = vpack.c.bf16 %v849, %v848
      %v895 = vpack.c.bf16 %v851, %v850
      %v896 = vpack.c.bf16 %v853, %v852
      %v897 = vpack.c.bf16 %v855, %v854
      %v898 = vpack.c.bf16 %v857, %v856
      %v899 = vpack.c.bf16 %v859, %v858
      %v900 = vpack.c.bf16 %v861, %v860
      %v901 = vpack.c.bf16 %v863, %v862
      %v902 = vpack.c.bf16 %v865, %v864
      %v903 = vpack.c.bf16 %v867, %v866
      %v904 = vpack.c.bf16 %v869, %v868
      %v905 = vpack.c.bf16 %v871, %v870
      %v906 = vpack.c.bf16 %v873, %v872
      %v907 = vpack.c.bf16 %v875, %v874
      %v908 = vld [vmem:[%s3] sm:$0xf]
      %v909 = vld [vmem:[%s3 + $0x4] sm:$0xf]
      %v910 = vld [vmem:[%s3 + $0x8] sm:$0xf]
      %v911 = vld [vmem:[%s3 + $0xc] sm:$0xf]
      %v912 = vld [vmem:[%s3 + $0x10] sm:$0xf]
      %v913 = vld [vmem:[%s3 + $0x14] sm:$0xf]
      %v914 = vld [vmem:[%s3 + $0x18] sm:$0xf]
      %v915 = vld [vmem:[%s3 + $0x1c] sm:$0xf]
      %v916 = vld [vmem:[%s4] sm:$0x1]
      %v918 = vlaneseq
      %v919 = vshrl.u32 %v918, 7
      %v920 = vsub.s32 0, %v919
      %v921 = vrot.slane %v916, %v920
      %v931 = vunpack.c.l.b16 %v908
      %v932 = vunpack.c.l.b16 %v909
      %v933 = vunpack.c.l.b16 %v910
      %v934 = vunpack.c.l.b16 %v911
      %v935 = vunpack.c.l.b16 %v912
      %v936 = vunpack.c.l.b16 %v913
      %v937 = vunpack.c.l.b16 %v914
      %v938 = vunpack.c.l.b16 %v915
      %v939 = vpack.c.b16 %v932, %v931
      %v940 = vpack.c.b16 %v934, %v933
      %v941 = vpack.c.b16 %v936, %v935
      %v942 = vpack.c.b16 %v938, %v937
      %vm947 = vcmask 523264
      %v949 = vsel %vm947, %v876, 0
      %v952 = vsel %vm947, %v877, 0
      %v955 = vsel %vm947, %v878, 0
      %v958 = vsel %vm947, %v879, 0
      %v961 = vsel %vm947, %v880, 0
      %v964 = vsel %vm947, %v881, 0
      %v967 = vsel %vm947, %v882, 0
      %v970 = vsel %vm947, %v883, 0
      %v973 = vsel %vm947, %v884, 0
      %v976 = vsel %vm947, %v885, 0
      %v979 = vsel %vm947, %v886, 0
      %v982 = vsel %vm947, %v887, 0
      %v985 = vsel %vm947, %v888, 0
      %v988 = vsel %vm947, %v889, 0
      %v991 = vsel %vm947, %v890, 0
      %v994 = vsel %vm947, %v891, 0
      %v997 = vsel %vm947, %v892, 0
      %v1000 = vsel %vm947, %v893, 0
      %v1003 = vsel %vm947, %v894, 0
      %v1006 = vsel %vm947, %v895, 0
      %v1009 = vsel %vm947, %v896, 0
      %v1012 = vsel %vm947, %v897, 0
      %v1015 = vsel %vm947, %v898, 0
      %v1018 = vsel %vm947, %v899, 0
      %v1021 = vsel %vm947, %v900, 0
      %v1024 = vsel %vm947, %v901, 0
      %v1027 = vsel %vm947, %v902, 0
      %v1030 = vsel %vm947, %v903, 0
      %v1033 = vsel %vm947, %v904, 0
      %v1036 = vsel %vm947, %v905, 0
      %v1039 = vsel %vm947, %v906, 0
      %v1042 = vsel %vm947, %v907, 0
      %1044 = vmatprep.subr.bf16.mxu0 0
      %1045 = vmatpush1.bf16.msra.mxu0 0
      %1046 = vmatprep.subr.bf16.mxu0 0
      %1047 = vmatpush1.bf16.msra.mxu0 0
      %1048 = vmatprep.subr.bf16.mxu0 0
      %1049 = vmatpush1.bf16.msra.mxu0 0
      %1050 = vmatprep.subr.bf16.mxu0 0
      %1051 = vmatpush1.bf16.msra.mxu0 0
      %1052 = vmatprep.subr.bf16.mxu0 0
      %1053 = vmatpush1.bf16.msra.mxu0 %v942
      %1054 = vmatprep.subr.bf16.mxu0 0
      %1055 = vmatpush1.bf16.msra.mxu0 %v941
      %1056 = vmatprep.subr.bf16.mxu0 0
      %1057 = vmatpush1.bf16.msra.mxu0 %v940
      %1058 = vmatprep.subr.bf16.mxu0 0
      %1059 = vmatpush1.bf16.msra.mxu0 %v939
      %1060 = vmatprep.subr.bf16.mxu0 0
      %1061 = vmatpush2.bf16.msra.mxu0 0
      %1062 = vmatprep.subr.bf16.mxu0 0
      %1063 = vmatpush2.bf16.msra.mxu0 0
      %1064 = vmatprep.subr.bf16.mxu0 0
      %1065 = vmatpush2.bf16.msra.mxu0 0
      %1066 = vmatprep.subr.bf16.mxu0 0
      %1067 = vmatpush2.bf16.msra.mxu0 0
      %1068 = vmatprep.subr.bf16.mxu0 0
      %1069 = vmatpush2.bf16.msra.mxu0 0
      %1070 = vmatprep.subr.bf16.mxu0 0
      %1071 = vmatpush2.bf16.msra.mxu0 0
      %1072 = vmatprep.subr.bf16.mxu0 0
      %1073 = vmatpush2.bf16.msra.mxu0 0
      %1074 = vmatprep.subr.bf16.mxu0 0
      %1075 = vmatpush2.bf16.msra.mxu0 0
      %1076 = vmatprep.mubr.bf16.mxu0 0
      %1077 = vmatmul.mubr.bf16.gmra.mxu0 %v949
      %v1078 = vpop.f32.mrf.mxu0
      %v1079 = vadd.f32 %v921, %v1078
      %v1080 = vpop.f32.mrf.mxu0
      %v1081 = vpop.f32.mrf.mxu0
      %v1082 = vadd.f32 %v921, %v1081
      %v1083 = vpop.f32.mrf.mxu0
      %1084 = vmatprep.mubr.bf16.mxu0 0
      %1085 = vmatmul.mubr.bf16.gmra.mxu0 %v952
      %v1086 = vpop.f32.mrf.mxu0
      %v1087 = vadd.f32 %v921, %v1086
      %v1088 = vpop.f32.mrf.mxu0
      %v1089 = vpop.f32.mrf.mxu0
      %v1090 = vadd.f32 %v921, %v1089
      %v1091 = vpop.f32.mrf.mxu0
      %1092 = vmatprep.mubr.bf16.mxu0 0
      %1093 = vmatmul.mubr.bf16.gmra.mxu0 %v955
      %v1094 = vpop.f32.mrf.mxu0
      %v1095 = vadd.f32 %v921, %v1094
      %v1096 = vpop.f32.mrf.mxu0
      %v1097 = vpop.f32.mrf.mxu0
      %v1098 = vadd.f32 %v921, %v1097
      %v1099 = vpop.f32.mrf.mxu0
      %1100 = vmatprep.mubr.bf16.mxu0 0
      %1101 = vmatmul.mubr.bf16.gmra.mxu0 %v958
      %v1102 = vpop.f32.mrf.mxu0
      %v1103 = vadd.f32 %v921, %v1102
      %v1104 = vpop.f32.mrf.mxu0
      %v1105 = vpop.f32.mrf.mxu0
      %v1106 = vadd.f32 %v921, %v1105
      %v1107 = vpop.f32.mrf.mxu0
      %1108 = vmatprep.mubr.bf16.mxu0 0
      %1109 = vmatmul.mubr.bf16.gmra.mxu0 %v961
      %v1110 = vpop.f32.mrf.mxu0
      %v1111 = vadd.f32 %v921, %v1110
      %v1112 = vpop.f32.mrf.mxu0
      %v1113 = vpop.f32.mrf.mxu0
      %v1114 = vadd.f32 %v921, %v1113
      %v1115 = vpop.f32.mrf.mxu0
      %1116 = vmatprep.mubr.bf16.mxu0 0
      %1117 = vmatmul.mubr.bf16.gmra.mxu0 %v964
      %v1118 = vpop.f32.mrf.mxu0
      %v1119 = vadd.f32 %v921, %v1118
      %v1120 = vpop.f32.mrf.mxu0
      %v1121 = vpop.f32.mrf.mxu0
      %v1122 = vadd.f32 %v921, %v1121
      %v1123 = vpop.f32.mrf.mxu0
      %1124 = vmatprep.mubr.bf16.mxu0 0
      %1125 = vmatmul.mubr.bf16.gmra.mxu0 %v967
      %v1126 = vpop.f32.mrf.mxu0
      %v1127 = vadd.f32 %v921, %v1126
      %v1128 = vpop.f32.mrf.mxu0
      %v1129 = vpop.f32.mrf.mxu0
      %v1130 = vadd.f32 %v921, %v1129
      %v1131 = vpop.f32.mrf.mxu0
      %1132 = vmatprep.mubr.bf16.mxu0 0
      %1133 = vmatmul.mubr.bf16.gmra.mxu0 %v970
      %v1134 = vpop.f32.mrf.mxu0
      %v1135 = vadd.f32 %v921, %v1134
      %v1136 = vpop.f32.mrf.mxu0
      %v1137 = vpop.f32.mrf.mxu0
      %v1138 = vadd.f32 %v921, %v1137
      %v1139 = vpop.f32.mrf.mxu0
      %1140 = vmatprep.mubr.bf16.mxu0 0
      %1141 = vmatmul.mubr.bf16.gmra.mxu0 %v973
      %v1142 = vpop.f32.mrf.mxu0
      %v1143 = vadd.f32 %v921, %v1142
      %v1144 = vpop.f32.mrf.mxu0
      %v1145 = vpop.f32.mrf.mxu0
      %v1146 = vadd.f32 %v921, %v1145
      %v1147 = vpop.f32.mrf.mxu0
      %1148 = vmatprep.mubr.bf16.mxu0 0
      %1149 = vmatmul.mubr.bf16.gmra.mxu0 %v976
      %v1150 = vpop.f32.mrf.mxu0
      %v1151 = vadd.f32 %v921, %v1150
      %v1152 = vpop.f32.mrf.mxu0
      %v1153 = vpop.f32.mrf.mxu0
      %v1154 = vadd.f32 %v921, %v1153
      %v1155 = vpop.f32.mrf.mxu0
      %1156 = vmatprep.mubr.bf16.mxu0 0
      %1157 = vmatmul.mubr.bf16.gmra.mxu0 %v979
      %v1158 = vpop.f32.mrf.mxu0
      %v1159 = vadd.f32 %v921, %v1158
      %v1160 = vpop.f32.mrf.mxu0
      %v1161 = vpop.f32.mrf.mxu0
      %v1162 = vadd.f32 %v921, %v1161
      %v1163 = vpop.f32.mrf.mxu0
      %1164 = vmatprep.mubr.bf16.mxu0 0
      %1165 = vmatmul.mubr.bf16.gmra.mxu0 %v982
      %v1166 = vpop.f32.mrf.mxu0
      %v1167 = vadd.f32 %v921, %v1166
      %v1168 = vpop.f32.mrf.mxu0
      %v1169 = vpop.f32.mrf.mxu0
      %v1170 = vadd.f32 %v921, %v1169
      %v1171 = vpop.f32.mrf.mxu0
      %1172 = vmatprep.mubr.bf16.mxu0 0
      %1173 = vmatmul.mubr.bf16.gmra.mxu0 %v985
      %v1174 = vpop.f32.mrf.mxu0
      %v1175 = vadd.f32 %v921, %v1174
      %v1176 = vpop.f32.mrf.mxu0
      %v1177 = vpop.f32.mrf.mxu0
      %v1178 = vadd.f32 %v921, %v1177
      %v1179 = vpop.f32.mrf.mxu0
      %1180 = vmatprep.mubr.bf16.mxu0 0
      %1181 = vmatmul.mubr.bf16.gmra.mxu0 %v988
      %v1182 = vpop.f32.mrf.mxu0
      %v1183 = vadd.f32 %v921, %v1182
      %v1184 = vpop.f32.mrf.mxu0
      %v1185 = vpop.f32.mrf.mxu0
      %v1186 = vadd.f32 %v921, %v1185
      %v1187 = vpop.f32.mrf.mxu0
      %1188 = vmatprep.mubr.bf16.mxu0 0
      %1189 = vmatmul.mubr.bf16.gmra.mxu0 %v991
      %v1190 = vpop.f32.mrf.mxu0
      %v1191 = vadd.f32 %v921, %v1190
      %v1192 = vpop.f32.mrf.mxu0
      %v1193 = vpop.f32.mrf.mxu0
      %v1194 = vadd.f32 %v921, %v1193
      %v1195 = vpop.f32.mrf.mxu0
      %1196 = vmatprep.mubr.bf16.mxu0 0
      %1197 = vmatmul.mubr.bf16.gmra.mxu0 %v994
      %v1198 = vpop.f32.mrf.mxu0
      %v1199 = vadd.f32 %v921, %v1198
      %v1200 = vpop.f32.mrf.mxu0
      %v1201 = vpop.f32.mrf.mxu0
      %v1202 = vadd.f32 %v921, %v1201
      %v1203 = vpop.f32.mrf.mxu0
      %1204 = vmatprep.mubr.bf16.mxu0 0
      %1205 = vmatmul.mubr.bf16.gmra.mxu0 %v997
      %v1206 = vpop.f32.mrf.mxu0
      %v1207 = vadd.f32 %v921, %v1206
      %v1208 = vpop.f32.mrf.mxu0
      %v1209 = vpop.f32.mrf.mxu0
      %v1210 = vadd.f32 %v921, %v1209
      %v1211 = vpop.f32.mrf.mxu0
      %1212 = vmatprep.mubr.bf16.mxu0 0
      %1213 = vmatmul.mubr.bf16.gmra.mxu0 %v1000
      %v1214 = vpop.f32.mrf.mxu0
      %v1215 = vadd.f32 %v921, %v1214
      %v1216 = vpop.f32.mrf.mxu0
      %v1217 = vpop.f32.mrf.mxu0
      %v1218 = vadd.f32 %v921, %v1217
      %v1219 = vpop.f32.mrf.mxu0
      %1220 = vmatprep.mubr.bf16.mxu0 0
      %1221 = vmatmul.mubr.bf16.gmra.mxu0 %v1003
      %v1222 = vpop.f32.mrf.mxu0
      %v1223 = vadd.f32 %v921, %v1222
      %v1224 = vpop.f32.mrf.mxu0
      %v1225 = vpop.f32.mrf.mxu0
      %v1226 = vadd.f32 %v921, %v1225
      %v1227 = vpop.f32.mrf.mxu0
      %1228 = vmatprep.mubr.bf16.mxu0 0
      %1229 = vmatmul.mubr.bf16.gmra.mxu0 %v1006
      %v1230 = vpop.f32.mrf.mxu0
      %v1231 = vadd.f32 %v921, %v1230
      %v1232 = vpop.f32.mrf.mxu0
      %v1233 = vpop.f32.mrf.mxu0
      %v1234 = vadd.f32 %v921, %v1233
      %v1235 = vpop.f32.mrf.mxu0
      %1236 = vmatprep.mubr.bf16.mxu0 0
      %1237 = vmatmul.mubr.bf16.gmra.mxu0 %v1009
      %v1238 = vpop.f32.mrf.mxu0
      %v1239 = vadd.f32 %v921, %v1238
      %v1240 = vpop.f32.mrf.mxu0
      %v1241 = vpop.f32.mrf.mxu0
      %v1242 = vadd.f32 %v921, %v1241
      %v1243 = vpop.f32.mrf.mxu0
      %1244 = vmatprep.mubr.bf16.mxu0 0
      %1245 = vmatmul.mubr.bf16.gmra.mxu0 %v1012
      %v1246 = vpop.f32.mrf.mxu0
      %v1247 = vadd.f32 %v921, %v1246
      %v1248 = vpop.f32.mrf.mxu0
      %v1249 = vpop.f32.mrf.mxu0
      %v1250 = vadd.f32 %v921, %v1249
      %v1251 = vpop.f32.mrf.mxu0
      %1252 = vmatprep.mubr.bf16.mxu0 0
      %1253 = vmatmul.mubr.bf16.gmra.mxu0 %v1015
      %v1254 = vpop.f32.mrf.mxu0
      %v1255 = vadd.f32 %v921, %v1254
      %v1256 = vpop.f32.mrf.mxu0
      %v1257 = vpop.f32.mrf.mxu0
      %v1258 = vadd.f32 %v921, %v1257
      %v1259 = vpop.f32.mrf.mxu0
      %1260 = vmatprep.mubr.bf16.mxu0 0
      %1261 = vmatmul.mubr.bf16.gmra.mxu0 %v1018
      %v1262 = vpop.f32.mrf.mxu0
      %v1263 = vadd.f32 %v921, %v1262
      %v1264 = vpop.f32.mrf.mxu0
      %v1265 = vpop.f32.mrf.mxu0
      %v1266 = vadd.f32 %v921, %v1265
      %v1267 = vpop.f32.mrf.mxu0
      %1268 = vmatprep.mubr.bf16.mxu0 0
      %1269 = vmatmul.mubr.bf16.gmra.mxu0 %v1021
      %v1270 = vpop.f32.mrf.mxu0
      %v1271 = vadd.f32 %v921, %v1270
      %v1272 = vpop.f32.mrf.mxu0
      %v1273 = vpop.f32.mrf.mxu0
      %v1274 = vadd.f32 %v921, %v1273
      %v1275 = vpop.f32.mrf.mxu0
      %1276 = vmatprep.mubr.bf16.mxu0 0
      %1277 = vmatmul.mubr.bf16.gmra.mxu0 %v1024
      %v1278 = vpop.f32.mrf.mxu0
      %v1279 = vadd.f32 %v921, %v1278
      %v1280 = vpop.f32.mrf.mxu0
      %v1281 = vpop.f32.mrf.mxu0
      %v1282 = vadd.f32 %v921, %v1281
      %v1283 = vpop.f32.mrf.mxu0
      %1284 = vmatprep.mubr.bf16.mxu0 0
      %1285 = vmatmul.mubr.bf16.gmra.mxu0 %v1027
      %v1286 = vpop.f32.mrf.mxu0
      %v1287 = vadd.f32 %v921, %v1286
      %v1288 = vpop.f32.mrf.mxu0
      %v1289 = vpop.f32.mrf.mxu0
      %v1290 = vadd.f32 %v921, %v1289
      %v1291 = vpop.f32.mrf.mxu0
      %1292 = vmatprep.mubr.bf16.mxu0 0
      %1293 = vmatmul.mubr.bf16.gmra.mxu0 %v1030
      %v1294 = vpop.f32.mrf.mxu0
      %v1295 = vadd.f32 %v921, %v1294
      %v1296 = vpop.f32.mrf.mxu0
      %v1297 = vpop.f32.mrf.mxu0
      %v1298 = vadd.f32 %v921, %v1297
      %v1299 = vpop.f32.mrf.mxu0
      %1300 = vmatprep.mubr.bf16.mxu0 0
      %1301 = vmatmul.mubr.bf16.gmra.mxu0 %v1033
      %v1302 = vpop.f32.mrf.mxu0
      %v1303 = vadd.f32 %v921, %v1302
      %v1304 = vpop.f32.mrf.mxu0
      %v1305 = vpop.f32.mrf.mxu0
      %v1306 = vadd.f32 %v921, %v1305
      %v1307 = vpop.f32.mrf.mxu0
      %1308 = vmatprep.mubr.bf16.mxu0 0
      %1309 = vmatmul.mubr.bf16.gmra.mxu0 %v1036
      %v1310 = vpop.f32.mrf.mxu0
      %v1311 = vadd.f32 %v921, %v1310
      %v1312 = vpop.f32.mrf.mxu0
      %v1313 = vpop.f32.mrf.mxu0
      %v1314 = vadd.f32 %v921, %v1313
      %v1315 = vpop.f32.mrf.mxu0
      %1316 = vmatprep.mubr.bf16.mxu0 0
      %1317 = vmatmul.mubr.bf16.gmra.mxu0 %v1039
      %v1318 = vpop.f32.mrf.mxu0
      %v1319 = vadd.f32 %v921, %v1318
      %v1320 = vpop.f32.mrf.mxu0
      %v1321 = vpop.f32.mrf.mxu0
      %v1322 = vadd.f32 %v921, %v1321
      %v1323 = vpop.f32.mrf.mxu0
      %1324 = vmatprep.mubr.bf16.mxu0 0
      %1325 = vmatmul.mubr.bf16.gmra.mxu0 %v1042
      %v1326 = vpop.f32.mrf.mxu0
      %v1327 = vadd.f32 %v921, %v1326
      %v1328 = vpop.f32.mrf.mxu0
      %v1329 = vpop.f32.mrf.mxu0
      %v1330 = vadd.f32 %v921, %v1329
      %v1331 = vpop.f32.mrf.mxu0
      %1332 = vdwg.mxu0
      %v1333 = vmax.f32 %v1079, 0.0
      %v1334 = vmax.f32 %v1082, 0.0
      %v1335 = vmax.f32 %v1087, 0.0
      %v1336 = vmax.f32 %v1090, 0.0
      %v1337 = vmax.f32 %v1095, 0.0
      %v1338 = vmax.f32 %v1098, 0.0
      %v1339 = vmax.f32 %v1103, 0.0
      %v1340 = vmax.f32 %v1106, 0.0
      %v1341 = vmax.f32 %v1111, 0.0
      %v1342 = vmax.f32 %v1114, 0.0
      %v1343 = vmax.f32 %v1119, 0.0
      %v1344 = vmax.f32 %v1122, 0.0
      %v1345 = vmax.f32 %v1127, 0.0
      %v1346 = vmax.f32 %v1130, 0.0
      %v1347 = vmax.f32 %v1135, 0.0
      %v1348 = vmax.f32 %v1138, 0.0
      %v1349 = vmax.f32 %v1143, 0.0
      %v1350 = vmax.f32 %v1146, 0.0
      %v1351 = vmax.f32 %v1151, 0.0
      %v1352 = vmax.f32 %v1154, 0.0
      %v1353 = vmax.f32 %v1159, 0.0
      %v1354 = vmax.f32 %v1162, 0.0
      %v1355 = vmax.f32 %v1167, 0.0
      %v1356 = vmax.f32 %v1170, 0.0
      %v1357 = vmax.f32 %v1175, 0.0
      %v1358 = vmax.f32 %v1178, 0.0
      %v1359 = vmax.f32 %v1183, 0.0
      %v1360 = vmax.f32 %v1186, 0.0
      %v1361 = vmax.f32 %v1191, 0.0
      %v1362 = vmax.f32 %v1194, 0.0
      %v1363 = vmax.f32 %v1199, 0.0
      %v1364 = vmax.f32 %v1202, 0.0
      %v1365 = vmax.f32 %v1207, 0.0
      %v1366 = vmax.f32 %v1210, 0.0
      %v1367 = vmax.f32 %v1215, 0.0
      %v1368 = vmax.f32 %v1218, 0.0
      %v1369 = vmax.f32 %v1223, 0.0
      %v1370 = vmax.f32 %v1226, 0.0
      %v1371 = vmax.f32 %v1231, 0.0
      %v1372 = vmax.f32 %v1234, 0.0
      %v1373 = vmax.f32 %v1239, 0.0
      %v1374 = vmax.f32 %v1242, 0.0
      %v1375 = vmax.f32 %v1247, 0.0
      %v1376 = vmax.f32 %v1250, 0.0
      %v1377 = vmax.f32 %v1255, 0.0
      %v1378 = vmax.f32 %v1258, 0.0
      %v1379 = vmax.f32 %v1263, 0.0
      %v1380 = vmax.f32 %v1266, 0.0
      %v1381 = vmax.f32 %v1271, 0.0
      %v1382 = vmax.f32 %v1274, 0.0
      %v1383 = vmax.f32 %v1279, 0.0
      %v1384 = vmax.f32 %v1282, 0.0
      %v1385 = vmax.f32 %v1287, 0.0
      %v1386 = vmax.f32 %v1290, 0.0
      %v1387 = vmax.f32 %v1295, 0.0
      %v1388 = vmax.f32 %v1298, 0.0
      %v1389 = vmax.f32 %v1303, 0.0
      %v1390 = vmax.f32 %v1306, 0.0
      %v1391 = vmax.f32 %v1311, 0.0
      %v1392 = vmax.f32 %v1314, 0.0
      %v1393 = vmax.f32 %v1319, 0.0
      %v1394 = vmax.f32 %v1322, 0.0
      %v1395 = vmax.f32 %v1327, 0.0
      %v1396 = vmax.f32 %v1330, 0.0
      %v1397 = vpack.c.bf16 %v1334, %v1333
      %v1398 = vpack.c.bf16 %v1336, %v1335
      %v1399 = vpack.c.bf16 %v1338, %v1337
      %v1400 = vpack.c.bf16 %v1340, %v1339
      %v1401 = vpack.c.bf16 %v1342, %v1341
      %v1402 = vpack.c.bf16 %v1344, %v1343
      %v1403 = vpack.c.bf16 %v1346, %v1345
      %v1404 = vpack.c.bf16 %v1348, %v1347
      %v1405 = vpack.c.bf16 %v1350, %v1349
      %v1406 = vpack.c.bf16 %v1352, %v1351
      %v1407 = vpack.c.bf16 %v1354, %v1353
      %v1408 = vpack.c.bf16 %v1356, %v1355
      %v1409 = vpack.c.bf16 %v1358, %v1357
      %v1410 = vpack.c.bf16 %v1360, %v1359
      %v1411 = vpack.c.bf16 %v1362, %v1361
      %v1412 = vpack.c.bf16 %v1364, %v1363
      %v1413 = vpack.c.bf16 %v1366, %v1365
      %v1414 = vpack.c.bf16 %v1368, %v1367
      %v1415 = vpack.c.bf16 %v1370, %v1369
      %v1416 = vpack.c.bf16 %v1372, %v1371
      %v1417 = vpack.c.bf16 %v1374, %v1373
      %v1418 = vpack.c.bf16 %v1376, %v1375
      %v1419 = vpack.c.bf16 %v1378, %v1377
      %v1420 = vpack.c.bf16 %v1380, %v1379
      %v1421 = vpack.c.bf16 %v1382, %v1381
      %v1422 = vpack.c.bf16 %v1384, %v1383
      %v1423 = vpack.c.bf16 %v1386, %v1385
      %v1424 = vpack.c.bf16 %v1388, %v1387
      %v1425 = vpack.c.bf16 %v1390, %v1389
      %v1426 = vpack.c.bf16 %v1392, %v1391
      %v1427 = vpack.c.bf16 %v1394, %v1393
      %v1428 = vpack.c.bf16 %v1396, %v1395
      %v1429 = vld [vmem:[%s5] sm:$0xff]
      %v1430 = vld [vmem:[%s5 + $0x8] sm:$0xff]
      %v1431 = vld [vmem:[%s5 + $0x10] sm:$0xff]
      %v1432 = vld [vmem:[%s5 + $0x18] sm:$0xff]
      %v1433 = vld [vmem:[%s5 + $0x20] sm:$0xff]
      %v1434 = vld [vmem:[%s5 + $0x28] sm:$0xff]
      %v1435 = vld [vmem:[%s5 + $0x30] sm:$0xff]
      %v1436 = vld [vmem:[%s5 + $0x38] sm:$0xff]
      %v1437 = vld [vmem:[%s5 + $0x40] sm:$0xff]
      %v1438 = vld [vmem:[%s5 + $0x48] sm:$0xff]
      %v1439 = vld [vmem:[%s5 + $0x50] sm:$0xff]
      %v1440 = vld [vmem:[%s5 + $0x58] sm:$0xff]
      %v1441 = vld [vmem:[%s5 + $0x60] sm:$0xff]
      %v1442 = vld [vmem:[%s5 + $0x68] sm:$0xff]
      %v1443 = vld [vmem:[%s5 + $0x70] sm:$0xff]
      %v1444 = vld [vmem:[%s5 + $0x78] sm:$0xff]
      %v1445 = vld [vmem:[%s5 + $0x80] sm:$0xff]
      %v1446 = vld [vmem:[%s5 + $0x88] sm:$0xff]
      %v1447 = vld [vmem:[%s5 + $0x90] sm:$0xff]
      %v1448 = vld [vmem:[%s5 + $0x98] sm:$0xff]
      %v1449 = vld [vmem:[%s5 + $0xa0] sm:$0xff]
      %v1450 = vld [vmem:[%s5 + $0xa8] sm:$0xff]
      %v1451 = vld [vmem:[%s5 + $0xb0] sm:$0xff]
      %v1452 = vld [vmem:[%s5 + $0xb8] sm:$0xff]
      %v1453 = vld [vmem:[%s5 + $0xc0] sm:$0xff]
      %v1454 = vld [vmem:[%s5 + $0xc8] sm:$0xff]
      %v1455 = vld [vmem:[%s5 + $0xd0] sm:$0xff]
      %v1456 = vld [vmem:[%s5 + $0xd8] sm:$0xff]
      %v1457 = vld [vmem:[%s5 + $0xe0] sm:$0xff]
      %v1458 = vld [vmem:[%s5 + $0xe8] sm:$0xff]
      %v1459 = vld [vmem:[%s5 + $0xf0] sm:$0xff]
      %v1460 = vld [vmem:[%s5 + $0xf8] sm:$0xff]
      %v1461 = vld [vmem:[%s5 + $0x100] sm:$0xff]
      %v1462 = vld [vmem:[%s5 + $0x108] sm:$0xff]
      %v1463 = vld [vmem:[%s5 + $0x110] sm:$0xff]
      %v1464 = vld [vmem:[%s5 + $0x118] sm:$0xff]
      %v1465 = vld [vmem:[%s5 + $0x120] sm:$0xff]
      %v1466 = vld [vmem:[%s5 + $0x128] sm:$0xff]
      %v1467 = vld [vmem:[%s5 + $0x130] sm:$0xff]
      %v1468 = vld [vmem:[%s5 + $0x138] sm:$0xff]
      %v1469 = vld [vmem:[%s5 + $0x140] sm:$0xff]
      %v1470 = vld [vmem:[%s5 + $0x148] sm:$0xff]
      %v1471 = vld [vmem:[%s5 + $0x150] sm:$0xff]
      %v1472 = vld [vmem:[%s5 + $0x158] sm:$0xff]
      %v1473 = vld [vmem:[%s5 + $0x160] sm:$0xff]
      %v1474 = vld [vmem:[%s5 + $0x168] sm:$0xff]
      %v1475 = vld [vmem:[%s5 + $0x170] sm:$0xff]
      %v1476 = vld [vmem:[%s5 + $0x178] sm:$0xff]
      %v1477 = vld [vmem:[%s5 + $0x180] sm:$0xff]
      %v1478 = vld [vmem:[%s5 + $0x188] sm:$0xff]
      %v1479 = vld [vmem:[%s5 + $0x190] sm:$0xff]
      %v1480 = vld [vmem:[%s5 + $0x198] sm:$0xff]
      %v1481 = vld [vmem:[%s5 + $0x1a0] sm:$0xff]
      %v1482 = vld [vmem:[%s5 + $0x1a8] sm:$0xff]
      %v1483 = vld [vmem:[%s5 + $0x1b0] sm:$0xff]
      %v1484 = vld [vmem:[%s5 + $0x1b8] sm:$0xff]
      %v1485 = vld [vmem:[%s5 + $0x1c0] sm:$0xff]
      %v1486 = vld [vmem:[%s5 + $0x1c8] sm:$0xff]
      %v1487 = vld [vmem:[%s5 + $0x1d0] sm:$0xff]
      %v1488 = vld [vmem:[%s5 + $0x1d8] sm:$0xff]
      %v1489 = vld [vmem:[%s5 + $0x1e0] sm:$0xff]
      %v1490 = vld [vmem:[%s5 + $0x1e8] sm:$0xff]
      %v1491 = vld [vmem:[%s5 + $0x1f0] sm:$0xff]
      %v1492 = vld [vmem:[%s5 + $0x1f8] sm:$0xff]
      %v1557 = vunpack.c.l.b16 %v1429
      %v1558 = vunpack.c.h.b16 %v1429
      %v1559 = vunpack.c.l.b16 %v1430
      %v1560 = vunpack.c.h.b16 %v1430
      %v1561 = vunpack.c.l.b16 %v1431
      %v1562 = vunpack.c.h.b16 %v1431
      %v1563 = vunpack.c.l.b16 %v1432
      %v1564 = vunpack.c.h.b16 %v1432
      %v1565 = vunpack.c.l.b16 %v1433
      %v1566 = vunpack.c.h.b16 %v1433
      %v1567 = vunpack.c.l.b16 %v1434
      %v1568 = vunpack.c.h.b16 %v1434
      %v1569 = vunpack.c.l.b16 %v1435
      %v1570 = vunpack.c.h.b16 %v1435
      %v1571 = vunpack.c.l.b16 %v1436
      %v1572 = vunpack.c.h.b16 %v1436
      %v1573 = vunpack.c.l.b16 %v1437
      %v1574 = vunpack.c.h.b16 %v1437
      %v1575 = vunpack.c.l.b16 %v1438
      %v1576 = vunpack.c.h.b16 %v1438
      %v1577 = vunpack.c.l.b16 %v1439
      %v1578 = vunpack.c.h.b16 %v1439
      %v1579 = vunpack.c.l.b16 %v1440
      %v1580 = vunpack.c.h.b16 %v1440
      %v1581 = vunpack.c.l.b16 %v1441
      %v1582 = vunpack.c.h.b16 %v1441
      %v1583 = vunpack.c.l.b16 %v1442
      %v1584 = vunpack.c.h.b16 %v1442
      %v1585 = vunpack.c.l.b16 %v1443
      %v1586 = vunpack.c.h.b16 %v1443
      %v1587 = vunpack.c.l.b16 %v1444
      %v1588 = vunpack.c.h.b16 %v1444
      %v1589 = vunpack.c.l.b16 %v1445
      %v1590 = vunpack.c.h.b16 %v1445
      %v1591 = vunpack.c.l.b16 %v1446
      %v1592 = vunpack.c.h.b16 %v1446
      %v1593 = vunpack.c.l.b16 %v1447
      %v1594 = vunpack.c.h.b16 %v1447
      %v1595 = vunpack.c.l.b16 %v1448
      %v1596 = vunpack.c.h.b16 %v1448
      %v1597 = vunpack.c.l.b16 %v1449
      %v1598 = vunpack.c.h.b16 %v1449
      %v1599 = vunpack.c.l.b16 %v1450
      %v1600 = vunpack.c.h.b16 %v1450
      %v1601 = vunpack.c.l.b16 %v1451
      %v1602 = vunpack.c.h.b16 %v1451
      %v1603 = vunpack.c.l.b16 %v1452
      %v1604 = vunpack.c.h.b16 %v1452
      %v1605 = vunpack.c.l.b16 %v1453
      %v1606 = vunpack.c.h.b16 %v1453
      %v1607 = vunpack.c.l.b16 %v1454
      %v1608 = vunpack.c.h.b16 %v1454
      %v1609 = vunpack.c.l.b16 %v1455
      %v1610 = vunpack.c.h.b16 %v1455
      %v1611 = vunpack.c.l.b16 %v1456
      %v1612 = vunpack.c.h.b16 %v1456
      %v1613 = vunpack.c.l.b16 %v1457
      %v1614 = vunpack.c.h.b16 %v1457
      %v1615 = vunpack.c.l.b16 %v1458
      %v1616 = vunpack.c.h.b16 %v1458
      %v1617 = vunpack.c.l.b16 %v1459
      %v1618 = vunpack.c.h.b16 %v1459
      %v1619 = vunpack.c.l.b16 %v1460
      %v1620 = vunpack.c.h.b16 %v1460
      %v1621 = vunpack.c.l.b16 %v1461
      %v1622 = vunpack.c.h.b16 %v1461
      %v1623 = vunpack.c.l.b16 %v1462
      %v1624 = vunpack.c.h.b16 %v1462
      %v1625 = vunpack.c.l.b16 %v1463
      %v1626 = vunpack.c.h.b16 %v1463
      %v1627 = vunpack.c.l.b16 %v1464
      %v1628 = vunpack.c.h.b16 %v1464
      %v1629 = vunpack.c.l.b16 %v1465
      %v1630 = vunpack.c.h.b16 %v1465
      %v1631 = vunpack.c.l.b16 %v1466
      %v1632 = vunpack.c.h.b16 %v1466
      %v1633 = vunpack.c.l.b16 %v1467
      %v1634 = vunpack.c.h.b16 %v1467
      %v1635 = vunpack.c.l.b16 %v1468
      %v1636 = vunpack.c.h.b16 %v1468
      %v1637 = vunpack.c.l.b16 %v1469
      %v1638 = vunpack.c.h.b16 %v1469
      %v1639 = vunpack.c.l.b16 %v1470
      %v1640 = vunpack.c.h.b16 %v1470
      %v1641 = vunpack.c.l.b16 %v1471
      %v1642 = vunpack.c.h.b16 %v1471
      %v1643 = vunpack.c.l.b16 %v1472
      %v1644 = vunpack.c.h.b16 %v1472
      %v1645 = vunpack.c.l.b16 %v1473
      %v1646 = vunpack.c.h.b16 %v1473
      %v1647 = vunpack.c.l.b16 %v1474
      %v1648 = vunpack.c.h.b16 %v1474
      %v1649 = vunpack.c.l.b16 %v1475
      %v1650 = vunpack.c.h.b16 %v1475
      %v1651 = vunpack.c.l.b16 %v1476
      %v1652 = vunpack.c.h.b16 %v1476
      %v1653 = vunpack.c.l.b16 %v1477
      %v1654 = vunpack.c.h.b16 %v1477
      %v1655 = vunpack.c.l.b16 %v1478
      %v1656 = vunpack.c.h.b16 %v1478
      %v1657 = vunpack.c.l.b16 %v1479
      %v1658 = vunpack.c.h.b16 %v1479
      %v1659 = vunpack.c.l.b16 %v1480
      %v1660 = vunpack.c.h.b16 %v1480
      %v1661 = vunpack.c.l.b16 %v1481
      %v1662 = vunpack.c.h.b16 %v1481
      %v1663 = vunpack.c.l.b16 %v1482
      %v1664 = vunpack.c.h.b16 %v1482
      %v1665 = vunpack.c.l.b16 %v1483
      %v1666 = vunpack.c.h.b16 %v1483
      %v1667 = vunpack.c.l.b16 %v1484
      %v1668 = vunpack.c.h.b16 %v1484
      %v1669 = vunpack.c.l.b16 %v1485
      %v1670 = vunpack.c.h.b16 %v1485
      %v1671 = vunpack.c.l.b16 %v1486
      %v1672 = vunpack.c.h.b16 %v1486
      %v1673 = vunpack.c.l.b16 %v1487
      %v1674 = vunpack.c.h.b16 %v1487
      %v1675 = vunpack.c.l.b16 %v1488
      %v1676 = vunpack.c.h.b16 %v1488
      %v1677 = vunpack.c.l.b16 %v1489
      %v1678 = vunpack.c.h.b16 %v1489
      %v1679 = vunpack.c.l.b16 %v1490
      %v1680 = vunpack.c.h.b16 %v1490
      %v1681 = vunpack.c.l.b16 %v1491
      %v1682 = vunpack.c.h.b16 %v1491
      %v1683 = vunpack.c.l.b16 %v1492
      %v1684 = vunpack.c.h.b16 %v1492
      %v1685 = vpack.c.b16 %v1565, %v1557
      %v1686 = vpack.c.b16 %v1566, %v1558
      %v1687 = vpack.c.b16 %v1567, %v1559
      %v1688 = vpack.c.b16 %v1568, %v1560
      %v1689 = vpack.c.b16 %v1569, %v1561
      %v1690 = vpack.c.b16 %v1570, %v1562
      %v1691 = vpack.c.b16 %v1571, %v1563
      %v1692 = vpack.c.b16 %v1572, %v1564
      %v1693 = vpack.c.b16 %v1581, %v1573
      %v1694 = vpack.c.b16 %v1582, %v1574
      %v1695 = vpack.c.b16 %v1583, %v1575
      %v1696 = vpack.c.b16 %v1584, %v1576
      %v1697 = vpack.c.b16 %v1585, %v1577
      %v1698 = vpack.c.b16 %v1586, %v1578
      %v1699 = vpack.c.b16 %v1587, %v1579
      %v1700 = vpack.c.b16 %v1588, %v1580
      %v1701 = vpack.c.b16 %v1597, %v1589
      %v1702 = vpack.c.b16 %v1598, %v1590
      %v1703 = vpack.c.b16 %v1599, %v1591
      %v1704 = vpack.c.b16 %v1600, %v1592
      %v1705 = vpack.c.b16 %v1601, %v1593
      %v1706 = vpack.c.b16 %v1602, %v1594
      %v1707 = vpack.c.b16 %v1603, %v1595
      %v1708 = vpack.c.b16 %v1604, %v1596
      %v1709 = vpack.c.b16 %v1613, %v1605
      %v1710 = vpack.c.b16 %v1614, %v1606
      %v1711 = vpack.c.b16 %v1615, %v1607
      %v1712 = vpack.c.b16 %v1616, %v1608
      %v1713 = vpack.c.b16 %v1617, %v1609
      %v1714 = vpack.c.b16 %v1618, %v1610
      %v1715 = vpack.c.b16 %v1619, %v1611
      %v1716 = vpack.c.b16 %v1620, %v1612
      %v1717 = vpack.c.b16 %v1629, %v1621
      %v1718 = vpack.c.b16 %v1630, %v1622
      %v1719 = vpack.c.b16 %v1631, %v1623
      %v1720 = vpack.c.b16 %v1632, %v1624
      %v1721 = vpack.c.b16 %v1633, %v1625
      %v1722 = vpack.c.b16 %v1634, %v1626
      %v1723 = vpack.c.b16 %v1635, %v1627
      %v1724 = vpack.c.b16 %v1636, %v1628
      %v1725 = vpack.c.b16 %v1645, %v1637
      %v1726 = vpack.c.b16 %v1646, %v1638
      %v1727 = vpack.c.b16 %v1647, %v1639
      %v1728 = vpack.c.b16 %v1648, %v1640
      %v1729 = vpack.c.b16 %v1649, %v1641
      %v1730 = vpack.c.b16 %v1650, %v1642
      %v1731 = vpack.c.b16 %v1651, %v1643
      %v1732 = vpack.c.b16 %v1652, %v1644
      %v1733 = vpack.c.b16 %v1661, %v1653
      %v1734 = vpack.c.b16 %v1662, %v1654
      %v1735 = vpack.c.b16 %v1663, %v1655
      %v1736 = vpack.c.b16 %v1664, %v1656
      %v1737 = vpack.c.b16 %v1665, %v1657
      %v1738 = vpack.c.b16 %v1666, %v1658
      %v1739 = vpack.c.b16 %v1667, %v1659
      %v1740 = vpack.c.b16 %v1668, %v1660
      %v1741 = vpack.c.b16 %v1677, %v1669
      %v1742 = vpack.c.b16 %v1678, %v1670
      %v1743 = vpack.c.b16 %v1679, %v1671
      %v1744 = vpack.c.b16 %v1680, %v1672
      %v1745 = vpack.c.b16 %v1681, %v1673
      %v1746 = vpack.c.b16 %v1682, %v1674
      %v1747 = vpack.c.b16 %v1683, %v1675
      %v1748 = vpack.c.b16 %v1684, %v1676
      %1813 = vmatprep.subr.bf16.mxu0 %v1742
      %1814 = vmatpush1.bf16.msra.mxu0 %v1741
      %1815 = vmatprep.subr.bf16.mxu0 %v1734
      %1816 = vmatpush1.bf16.msra.mxu0 %v1733
      %1817 = vmatprep.subr.bf16.mxu0 %v1726
      %1818 = vmatpush1.bf16.msra.mxu0 %v1725
      %1819 = vmatprep.subr.bf16.mxu0 %v1718
      %1820 = vmatpush1.bf16.msra.mxu0 %v1717
      %1821 = vmatprep.subr.bf16.mxu0 %v1710
      %1822 = vmatpush1.bf16.msra.mxu0 %v1709
      %1823 = vmatprep.subr.bf16.mxu0 %v1702
      %1824 = vmatpush1.bf16.msra.mxu0 %v1701
      %1825 = vmatprep.subr.bf16.mxu0 %v1694
      %1826 = vmatpush1.bf16.msra.mxu0 %v1693
      %1827 = vmatprep.subr.bf16.mxu0 %v1686
      %1828 = vmatpush1.bf16.msra.mxu0 %v1685
      %1829 = vmatprep.subr.bf16.mxu0 0
      %1830 = vmatpush2.bf16.msra.mxu0 0
      %1831 = vmatprep.subr.bf16.mxu0 0
      %1832 = vmatpush2.bf16.msra.mxu0 0
      %1833 = vmatprep.subr.bf16.mxu0 0
      %1834 = vmatpush2.bf16.msra.mxu0 0
      %1835 = vmatprep.subr.bf16.mxu0 0
      %1836 = vmatpush2.bf16.msra.mxu0 0
      %1837 = vmatprep.subr.bf16.mxu0 0
      %1838 = vmatpush2.bf16.msra.mxu0 0
      %1839 = vmatprep.subr.bf16.mxu0 0
      %1840 = vmatpush2.bf16.msra.mxu0 0
      %1841 = vmatprep.subr.bf16.mxu0 0
      %1842 = vmatpush2.bf16.msra.mxu0 0
      %1843 = vmatprep.subr.bf16.mxu0 0
      %1844 = vmatpush2.bf16.msra.mxu0 0
      %1845 = vmatprep.mubr.bf16.mxu0 0
      %1846 = vmatmul.mubr.bf16.gmra.mxu0 %v1397
      %v1847 = vpop.f32.mrf.mxu0
      %v1848 = vadd.f32 0.0, %v1847
      %v1849 = vpop.f32.mrf.mxu0
      %v1850 = vadd.f32 0.0, %v1849
      %v1851 = vpop.f32.mrf.mxu0
      %v1852 = vadd.f32 0.0, %v1851
      %v1853 = vpop.f32.mrf.mxu0
      %v1854 = vadd.f32 0.0, %v1853
      %1855 = vmatprep.mubr.bf16.mxu0 0
      %1856 = vmatmul.mubr.bf16.gmra.mxu0 %v1398
      %v1857 = vpop.f32.mrf.mxu0
      %v1858 = vadd.f32 0.0, %v1857
      %v1859 = vpop.f32.mrf.mxu0
      %v1860 = vadd.f32 0.0, %v1859
      %v1861 = vpop.f32.mrf.mxu0
      %v1862 = vadd.f32 0.0, %v1861
      %v1863 = vpop.f32.mrf.mxu0
      %v1864 = vadd.f32 0.0, %v1863
      %1865 = vmatprep.mubr.bf16.mxu0 0
      %1866 = vmatmul.mubr.bf16.gmra.mxu0 %v1399
      %v1867 = vpop.f32.mrf.mxu0
      %v1868 = vadd.f32 0.0, %v1867
      %v1869 = vpop.f32.mrf.mxu0
      %v1870 = vadd.f32 0.0, %v1869
      %v1871 = vpop.f32.mrf.mxu0
      %v1872 = vadd.f32 0.0, %v1871
      %v1873 = vpop.f32.mrf.mxu0
      %v1874 = vadd.f32 0.0, %v1873
      %1875 = vmatprep.mubr.bf16.mxu0 0
      %1876 = vmatmul.mubr.bf16.gmra.mxu0 %v1400
      %v1877 = vpop.f32.mrf.mxu0
      %v1878 = vadd.f32 0.0, %v1877
      %v1879 = vpop.f32.mrf.mxu0
      %v1880 = vadd.f32 0.0, %v1879
      %v1881 = vpop.f32.mrf.mxu0
      %v1882 = vadd.f32 0.0, %v1881
      %v1883 = vpop.f32.mrf.mxu0
      %v1884 = vadd.f32 0.0, %v1883
      %1885 = vmatprep.mubr.bf16.mxu0 0
      %1886 = vmatmul.mubr.bf16.gmra.mxu0 %v1401
      %v1887 = vpop.f32.mrf.mxu0
      %v1888 = vadd.f32 0.0, %v1887
      %v1889 = vpop.f32.mrf.mxu0
      %v1890 = vadd.f32 0.0, %v1889
      %v1891 = vpop.f32.mrf.mxu0
      %v1892 = vadd.f32 0.0, %v1891
      %v1893 = vpop.f32.mrf.mxu0
      %v1894 = vadd.f32 0.0, %v1893
      %1895 = vmatprep.mubr.bf16.mxu0 0
      %1896 = vmatmul.mubr.bf16.gmra.mxu0 %v1402
      %v1897 = vpop.f32.mrf.mxu0
      %v1898 = vadd.f32 0.0, %v1897
      %v1899 = vpop.f32.mrf.mxu0
      %v1900 = vadd.f32 0.0, %v1899
      %v1901 = vpop.f32.mrf.mxu0
      %v1902 = vadd.f32 0.0, %v1901
      %v1903 = vpop.f32.mrf.mxu0
      %v1904 = vadd.f32 0.0, %v1903
      %1905 = vmatprep.mubr.bf16.mxu0 0
      %1906 = vmatmul.mubr.bf16.gmra.mxu0 %v1403
      %v1907 = vpop.f32.mrf.mxu0
      %v1908 = vadd.f32 0.0, %v1907
      %v1909 = vpop.f32.mrf.mxu0
      %v1910 = vadd.f32 0.0, %v1909
      %v1911 = vpop.f32.mrf.mxu0
      %v1912 = vadd.f32 0.0, %v1911
      %v1913 = vpop.f32.mrf.mxu0
      %v1914 = vadd.f32 0.0, %v1913
      %1915 = vmatprep.mubr.bf16.mxu0 0
      %1916 = vmatmul.mubr.bf16.gmra.mxu0 %v1404
      %v1917 = vpop.f32.mrf.mxu0
      %v1918 = vadd.f32 0.0, %v1917
      %v1919 = vpop.f32.mrf.mxu0
      %v1920 = vadd.f32 0.0, %v1919
      %v1921 = vpop.f32.mrf.mxu0
      %v1922 = vadd.f32 0.0, %v1921
      %v1923 = vpop.f32.mrf.mxu0
      %v1924 = vadd.f32 0.0, %v1923
      %1925 = vmatprep.mubr.bf16.mxu0 0
      %1926 = vmatmul.mubr.bf16.gmra.mxu0 %v1405
      %v1927 = vpop.f32.mrf.mxu0
      %v1928 = vadd.f32 0.0, %v1927
      %v1929 = vpop.f32.mrf.mxu0
      %v1930 = vadd.f32 0.0, %v1929
      %v1931 = vpop.f32.mrf.mxu0
      %v1932 = vadd.f32 0.0, %v1931
      %v1933 = vpop.f32.mrf.mxu0
      %v1934 = vadd.f32 0.0, %v1933
      %1935 = vmatprep.mubr.bf16.mxu0 0
      %1936 = vmatmul.mubr.bf16.gmra.mxu0 %v1406
      %v1937 = vpop.f32.mrf.mxu0
      %v1938 = vadd.f32 0.0, %v1937
      %v1939 = vpop.f32.mrf.mxu0
      %v1940 = vadd.f32 0.0, %v1939
      %v1941 = vpop.f32.mrf.mxu0
      %v1942 = vadd.f32 0.0, %v1941
      %v1943 = vpop.f32.mrf.mxu0
      %v1944 = vadd.f32 0.0, %v1943
      %1945 = vmatprep.mubr.bf16.mxu0 0
      %1946 = vmatmul.mubr.bf16.gmra.mxu0 %v1407
      %v1947 = vpop.f32.mrf.mxu0
      %v1948 = vadd.f32 0.0, %v1947
      %v1949 = vpop.f32.mrf.mxu0
      %v1950 = vadd.f32 0.0, %v1949
      %v1951 = vpop.f32.mrf.mxu0
      %v1952 = vadd.f32 0.0, %v1951
      %v1953 = vpop.f32.mrf.mxu0
      %v1954 = vadd.f32 0.0, %v1953
      %1955 = vmatprep.mubr.bf16.mxu0 0
      %1956 = vmatmul.mubr.bf16.gmra.mxu0 %v1408
      %v1957 = vpop.f32.mrf.mxu0
      %v1958 = vadd.f32 0.0, %v1957
      %v1959 = vpop.f32.mrf.mxu0
      %v1960 = vadd.f32 0.0, %v1959
      %v1961 = vpop.f32.mrf.mxu0
      %v1962 = vadd.f32 0.0, %v1961
      %v1963 = vpop.f32.mrf.mxu0
      %v1964 = vadd.f32 0.0, %v1963
      %1965 = vmatprep.mubr.bf16.mxu0 0
      %1966 = vmatmul.mubr.bf16.gmra.mxu0 %v1409
      %v1967 = vpop.f32.mrf.mxu0
      %v1968 = vadd.f32 0.0, %v1967
      %v1969 = vpop.f32.mrf.mxu0
      %v1970 = vadd.f32 0.0, %v1969
      %v1971 = vpop.f32.mrf.mxu0
      %v1972 = vadd.f32 0.0, %v1971
      %v1973 = vpop.f32.mrf.mxu0
      %v1974 = vadd.f32 0.0, %v1973
      %1975 = vmatprep.mubr.bf16.mxu0 0
      %1976 = vmatmul.mubr.bf16.gmra.mxu0 %v1410
      %v1977 = vpop.f32.mrf.mxu0
      %v1978 = vadd.f32 0.0, %v1977
      %v1979 = vpop.f32.mrf.mxu0
      %v1980 = vadd.f32 0.0, %v1979
      %v1981 = vpop.f32.mrf.mxu0
      %v1982 = vadd.f32 0.0, %v1981
      %v1983 = vpop.f32.mrf.mxu0
      %v1984 = vadd.f32 0.0, %v1983
      %1985 = vmatprep.mubr.bf16.mxu0 0
      %1986 = vmatmul.mubr.bf16.gmra.mxu0 %v1411
      %v1987 = vpop.f32.mrf.mxu0
      %v1988 = vadd.f32 0.0, %v1987
      %v1989 = vpop.f32.mrf.mxu0
      %v1990 = vadd.f32 0.0, %v1989
      %v1991 = vpop.f32.mrf.mxu0
      %v1992 = vadd.f32 0.0, %v1991
      %v1993 = vpop.f32.mrf.mxu0
      %v1994 = vadd.f32 0.0, %v1993
      %1995 = vmatprep.mubr.bf16.mxu0 0
      %1996 = vmatmul.mubr.bf16.gmra.mxu0 %v1412
      %v1997 = vpop.f32.mrf.mxu0
      %v1998 = vadd.f32 0.0, %v1997
      %v1999 = vpop.f32.mrf.mxu0
      %v2000 = vadd.f32 0.0, %v1999
      %v2001 = vpop.f32.mrf.mxu0
      %v2002 = vadd.f32 0.0, %v2001
      %v2003 = vpop.f32.mrf.mxu0
      %v2004 = vadd.f32 0.0, %v2003
      %2005 = vmatprep.mubr.bf16.mxu0 0
      %2006 = vmatmul.mubr.bf16.gmra.mxu0 %v1413
      %v2007 = vpop.f32.mrf.mxu0
      %v2008 = vadd.f32 0.0, %v2007
      %v2009 = vpop.f32.mrf.mxu0
      %v2010 = vadd.f32 0.0, %v2009
      %v2011 = vpop.f32.mrf.mxu0
      %v2012 = vadd.f32 0.0, %v2011
      %v2013 = vpop.f32.mrf.mxu0
      %v2014 = vadd.f32 0.0, %v2013
      %2015 = vmatprep.mubr.bf16.mxu0 0
      %2016 = vmatmul.mubr.bf16.gmra.mxu0 %v1414
      %v2017 = vpop.f32.mrf.mxu0
      %v2018 = vadd.f32 0.0, %v2017
      %v2019 = vpop.f32.mrf.mxu0
      %v2020 = vadd.f32 0.0, %v2019
      %v2021 = vpop.f32.mrf.mxu0
      %v2022 = vadd.f32 0.0, %v2021
      %v2023 = vpop.f32.mrf.mxu0
      %v2024 = vadd.f32 0.0, %v2023
      %2025 = vmatprep.mubr.bf16.mxu0 0
      %2026 = vmatmul.mubr.bf16.gmra.mxu0 %v1415
      %v2027 = vpop.f32.mrf.mxu0
      %v2028 = vadd.f32 0.0, %v2027
      %v2029 = vpop.f32.mrf.mxu0
      %v2030 = vadd.f32 0.0, %v2029
      %v2031 = vpop.f32.mrf.mxu0
      %v2032 = vadd.f32 0.0, %v2031
      %v2033 = vpop.f32.mrf.mxu0
      %v2034 = vadd.f32 0.0, %v2033
      %2035 = vmatprep.mubr.bf16.mxu0 0
      %2036 = vmatmul.mubr.bf16.gmra.mxu0 %v1416
      %v2037 = vpop.f32.mrf.mxu0
      %v2038 = vadd.f32 0.0, %v2037
      %v2039 = vpop.f32.mrf.mxu0
      %v2040 = vadd.f32 0.0, %v2039
      %v2041 = vpop.f32.mrf.mxu0
      %v2042 = vadd.f32 0.0, %v2041
      %v2043 = vpop.f32.mrf.mxu0
      %v2044 = vadd.f32 0.0, %v2043
      %2045 = vmatprep.mubr.bf16.mxu0 0
      %2046 = vmatmul.mubr.bf16.gmra.mxu0 %v1417
      %v2047 = vpop.f32.mrf.mxu0
      %v2048 = vadd.f32 0.0, %v2047
      %v2049 = vpop.f32.mrf.mxu0
      %v2050 = vadd.f32 0.0, %v2049
      %v2051 = vpop.f32.mrf.mxu0
      %v2052 = vadd.f32 0.0, %v2051
      %v2053 = vpop.f32.mrf.mxu0
      %v2054 = vadd.f32 0.0, %v2053
      %2055 = vmatprep.mubr.bf16.mxu0 0
      %2056 = vmatmul.mubr.bf16.gmra.mxu0 %v1418
      %v2057 = vpop.f32.mrf.mxu0
      %v2058 = vadd.f32 0.0, %v2057
      %v2059 = vpop.f32.mrf.mxu0
      %v2060 = vadd.f32 0.0, %v2059
      %v2061 = vpop.f32.mrf.mxu0
      %v2062 = vadd.f32 0.0, %v2061
      %v2063 = vpop.f32.mrf.mxu0
      %v2064 = vadd.f32 0.0, %v2063
      %2065 = vmatprep.mubr.bf16.mxu0 0
      %2066 = vmatmul.mubr.bf16.gmra.mxu0 %v1419
      %v2067 = vpop.f32.mrf.mxu0
      %v2068 = vadd.f32 0.0, %v2067
      %v2069 = vpop.f32.mrf.mxu0
      %v2070 = vadd.f32 0.0, %v2069
      %v2071 = vpop.f32.mrf.mxu0
      %v2072 = vadd.f32 0.0, %v2071
      %v2073 = vpop.f32.mrf.mxu0
      %v2074 = vadd.f32 0.0, %v2073
      %2075 = vmatprep.mubr.bf16.mxu0 0
      %2076 = vmatmul.mubr.bf16.gmra.mxu0 %v1420
      %v2077 = vpop.f32.mrf.mxu0
      %v2078 = vadd.f32 0.0, %v2077
      %v2079 = vpop.f32.mrf.mxu0
      %v2080 = vadd.f32 0.0, %v2079
      %v2081 = vpop.f32.mrf.mxu0
      %v2082 = vadd.f32 0.0, %v2081
      %v2083 = vpop.f32.mrf.mxu0
      %v2084 = vadd.f32 0.0, %v2083
      %2085 = vmatprep.mubr.bf16.mxu0 0
      %2086 = vmatmul.mubr.bf16.gmra.mxu0 %v1421
      %v2087 = vpop.f32.mrf.mxu0
      %v2088 = vadd.f32 0.0, %v2087
      %v2089 = vpop.f32.mrf.mxu0
      %v2090 = vadd.f32 0.0, %v2089
      %v2091 = vpop.f32.mrf.mxu0
      %v2092 = vadd.f32 0.0, %v2091
      %v2093 = vpop.f32.mrf.mxu0
      %v2094 = vadd.f32 0.0, %v2093
      %2095 = vmatprep.mubr.bf16.mxu0 0
      %2096 = vmatmul.mubr.bf16.gmra.mxu0 %v1422
      %v2097 = vpop.f32.mrf.mxu0
      %v2098 = vadd.f32 0.0, %v2097
      %v2099 = vpop.f32.mrf.mxu0
      %v2100 = vadd.f32 0.0, %v2099
      %v2101 = vpop.f32.mrf.mxu0
      %v2102 = vadd.f32 0.0, %v2101
      %v2103 = vpop.f32.mrf.mxu0
      %v2104 = vadd.f32 0.0, %v2103
      %2105 = vmatprep.mubr.bf16.mxu0 0
      %2106 = vmatmul.mubr.bf16.gmra.mxu0 %v1423
      %v2107 = vpop.f32.mrf.mxu0
      %v2108 = vadd.f32 0.0, %v2107
      %v2109 = vpop.f32.mrf.mxu0
      %v2110 = vadd.f32 0.0, %v2109
      %v2111 = vpop.f32.mrf.mxu0
      %v2112 = vadd.f32 0.0, %v2111
      %v2113 = vpop.f32.mrf.mxu0
      %v2114 = vadd.f32 0.0, %v2113
      %2115 = vmatprep.mubr.bf16.mxu0 0
      %2116 = vmatmul.mubr.bf16.gmra.mxu0 %v1424
      %v2117 = vpop.f32.mrf.mxu0
      %v2118 = vadd.f32 0.0, %v2117
      %v2119 = vpop.f32.mrf.mxu0
      %v2120 = vadd.f32 0.0, %v2119
      %v2121 = vpop.f32.mrf.mxu0
      %v2122 = vadd.f32 0.0, %v2121
      %v2123 = vpop.f32.mrf.mxu0
      %v2124 = vadd.f32 0.0, %v2123
      %2125 = vmatprep.mubr.bf16.mxu0 0
      %2126 = vmatmul.mubr.bf16.gmra.mxu0 %v1425
      %v2127 = vpop.f32.mrf.mxu0
      %v2128 = vadd.f32 0.0, %v2127
      %v2129 = vpop.f32.mrf.mxu0
      %v2130 = vadd.f32 0.0, %v2129
      %v2131 = vpop.f32.mrf.mxu0
      %v2132 = vadd.f32 0.0, %v2131
      %v2133 = vpop.f32.mrf.mxu0
      %v2134 = vadd.f32 0.0, %v2133
      %2135 = vmatprep.mubr.bf16.mxu0 0
      %2136 = vmatmul.mubr.bf16.gmra.mxu0 %v1426
      %v2137 = vpop.f32.mrf.mxu0
      %v2138 = vadd.f32 0.0, %v2137
      %v2139 = vpop.f32.mrf.mxu0
      %v2140 = vadd.f32 0.0, %v2139
      %v2141 = vpop.f32.mrf.mxu0
      %v2142 = vadd.f32 0.0, %v2141
      %v2143 = vpop.f32.mrf.mxu0
      %v2144 = vadd.f32 0.0, %v2143
      %2145 = vmatprep.mubr.bf16.mxu0 0
      %2146 = vmatmul.mubr.bf16.gmra.mxu0 %v1427
      %v2147 = vpop.f32.mrf.mxu0
      %v2148 = vadd.f32 0.0, %v2147
      %v2149 = vpop.f32.mrf.mxu0
      %v2150 = vadd.f32 0.0, %v2149
      %v2151 = vpop.f32.mrf.mxu0
      %v2152 = vadd.f32 0.0, %v2151
      %v2153 = vpop.f32.mrf.mxu0
      %v2154 = vadd.f32 0.0, %v2153
      %2155 = vmatprep.mubr.bf16.mxu0 0
      %2156 = vmatmul.mubr.bf16.gmra.mxu0 %v1428
      %v2157 = vpop.f32.mrf.mxu0
      %v2158 = vadd.f32 0.0, %v2157
      %v2159 = vpop.f32.mrf.mxu0
      %v2160 = vadd.f32 0.0, %v2159
      %v2161 = vpop.f32.mrf.mxu0
      %v2162 = vadd.f32 0.0, %v2161
      %v2163 = vpop.f32.mrf.mxu0
      %v2164 = vadd.f32 0.0, %v2163
      %2165 = vdwg.mxu0
      %2166 = vmatprep.subr.bf16.mxu0 %v1744
      %2167 = vmatpush1.bf16.msra.mxu0 %v1743
      %2168 = vmatprep.subr.bf16.mxu0 %v1736
      %2169 = vmatpush1.bf16.msra.mxu0 %v1735
      %2170 = vmatprep.subr.bf16.mxu0 %v1728
      %2171 = vmatpush1.bf16.msra.mxu0 %v1727
      %2172 = vmatprep.subr.bf16.mxu0 %v1720
      %2173 = vmatpush1.bf16.msra.mxu0 %v1719
      %2174 = vmatprep.subr.bf16.mxu0 %v1712
      %2175 = vmatpush1.bf16.msra.mxu0 %v1711
      %2176 = vmatprep.subr.bf16.mxu0 %v1704
      %2177 = vmatpush1.bf16.msra.mxu0 %v1703
      %2178 = vmatprep.subr.bf16.mxu0 %v1696
      %2179 = vmatpush1.bf16.msra.mxu0 %v1695
      %2180 = vmatprep.subr.bf16.mxu0 %v1688
      %2181 = vmatpush1.bf16.msra.mxu0 %v1687
      %2182 = vmatprep.subr.bf16.mxu0 0
      %2183 = vmatpush2.bf16.msra.mxu0 0
      %2184 = vmatprep.subr.bf16.mxu0 0
      %2185 = vmatpush2.bf16.msra.mxu0 0
      %2186 = vmatprep.subr.bf16.mxu0 0
      %2187 = vmatpush2.bf16.msra.mxu0 0
      %2188 = vmatprep.subr.bf16.mxu0 0
      %2189 = vmatpush2.bf16.msra.mxu0 0
      %2190 = vmatprep.subr.bf16.mxu0 0
      %2191 = vmatpush2.bf16.msra.mxu0 0
      %2192 = vmatprep.subr.bf16.mxu0 0
      %2193 = vmatpush2.bf16.msra.mxu0 0
      %2194 = vmatprep.subr.bf16.mxu0 0
      %2195 = vmatpush2.bf16.msra.mxu0 0
      %2196 = vmatprep.subr.bf16.mxu0 0
      %2197 = vmatpush2.bf16.msra.mxu0 0
      %2198 = vmatprep.mubr.bf16.mxu0 0
      %2199 = vmatmul.mubr.bf16.gmra.mxu0 %v1397
      %v2200 = vpop.f32.mrf.mxu0
      %v2201 = vadd.f32 0.0, %v2200
      %v2202 = vpop.f32.mrf.mxu0
      %v2203 = vadd.f32 0.0, %v2202
      %v2204 = vpop.f32.mrf.mxu0
      %v2205 = vadd.f32 0.0, %v2204
      %v2206 = vpop.f32.mrf.mxu0
      %v2207 = vadd.f32 0.0, %v2206
      %2208 = vmatprep.mubr.bf16.mxu0 0
      %2209 = vmatmul.mubr.bf16.gmra.mxu0 %v1398
      %v2210 = vpop.f32.mrf.mxu0
      %v2211 = vadd.f32 0.0, %v2210
      %v2212 = vpop.f32.mrf.mxu0
      %v2213 = vadd.f32 0.0, %v2212
      %v2214 = vpop.f32.mrf.mxu0
      %v2215 = vadd.f32 0.0, %v2214
      %v2216 = vpop.f32.mrf.mxu0
      %v2217 = vadd.f32 0.0, %v2216
      %2218 = vmatprep.mubr.bf16.mxu0 0
      %2219 = vmatmul.mubr.bf16.gmra.mxu0 %v1399
      %v2220 = vpop.f32.mrf.mxu0
      %v2221 = vadd.f32 0.0, %v2220
      %v2222 = vpop.f32.mrf.mxu0
      %v2223 = vadd.f32 0.0, %v2222
      %v2224 = vpop.f32.mrf.mxu0
      %v2225 = vadd.f32 0.0, %v2224
      %v2226 = vpop.f32.mrf.mxu0
      %v2227 = vadd.f32 0.0, %v2226
      %2228 = vmatprep.mubr.bf16.mxu0 0
      %2229 = vmatmul.mubr.bf16.gmra.mxu0 %v1400
      %v2230 = vpop.f32.mrf.mxu0
      %v2231 = vadd.f32 0.0, %v2230
      %v2232 = vpop.f32.mrf.mxu0
      %v2233 = vadd.f32 0.0, %v2232
      %v2234 = vpop.f32.mrf.mxu0
      %v2235 = vadd.f32 0.0, %v2234
      %v2236 = vpop.f32.mrf.mxu0
      %v2237 = vadd.f32 0.0, %v2236
      %2238 = vmatprep.mubr.bf16.mxu0 0
      %2239 = vmatmul.mubr.bf16.gmra.mxu0 %v1401
      %v2240 = vpop.f32.mrf.mxu0
      %v2241 = vadd.f32 0.0, %v2240
      %v2242 = vpop.f32.mrf.mxu0
      %v2243 = vadd.f32 0.0, %v2242
      %v2244 = vpop.f32.mrf.mxu0
      %v2245 = vadd.f32 0.0, %v2244
      %v2246 = vpop.f32.mrf.mxu0
      %v2247 = vadd.f32 0.0, %v2246
      %2248 = vmatprep.mubr.bf16.mxu0 0
      %2249 = vmatmul.mubr.bf16.gmra.mxu0 %v1402
      %v2250 = vpop.f32.mrf.mxu0
      %v2251 = vadd.f32 0.0, %v2250
      %v2252 = vpop.f32.mrf.mxu0
      %v2253 = vadd.f32 0.0, %v2252
      %v2254 = vpop.f32.mrf.mxu0
      %v2255 = vadd.f32 0.0, %v2254
      %v2256 = vpop.f32.mrf.mxu0
      %v2257 = vadd.f32 0.0, %v2256
      %2258 = vmatprep.mubr.bf16.mxu0 0
      %2259 = vmatmul.mubr.bf16.gmra.mxu0 %v1403
      %v2260 = vpop.f32.mrf.mxu0
      %v2261 = vadd.f32 0.0, %v2260
      %v2262 = vpop.f32.mrf.mxu0
      %v2263 = vadd.f32 0.0, %v2262
      %v2264 = vpop.f32.mrf.mxu0
      %v2265 = vadd.f32 0.0, %v2264
      %v2266 = vpop.f32.mrf.mxu0
      %v2267 = vadd.f32 0.0, %v2266
      %2268 = vmatprep.mubr.bf16.mxu0 0
      %2269 = vmatmul.mubr.bf16.gmra.mxu0 %v1404
      %v2270 = vpop.f32.mrf.mxu0
      %v2271 = vadd.f32 0.0, %v2270
      %v2272 = vpop.f32.mrf.mxu0
      %v2273 = vadd.f32 0.0, %v2272
      %v2274 = vpop.f32.mrf.mxu0
      %v2275 = vadd.f32 0.0, %v2274
      %v2276 = vpop.f32.mrf.mxu0
      %v2277 = vadd.f32 0.0, %v2276
      %2278 = vmatprep.mubr.bf16.mxu0 0
      %2279 = vmatmul.mubr.bf16.gmra.mxu0 %v1405
      %v2280 = vpop.f32.mrf.mxu0
      %v2281 = vadd.f32 0.0, %v2280
      %v2282 = vpop.f32.mrf.mxu0
      %v2283 = vadd.f32 0.0, %v2282
      %v2284 = vpop.f32.mrf.mxu0
      %v2285 = vadd.f32 0.0, %v2284
      %v2286 = vpop.f32.mrf.mxu0
      %v2287 = vadd.f32 0.0, %v2286
      %2288 = vmatprep.mubr.bf16.mxu0 0
      %2289 = vmatmul.mubr.bf16.gmra.mxu0 %v1406
      %v2290 = vpop.f32.mrf.mxu0
      %v2291 = vadd.f32 0.0, %v2290
      %v2292 = vpop.f32.mrf.mxu0
      %v2293 = vadd.f32 0.0, %v2292
      %v2294 = vpop.f32.mrf.mxu0
      %v2295 = vadd.f32 0.0, %v2294
      %v2296 = vpop.f32.mrf.mxu0
      %v2297 = vadd.f32 0.0, %v2296
      %2298 = vmatprep.mubr.bf16.mxu0 0
      %2299 = vmatmul.mubr.bf16.gmra.mxu0 %v1407
      %v2300 = vpop.f32.mrf.mxu0
      %v2301 = vadd.f32 0.0, %v2300
      %v2302 = vpop.f32.mrf.mxu0
      %v2303 = vadd.f32 0.0, %v2302
      %v2304 = vpop.f32.mrf.mxu0
      %v2305 = vadd.f32 0.0, %v2304
      %v2306 = vpop.f32.mrf.mxu0
      %v2307 = vadd.f32 0.0, %v2306
      %2308 = vmatprep.mubr.bf16.mxu0 0
      %2309 = vmatmul.mubr.bf16.gmra.mxu0 %v1408
      %v2310 = vpop.f32.mrf.mxu0
      %v2311 = vadd.f32 0.0, %v2310
      %v2312 = vpop.f32.mrf.mxu0
      %v2313 = vadd.f32 0.0, %v2312
      %v2314 = vpop.f32.mrf.mxu0
      %v2315 = vadd.f32 0.0, %v2314
      %v2316 = vpop.f32.mrf.mxu0
      %v2317 = vadd.f32 0.0, %v2316
      %2318 = vmatprep.mubr.bf16.mxu0 0
      %2319 = vmatmul.mubr.bf16.gmra.mxu0 %v1409
      %v2320 = vpop.f32.mrf.mxu0
      %v2321 = vadd.f32 0.0, %v2320
      %v2322 = vpop.f32.mrf.mxu0
      %v2323 = vadd.f32 0.0, %v2322
      %v2324 = vpop.f32.mrf.mxu0
      %v2325 = vadd.f32 0.0, %v2324
      %v2326 = vpop.f32.mrf.mxu0
      %v2327 = vadd.f32 0.0, %v2326
      %2328 = vmatprep.mubr.bf16.mxu0 0
      %2329 = vmatmul.mubr.bf16.gmra.mxu0 %v1410
      %v2330 = vpop.f32.mrf.mxu0
      %v2331 = vadd.f32 0.0, %v2330
      %v2332 = vpop.f32.mrf.mxu0
      %v2333 = vadd.f32 0.0, %v2332
      %v2334 = vpop.f32.mrf.mxu0
      %v2335 = vadd.f32 0.0, %v2334
      %v2336 = vpop.f32.mrf.mxu0
      %v2337 = vadd.f32 0.0, %v2336
      %2338 = vmatprep.mubr.bf16.mxu0 0
      %2339 = vmatmul.mubr.bf16.gmra.mxu0 %v1411
      %v2340 = vpop.f32.mrf.mxu0
      %v2341 = vadd.f32 0.0, %v2340
      %v2342 = vpop.f32.mrf.mxu0
      %v2343 = vadd.f32 0.0, %v2342
      %v2344 = vpop.f32.mrf.mxu0
      %v2345 = vadd.f32 0.0, %v2344
      %v2346 = vpop.f32.mrf.mxu0
      %v2347 = vadd.f32 0.0, %v2346
      %2348 = vmatprep.mubr.bf16.mxu0 0
      %2349 = vmatmul.mubr.bf16.gmra.mxu0 %v1412
      %v2350 = vpop.f32.mrf.mxu0
      %v2351 = vadd.f32 0.0, %v2350
      %v2352 = vpop.f32.mrf.mxu0
      %v2353 = vadd.f32 0.0, %v2352
      %v2354 = vpop.f32.mrf.mxu0
      %v2355 = vadd.f32 0.0, %v2354
      %v2356 = vpop.f32.mrf.mxu0
      %v2357 = vadd.f32 0.0, %v2356
      %2358 = vmatprep.mubr.bf16.mxu0 0
      %2359 = vmatmul.mubr.bf16.gmra.mxu0 %v1413
      %v2360 = vpop.f32.mrf.mxu0
      %v2361 = vadd.f32 0.0, %v2360
      %v2362 = vpop.f32.mrf.mxu0
      %v2363 = vadd.f32 0.0, %v2362
      %v2364 = vpop.f32.mrf.mxu0
      %v2365 = vadd.f32 0.0, %v2364
      %v2366 = vpop.f32.mrf.mxu0
      %v2367 = vadd.f32 0.0, %v2366
      %2368 = vmatprep.mubr.bf16.mxu0 0
      %2369 = vmatmul.mubr.bf16.gmra.mxu0 %v1414
      %v2370 = vpop.f32.mrf.mxu0
      %v2371 = vadd.f32 0.0, %v2370
      %v2372 = vpop.f32.mrf.mxu0
      %v2373 = vadd.f32 0.0, %v2372
      %v2374 = vpop.f32.mrf.mxu0
      %v2375 = vadd.f32 0.0, %v2374
      %v2376 = vpop.f32.mrf.mxu0
      %v2377 = vadd.f32 0.0, %v2376
      %2378 = vmatprep.mubr.bf16.mxu0 0
      %2379 = vmatmul.mubr.bf16.gmra.mxu0 %v1415
      %v2380 = vpop.f32.mrf.mxu0
      %v2381 = vadd.f32 0.0, %v2380
      %v2382 = vpop.f32.mrf.mxu0
      %v2383 = vadd.f32 0.0, %v2382
      %v2384 = vpop.f32.mrf.mxu0
      %v2385 = vadd.f32 0.0, %v2384
      %v2386 = vpop.f32.mrf.mxu0
      %v2387 = vadd.f32 0.0, %v2386
      %2388 = vmatprep.mubr.bf16.mxu0 0
      %2389 = vmatmul.mubr.bf16.gmra.mxu0 %v1416
      %v2390 = vpop.f32.mrf.mxu0
      %v2391 = vadd.f32 0.0, %v2390
      %v2392 = vpop.f32.mrf.mxu0
      %v2393 = vadd.f32 0.0, %v2392
      %v2394 = vpop.f32.mrf.mxu0
      %v2395 = vadd.f32 0.0, %v2394
      %v2396 = vpop.f32.mrf.mxu0
      %v2397 = vadd.f32 0.0, %v2396
      %2398 = vmatprep.mubr.bf16.mxu0 0
      %2399 = vmatmul.mubr.bf16.gmra.mxu0 %v1417
      %v2400 = vpop.f32.mrf.mxu0
      %v2401 = vadd.f32 0.0, %v2400
      %v2402 = vpop.f32.mrf.mxu0
      %v2403 = vadd.f32 0.0, %v2402
      %v2404 = vpop.f32.mrf.mxu0
      %v2405 = vadd.f32 0.0, %v2404
      %v2406 = vpop.f32.mrf.mxu0
      %v2407 = vadd.f32 0.0, %v2406
      %2408 = vmatprep.mubr.bf16.mxu0 0
      %2409 = vmatmul.mubr.bf16.gmra.mxu0 %v1418
      %v2410 = vpop.f32.mrf.mxu0
      %v2411 = vadd.f32 0.0, %v2410
      %v2412 = vpop.f32.mrf.mxu0
      %v2413 = vadd.f32 0.0, %v2412
      %v2414 = vpop.f32.mrf.mxu0
      %v2415 = vadd.f32 0.0, %v2414
      %v2416 = vpop.f32.mrf.mxu0
      %v2417 = vadd.f32 0.0, %v2416
      %2418 = vmatprep.mubr.bf16.mxu0 0
      %2419 = vmatmul.mubr.bf16.gmra.mxu0 %v1419
      %v2420 = vpop.f32.mrf.mxu0
      %v2421 = vadd.f32 0.0, %v2420
      %v2422 = vpop.f32.mrf.mxu0
      %v2423 = vadd.f32 0.0, %v2422
      %v2424 = vpop.f32.mrf.mxu0
      %v2425 = vadd.f32 0.0, %v2424
      %v2426 = vpop.f32.mrf.mxu0
      %v2427 = vadd.f32 0.0, %v2426
      %2428 = vmatprep.mubr.bf16.mxu0 0
      %2429 = vmatmul.mubr.bf16.gmra.mxu0 %v1420
      %v2430 = vpop.f32.mrf.mxu0
      %v2431 = vadd.f32 0.0, %v2430
      %v2432 = vpop.f32.mrf.mxu0
      %v2433 = vadd.f32 0.0, %v2432
      %v2434 = vpop.f32.mrf.mxu0
      %v2435 = vadd.f32 0.0, %v2434
      %v2436 = vpop.f32.mrf.mxu0
      %v2437 = vadd.f32 0.0, %v2436
      %2438 = vmatprep.mubr.bf16.mxu0 0
      %2439 = vmatmul.mubr.bf16.gmra.mxu0 %v1421
      %v2440 = vpop.f32.mrf.mxu0
      %v2441 = vadd.f32 0.0, %v2440
      %v2442 = vpop.f32.mrf.mxu0
      %v2443 = vadd.f32 0.0, %v2442
      %v2444 = vpop.f32.mrf.mxu0
      %v2445 = vadd.f32 0.0, %v2444
      %v2446 = vpop.f32.mrf.mxu0
      %v2447 = vadd.f32 0.0, %v2446
      %2448 = vmatprep.mubr.bf16.mxu0 0
      %2449 = vmatmul.mubr.bf16.gmra.mxu0 %v1422
      %v2450 = vpop.f32.mrf.mxu0
      %v2451 = vadd.f32 0.0, %v2450
      %v2452 = vpop.f32.mrf.mxu0
      %v2453 = vadd.f32 0.0, %v2452
      %v2454 = vpop.f32.mrf.mxu0
      %v2455 = vadd.f32 0.0, %v2454
      %v2456 = vpop.f32.mrf.mxu0
      %v2457 = vadd.f32 0.0, %v2456
      %2458 = vmatprep.mubr.bf16.mxu0 0
      %2459 = vmatmul.mubr.bf16.gmra.mxu0 %v1423
      %v2460 = vpop.f32.mrf.mxu0
      %v2461 = vadd.f32 0.0, %v2460
      %v2462 = vpop.f32.mrf.mxu0
      %v2463 = vadd.f32 0.0, %v2462
      %v2464 = vpop.f32.mrf.mxu0
      %v2465 = vadd.f32 0.0, %v2464
      %v2466 = vpop.f32.mrf.mxu0
      %v2467 = vadd.f32 0.0, %v2466
      %2468 = vmatprep.mubr.bf16.mxu0 0
      %2469 = vmatmul.mubr.bf16.gmra.mxu0 %v1424
      %v2470 = vpop.f32.mrf.mxu0
      %v2471 = vadd.f32 0.0, %v2470
      %v2472 = vpop.f32.mrf.mxu0
      %v2473 = vadd.f32 0.0, %v2472
      %v2474 = vpop.f32.mrf.mxu0
      %v2475 = vadd.f32 0.0, %v2474
      %v2476 = vpop.f32.mrf.mxu0
      %v2477 = vadd.f32 0.0, %v2476
      %2478 = vmatprep.mubr.bf16.mxu0 0
      %2479 = vmatmul.mubr.bf16.gmra.mxu0 %v1425
      %v2480 = vpop.f32.mrf.mxu0
      %v2481 = vadd.f32 0.0, %v2480
      %v2482 = vpop.f32.mrf.mxu0
      %v2483 = vadd.f32 0.0, %v2482
      %v2484 = vpop.f32.mrf.mxu0
      %v2485 = vadd.f32 0.0, %v2484
      %v2486 = vpop.f32.mrf.mxu0
      %v2487 = vadd.f32 0.0, %v2486
      %2488 = vmatprep.mubr.bf16.mxu0 0
      %2489 = vmatmul.mubr.bf16.gmra.mxu0 %v1426
      %v2490 = vpop.f32.mrf.mxu0
      %v2491 = vadd.f32 0.0, %v2490
      %v2492 = vpop.f32.mrf.mxu0
      %v2493 = vadd.f32 0.0, %v2492
      %v2494 = vpop.f32.mrf.mxu0
      %v2495 = vadd.f32 0.0, %v2494
      %v2496 = vpop.f32.mrf.mxu0
      %v2497 = vadd.f32 0.0, %v2496
      %2498 = vmatprep.mubr.bf16.mxu0 0
      %2499 = vmatmul.mubr.bf16.gmra.mxu0 %v1427
      %v2500 = vpop.f32.mrf.mxu0
      %v2501 = vadd.f32 0.0, %v2500
      %v2502 = vpop.f32.mrf.mxu0
      %v2503 = vadd.f32 0.0, %v2502
      %v2504 = vpop.f32.mrf.mxu0
      %v2505 = vadd.f32 0.0, %v2504
      %v2506 = vpop.f32.mrf.mxu0
      %v2507 = vadd.f32 0.0, %v2506
      %2508 = vmatprep.mubr.bf16.mxu0 0
      %2509 = vmatmul.mubr.bf16.gmra.mxu0 %v1428
      %v2510 = vpop.f32.mrf.mxu0
      %v2511 = vadd.f32 0.0, %v2510
      %v2512 = vpop.f32.mrf.mxu0
      %v2513 = vadd.f32 0.0, %v2512
      %v2514 = vpop.f32.mrf.mxu0
      %v2515 = vadd.f32 0.0, %v2514
      %v2516 = vpop.f32.mrf.mxu0
      %v2517 = vadd.f32 0.0, %v2516
      %2518 = vdwg.mxu0
      %2519 = vmatprep.subr.bf16.mxu0 %v1746
      %2520 = vmatpush1.bf16.msra.mxu0 %v1745
      %2521 = vmatprep.subr.bf16.mxu0 %v1738
      %2522 = vmatpush1.bf16.msra.mxu0 %v1737
      %2523 = vmatprep.subr.bf16.mxu0 %v1730
      %2524 = vmatpush1.bf16.msra.mxu0 %v1729
      %2525 = vmatprep.subr.bf16.mxu0 %v1722
      %2526 = vmatpush1.bf16.msra.mxu0 %v1721
      %2527 = vmatprep.subr.bf16.mxu0 %v1714
      %2528 = vmatpush1.bf16.msra.mxu0 %v1713
      %2529 = vmatprep.subr.bf16.mxu0 %v1706
      %2530 = vmatpush1.bf16.msra.mxu0 %v1705
      %2531 = vmatprep.subr.bf16.mxu0 %v1698
      %2532 = vmatpush1.bf16.msra.mxu0 %v1697
      %2533 = vmatprep.subr.bf16.mxu0 %v1690
      %2534 = vmatpush1.bf16.msra.mxu0 %v1689
      %2535 = vmatprep.subr.bf16.mxu0 0
      %2536 = vmatpush2.bf16.msra.mxu0 0
      %2537 = vmatprep.subr.bf16.mxu0 0
      %2538 = vmatpush2.bf16.msra.mxu0 0
      %2539 = vmatprep.subr.bf16.mxu0 0
      %2540 = vmatpush2.bf16.msra.mxu0 0
      %2541 = vmatprep.subr.bf16.mxu0 0
      %2542 = vmatpush2.bf16.msra.mxu0 0
      %2543 = vmatprep.subr.bf16.mxu0 0
      %2544 = vmatpush2.bf16.msra.mxu0 0
      %2545 = vmatprep.subr.bf16.mxu0 0
      %2546 = vmatpush2.bf16.msra.mxu0 0
      %2547 = vmatprep.subr.bf16.mxu0 0
      %2548 = vmatpush2.bf16.msra.mxu0 0
      %2549 = vmatprep.subr.bf16.mxu0 0
      %2550 = vmatpush2.bf16.msra.mxu0 0
      %2551 = vmatprep.mubr.bf16.mxu0 0
      %2552 = vmatmul.mubr.bf16.gmra.mxu0 %v1397
      %v2553 = vpop.f32.mrf.mxu0
      %v2554 = vadd.f32 0.0, %v2553
      %v2555 = vpop.f32.mrf.mxu0
      %v2556 = vadd.f32 0.0, %v2555
      %v2557 = vpop.f32.mrf.mxu0
      %v2558 = vadd.f32 0.0, %v2557
      %v2559 = vpop.f32.mrf.mxu0
      %v2560 = vadd.f32 0.0, %v2559
      %2561 = vmatprep.mubr.bf16.mxu0 0
      %2562 = vmatmul.mubr.bf16.gmra.mxu0 %v1398
      %v2563 = vpop.f32.mrf.mxu0
      %v2564 = vadd.f32 0.0, %v2563
      %v2565 = vpop.f32.mrf.mxu0
      %v2566 = vadd.f32 0.0, %v2565
      %v2567 = vpop.f32.mrf.mxu0
      %v2568 = vadd.f32 0.0, %v2567
      %v2569 = vpop.f32.mrf.mxu0
      %v2570 = vadd.f32 0.0, %v2569
      %2571 = vmatprep.mubr.bf16.mxu0 0
      %2572 = vmatmul.mubr.bf16.gmra.mxu0 %v1399
      %v2573 = vpop.f32.mrf.mxu0
      %v2574 = vadd.f32 0.0, %v2573
      %v2575 = vpop.f32.mrf.mxu0
      %v2576 = vadd.f32 0.0, %v2575
      %v2577 = vpop.f32.mrf.mxu0
      %v2578 = vadd.f32 0.0, %v2577
      %v2579 = vpop.f32.mrf.mxu0
      %v2580 = vadd.f32 0.0, %v2579
      %2581 = vmatprep.mubr.bf16.mxu0 0
      %2582 = vmatmul.mubr.bf16.gmra.mxu0 %v1400
      %v2583 = vpop.f32.mrf.mxu0
      %v2584 = vadd.f32 0.0, %v2583
      %v2585 = vpop.f32.mrf.mxu0
      %v2586 = vadd.f32 0.0, %v2585
      %v2587 = vpop.f32.mrf.mxu0
      %v2588 = vadd.f32 0.0, %v2587
      %v2589 = vpop.f32.mrf.mxu0
      %v2590 = vadd.f32 0.0, %v2589
      %2591 = vmatprep.mubr.bf16.mxu0 0
      %2592 = vmatmul.mubr.bf16.gmra.mxu0 %v1401
      %v2593 = vpop.f32.mrf.mxu0
      %v2594 = vadd.f32 0.0, %v2593
      %v2595 = vpop.f32.mrf.mxu0
      %v2596 = vadd.f32 0.0, %v2595
      %v2597 = vpop.f32.mrf.mxu0
      %v2598 = vadd.f32 0.0, %v2597
      %v2599 = vpop.f32.mrf.mxu0
      %v2600 = vadd.f32 0.0, %v2599
      %2601 = vmatprep.mubr.bf16.mxu0 0
      %2602 = vmatmul.mubr.bf16.gmra.mxu0 %v1402
      %v2603 = vpop.f32.mrf.mxu0
      %v2604 = vadd.f32 0.0, %v2603
      %v2605 = vpop.f32.mrf.mxu0
      %v2606 = vadd.f32 0.0, %v2605
      %v2607 = vpop.f32.mrf.mxu0
      %v2608 = vadd.f32 0.0, %v2607
      %v2609 = vpop.f32.mrf.mxu0
      %v2610 = vadd.f32 0.0, %v2609
      %2611 = vmatprep.mubr.bf16.mxu0 0
      %2612 = vmatmul.mubr.bf16.gmra.mxu0 %v1403
      %v2613 = vpop.f32.mrf.mxu0
      %v2614 = vadd.f32 0.0, %v2613
      %v2615 = vpop.f32.mrf.mxu0
      %v2616 = vadd.f32 0.0, %v2615
      %v2617 = vpop.f32.mrf.mxu0
      %v2618 = vadd.f32 0.0, %v2617
      %v2619 = vpop.f32.mrf.mxu0
      %v2620 = vadd.f32 0.0, %v2619
      %2621 = vmatprep.mubr.bf16.mxu0 0
      %2622 = vmatmul.mubr.bf16.gmra.mxu0 %v1404
      %v2623 = vpop.f32.mrf.mxu0
      %v2624 = vadd.f32 0.0, %v2623
      %v2625 = vpop.f32.mrf.mxu0
      %v2626 = vadd.f32 0.0, %v2625
      %v2627 = vpop.f32.mrf.mxu0
      %v2628 = vadd.f32 0.0, %v2627
      %v2629 = vpop.f32.mrf.mxu0
      %v2630 = vadd.f32 0.0, %v2629
      %2631 = vmatprep.mubr.bf16.mxu0 0
      %2632 = vmatmul.mubr.bf16.gmra.mxu0 %v1405
      %v2633 = vpop.f32.mrf.mxu0
      %v2634 = vadd.f32 0.0, %v2633
      %v2635 = vpop.f32.mrf.mxu0
      %v2636 = vadd.f32 0.0, %v2635
      %v2637 = vpop.f32.mrf.mxu0
      %v2638 = vadd.f32 0.0, %v2637
      %v2639 = vpop.f32.mrf.mxu0
      %v2640 = vadd.f32 0.0, %v2639
      %2641 = vmatprep.mubr.bf16.mxu0 0
      %2642 = vmatmul.mubr.bf16.gmra.mxu0 %v1406
      %v2643 = vpop.f32.mrf.mxu0
      %v2644 = vadd.f32 0.0, %v2643
      %v2645 = vpop.f32.mrf.mxu0
      %v2646 = vadd.f32 0.0, %v2645
      %v2647 = vpop.f32.mrf.mxu0
      %v2648 = vadd.f32 0.0, %v2647
      %v2649 = vpop.f32.mrf.mxu0
      %v2650 = vadd.f32 0.0, %v2649
      %2651 = vmatprep.mubr.bf16.mxu0 0
      %2652 = vmatmul.mubr.bf16.gmra.mxu0 %v1407
      %v2653 = vpop.f32.mrf.mxu0
      %v2654 = vadd.f32 0.0, %v2653
      %v2655 = vpop.f32.mrf.mxu0
      %v2656 = vadd.f32 0.0, %v2655
      %v2657 = vpop.f32.mrf.mxu0
      %v2658 = vadd.f32 0.0, %v2657
      %v2659 = vpop.f32.mrf.mxu0
      %v2660 = vadd.f32 0.0, %v2659
      %2661 = vmatprep.mubr.bf16.mxu0 0
      %2662 = vmatmul.mubr.bf16.gmra.mxu0 %v1408
      %v2663 = vpop.f32.mrf.mxu0
      %v2664 = vadd.f32 0.0, %v2663
      %v2665 = vpop.f32.mrf.mxu0
      %v2666 = vadd.f32 0.0, %v2665
      %v2667 = vpop.f32.mrf.mxu0
      %v2668 = vadd.f32 0.0, %v2667
      %v2669 = vpop.f32.mrf.mxu0
      %v2670 = vadd.f32 0.0, %v2669
      %2671 = vmatprep.mubr.bf16.mxu0 0
      %2672 = vmatmul.mubr.bf16.gmra.mxu0 %v1409
      %v2673 = vpop.f32.mrf.mxu0
      %v2674 = vadd.f32 0.0, %v2673
      %v2675 = vpop.f32.mrf.mxu0
      %v2676 = vadd.f32 0.0, %v2675
      %v2677 = vpop.f32.mrf.mxu0
      %v2678 = vadd.f32 0.0, %v2677
      %v2679 = vpop.f32.mrf.mxu0
      %v2680 = vadd.f32 0.0, %v2679
      %2681 = vmatprep.mubr.bf16.mxu0 0
      %2682 = vmatmul.mubr.bf16.gmra.mxu0 %v1410
      %v2683 = vpop.f32.mrf.mxu0
      %v2684 = vadd.f32 0.0, %v2683
      %v2685 = vpop.f32.mrf.mxu0
      %v2686 = vadd.f32 0.0, %v2685
      %v2687 = vpop.f32.mrf.mxu0
      %v2688 = vadd.f32 0.0, %v2687
      %v2689 = vpop.f32.mrf.mxu0
      %v2690 = vadd.f32 0.0, %v2689
      %2691 = vmatprep.mubr.bf16.mxu0 0
      %2692 = vmatmul.mubr.bf16.gmra.mxu0 %v1411
      %v2693 = vpop.f32.mrf.mxu0
      %v2694 = vadd.f32 0.0, %v2693
      %v2695 = vpop.f32.mrf.mxu0
      %v2696 = vadd.f32 0.0, %v2695
      %v2697 = vpop.f32.mrf.mxu0
      %v2698 = vadd.f32 0.0, %v2697
      %v2699 = vpop.f32.mrf.mxu0
      %v2700 = vadd.f32 0.0, %v2699
      %2701 = vmatprep.mubr.bf16.mxu0 0
      %2702 = vmatmul.mubr.bf16.gmra.mxu0 %v1412
      %v2703 = vpop.f32.mrf.mxu0
      %v2704 = vadd.f32 0.0, %v2703
      %v2705 = vpop.f32.mrf.mxu0
      %v2706 = vadd.f32 0.0, %v2705
      %v2707 = vpop.f32.mrf.mxu0
      %v2708 = vadd.f32 0.0, %v2707
      %v2709 = vpop.f32.mrf.mxu0
      %v2710 = vadd.f32 0.0, %v2709
      %2711 = vmatprep.mubr.bf16.mxu0 0
      %2712 = vmatmul.mubr.bf16.gmra.mxu0 %v1413
      %v2713 = vpop.f32.mrf.mxu0
      %v2714 = vadd.f32 0.0, %v2713
      %v2715 = vpop.f32.mrf.mxu0
      %v2716 = vadd.f32 0.0, %v2715
      %v2717 = vpop.f32.mrf.mxu0
      %v2718 = vadd.f32 0.0, %v2717
      %v2719 = vpop.f32.mrf.mxu0
      %v2720 = vadd.f32 0.0, %v2719
      %2721 = vmatprep.mubr.bf16.mxu0 0
      %2722 = vmatmul.mubr.bf16.gmra.mxu0 %v1414
      %v2723 = vpop.f32.mrf.mxu0
      %v2724 = vadd.f32 0.0, %v2723
      %v2725 = vpop.f32.mrf.mxu0
      %v2726 = vadd.f32 0.0, %v2725
      %v2727 = vpop.f32.mrf.mxu0
      %v2728 = vadd.f32 0.0, %v2727
      %v2729 = vpop.f32.mrf.mxu0
      %v2730 = vadd.f32 0.0, %v2729
      %2731 = vmatprep.mubr.bf16.mxu0 0
      %2732 = vmatmul.mubr.bf16.gmra.mxu0 %v1415
      %v2733 = vpop.f32.mrf.mxu0
      %v2734 = vadd.f32 0.0, %v2733
      %v2735 = vpop.f32.mrf.mxu0
      %v2736 = vadd.f32 0.0, %v2735
      %v2737 = vpop.f32.mrf.mxu0
      %v2738 = vadd.f32 0.0, %v2737
      %v2739 = vpop.f32.mrf.mxu0
      %v2740 = vadd.f32 0.0, %v2739
      %2741 = vmatprep.mubr.bf16.mxu0 0
      %2742 = vmatmul.mubr.bf16.gmra.mxu0 %v1416
      %v2743 = vpop.f32.mrf.mxu0
      %v2744 = vadd.f32 0.0, %v2743
      %v2745 = vpop.f32.mrf.mxu0
      %v2746 = vadd.f32 0.0, %v2745
      %v2747 = vpop.f32.mrf.mxu0
      %v2748 = vadd.f32 0.0, %v2747
      %v2749 = vpop.f32.mrf.mxu0
      %v2750 = vadd.f32 0.0, %v2749
      %2751 = vmatprep.mubr.bf16.mxu0 0
      %2752 = vmatmul.mubr.bf16.gmra.mxu0 %v1417
      %v2753 = vpop.f32.mrf.mxu0
      %v2754 = vadd.f32 0.0, %v2753
      %v2755 = vpop.f32.mrf.mxu0
      %v2756 = vadd.f32 0.0, %v2755
      %v2757 = vpop.f32.mrf.mxu0
      %v2758 = vadd.f32 0.0, %v2757
      %v2759 = vpop.f32.mrf.mxu0
      %v2760 = vadd.f32 0.0, %v2759
      %2761 = vmatprep.mubr.bf16.mxu0 0
      %2762 = vmatmul.mubr.bf16.gmra.mxu0 %v1418
      %v2763 = vpop.f32.mrf.mxu0
      %v2764 = vadd.f32 0.0, %v2763
      %v2765 = vpop.f32.mrf.mxu0
      %v2766 = vadd.f32 0.0, %v2765
      %v2767 = vpop.f32.mrf.mxu0
      %v2768 = vadd.f32 0.0, %v2767
      %v2769 = vpop.f32.mrf.mxu0
      %v2770 = vadd.f32 0.0, %v2769
      %2771 = vmatprep.mubr.bf16.mxu0 0
      %2772 = vmatmul.mubr.bf16.gmra.mxu0 %v1419
      %v2773 = vpop.f32.mrf.mxu0
      %v2774 = vadd.f32 0.0, %v2773
      %v2775 = vpop.f32.mrf.mxu0
      %v2776 = vadd.f32 0.0, %v2775
      %v2777 = vpop.f32.mrf.mxu0
      %v2778 = vadd.f32 0.0, %v2777
      %v2779 = vpop.f32.mrf.mxu0
      %v2780 = vadd.f32 0.0, %v2779
      %2781 = vmatprep.mubr.bf16.mxu0 0
      %2782 = vmatmul.mubr.bf16.gmra.mxu0 %v1420
      %v2783 = vpop.f32.mrf.mxu0
      %v2784 = vadd.f32 0.0, %v2783
      %v2785 = vpop.f32.mrf.mxu0
      %v2786 = vadd.f32 0.0, %v2785
      %v2787 = vpop.f32.mrf.mxu0
      %v2788 = vadd.f32 0.0, %v2787
      %v2789 = vpop.f32.mrf.mxu0
      %v2790 = vadd.f32 0.0, %v2789
      %2791 = vmatprep.mubr.bf16.mxu0 0
      %2792 = vmatmul.mubr.bf16.gmra.mxu0 %v1421
      %v2793 = vpop.f32.mrf.mxu0
      %v2794 = vadd.f32 0.0, %v2793
      %v2795 = vpop.f32.mrf.mxu0
      %v2796 = vadd.f32 0.0, %v2795
      %v2797 = vpop.f32.mrf.mxu0
      %v2798 = vadd.f32 0.0, %v2797
      %v2799 = vpop.f32.mrf.mxu0
      %v2800 = vadd.f32 0.0, %v2799
      %2801 = vmatprep.mubr.bf16.mxu0 0
      %2802 = vmatmul.mubr.bf16.gmra.mxu0 %v1422
      %v2803 = vpop.f32.mrf.mxu0
      %v2804 = vadd.f32 0.0, %v2803
      %v2805 = vpop.f32.mrf.mxu0
      %v2806 = vadd.f32 0.0, %v2805
      %v2807 = vpop.f32.mrf.mxu0
      %v2808 = vadd.f32 0.0, %v2807
      %v2809 = vpop.f32.mrf.mxu0
      %v2810 = vadd.f32 0.0, %v2809
      %2811 = vmatprep.mubr.bf16.mxu0 0
      %2812 = vmatmul.mubr.bf16.gmra.mxu0 %v1423
      %v2813 = vpop.f32.mrf.mxu0
      %v2814 = vadd.f32 0.0, %v2813
      %v2815 = vpop.f32.mrf.mxu0
      %v2816 = vadd.f32 0.0, %v2815
      %v2817 = vpop.f32.mrf.mxu0
      %v2818 = vadd.f32 0.0, %v2817
      %v2819 = vpop.f32.mrf.mxu0
      %v2820 = vadd.f32 0.0, %v2819
      %2821 = vmatprep.mubr.bf16.mxu0 0
      %2822 = vmatmul.mubr.bf16.gmra.mxu0 %v1424
      %v2823 = vpop.f32.mrf.mxu0
      %v2824 = vadd.f32 0.0, %v2823
      %v2825 = vpop.f32.mrf.mxu0
      %v2826 = vadd.f32 0.0, %v2825
      %v2827 = vpop.f32.mrf.mxu0
      %v2828 = vadd.f32 0.0, %v2827
      %v2829 = vpop.f32.mrf.mxu0
      %v2830 = vadd.f32 0.0, %v2829
      %2831 = vmatprep.mubr.bf16.mxu0 0
      %2832 = vmatmul.mubr.bf16.gmra.mxu0 %v1425
      %v2833 = vpop.f32.mrf.mxu0
      %v2834 = vadd.f32 0.0, %v2833
      %v2835 = vpop.f32.mrf.mxu0
      %v2836 = vadd.f32 0.0, %v2835
      %v2837 = vpop.f32.mrf.mxu0
      %v2838 = vadd.f32 0.0, %v2837
      %v2839 = vpop.f32.mrf.mxu0
      %v2840 = vadd.f32 0.0, %v2839
      %2841 = vmatprep.mubr.bf16.mxu0 0
      %2842 = vmatmul.mubr.bf16.gmra.mxu0 %v1426
      %v2843 = vpop.f32.mrf.mxu0
      %v2844 = vadd.f32 0.0, %v2843
      %v2845 = vpop.f32.mrf.mxu0
      %v2846 = vadd.f32 0.0, %v2845
      %v2847 = vpop.f32.mrf.mxu0
      %v2848 = vadd.f32 0.0, %v2847
      %v2849 = vpop.f32.mrf.mxu0
      %v2850 = vadd.f32 0.0, %v2849
      %2851 = vmatprep.mubr.bf16.mxu0 0
      %2852 = vmatmul.mubr.bf16.gmra.mxu0 %v1427
      %v2853 = vpop.f32.mrf.mxu0
      %v2854 = vadd.f32 0.0, %v2853
      %v2855 = vpop.f32.mrf.mxu0
      %v2856 = vadd.f32 0.0, %v2855
      %v2857 = vpop.f32.mrf.mxu0
      %v2858 = vadd.f32 0.0, %v2857
      %v2859 = vpop.f32.mrf.mxu0
      %v2860 = vadd.f32 0.0, %v2859
      %2861 = vmatprep.mubr.bf16.mxu0 0
      %2862 = vmatmul.mubr.bf16.gmra.mxu0 %v1428
      %v2863 = vpop.f32.mrf.mxu0
      %v2864 = vadd.f32 0.0, %v2863
      %v2865 = vpop.f32.mrf.mxu0
      %v2866 = vadd.f32 0.0, %v2865
      %v2867 = vpop.f32.mrf.mxu0
      %v2868 = vadd.f32 0.0, %v2867
      %v2869 = vpop.f32.mrf.mxu0
      %v2870 = vadd.f32 0.0, %v2869
      %2871 = vdwg.mxu0
      %2872 = vmatprep.subr.bf16.mxu0 %v1748
      %2873 = vmatpush1.bf16.msra.mxu0 %v1747
      %2874 = vmatprep.subr.bf16.mxu0 %v1740
      %2875 = vmatpush1.bf16.msra.mxu0 %v1739
      %2876 = vmatprep.subr.bf16.mxu0 %v1732
      %2877 = vmatpush1.bf16.msra.mxu0 %v1731
      %2878 = vmatprep.subr.bf16.mxu0 %v1724
      %2879 = vmatpush1.bf16.msra.mxu0 %v1723
      %2880 = vmatprep.subr.bf16.mxu0 %v1716
      %2881 = vmatpush1.bf16.msra.mxu0 %v1715
      %2882 = vmatprep.subr.bf16.mxu0 %v1708
      %2883 = vmatpush1.bf16.msra.mxu0 %v1707
      %2884 = vmatprep.subr.bf16.mxu0 %v1700
      %2885 = vmatpush1.bf16.msra.mxu0 %v1699
      %2886 = vmatprep.subr.bf16.mxu0 %v1692
      %2887 = vmatpush1.bf16.msra.mxu0 %v1691
      %2888 = vmatprep.subr.bf16.mxu0 0
      %2889 = vmatpush2.bf16.msra.mxu0 0
      %2890 = vmatprep.subr.bf16.mxu0 0
      %2891 = vmatpush2.bf16.msra.mxu0 0
      %2892 = vmatprep.subr.bf16.mxu0 0
      %2893 = vmatpush2.bf16.msra.mxu0 0
      %2894 = vmatprep.subr.bf16.mxu0 0
      %2895 = vmatpush2.bf16.msra.mxu0 0
      %2896 = vmatprep.subr.bf16.mxu0 0
      %2897 = vmatpush2.bf16.msra.mxu0 0
      %2898 = vmatprep.subr.bf16.mxu0 0
      %2899 = vmatpush2.bf16.msra.mxu0 0
      %2900 = vmatprep.subr.bf16.mxu0 0
      %2901 = vmatpush2.bf16.msra.mxu0 0
      %2902 = vmatprep.subr.bf16.mxu0 0
      %2903 = vmatpush2.bf16.msra.mxu0 0
      %2904 = vmatprep.mubr.bf16.mxu0 0
      %2905 = vmatmul.mubr.bf16.gmra.mxu0 %v1397
      %v2906 = vpop.f32.mrf.mxu0
      %v2907 = vadd.f32 0.0, %v2906
      %v2908 = vpop.f32.mrf.mxu0
      %v2909 = vadd.f32 0.0, %v2908
      %v2910 = vpop.f32.mrf.mxu0
      %v2911 = vadd.f32 0.0, %v2910
      %v2912 = vpop.f32.mrf.mxu0
      %v2913 = vadd.f32 0.0, %v2912
      %2914 = vmatprep.mubr.bf16.mxu0 0
      %2915 = vmatmul.mubr.bf16.gmra.mxu0 %v1398
      %v2916 = vpop.f32.mrf.mxu0
      %v2917 = vadd.f32 0.0, %v2916
      %v2918 = vpop.f32.mrf.mxu0
      %v2919 = vadd.f32 0.0, %v2918
      %v2920 = vpop.f32.mrf.mxu0
      %v2921 = vadd.f32 0.0, %v2920
      %v2922 = vpop.f32.mrf.mxu0
      %v2923 = vadd.f32 0.0, %v2922
      %2924 = vmatprep.mubr.bf16.mxu0 0
      %2925 = vmatmul.mubr.bf16.gmra.mxu0 %v1399
      %v2926 = vpop.f32.mrf.mxu0
      %v2927 = vadd.f32 0.0, %v2926
      %v2928 = vpop.f32.mrf.mxu0
      %v2929 = vadd.f32 0.0, %v2928
      %v2930 = vpop.f32.mrf.mxu0
      %v2931 = vadd.f32 0.0, %v2930
      %v2932 = vpop.f32.mrf.mxu0
      %v2933 = vadd.f32 0.0, %v2932
      %2934 = vmatprep.mubr.bf16.mxu0 0
      %2935 = vmatmul.mubr.bf16.gmra.mxu0 %v1400
      %v2936 = vpop.f32.mrf.mxu0
      %v2937 = vadd.f32 0.0, %v2936
      %v2938 = vpop.f32.mrf.mxu0
      %v2939 = vadd.f32 0.0, %v2938
      %v2940 = vpop.f32.mrf.mxu0
      %v2941 = vadd.f32 0.0, %v2940
      %v2942 = vpop.f32.mrf.mxu0
      %v2943 = vadd.f32 0.0, %v2942
      %2944 = vmatprep.mubr.bf16.mxu0 0
      %2945 = vmatmul.mubr.bf16.gmra.mxu0 %v1401
      %v2946 = vpop.f32.mrf.mxu0
      %v2947 = vadd.f32 0.0, %v2946
      %v2948 = vpop.f32.mrf.mxu0
      %v2949 = vadd.f32 0.0, %v2948
      %v2950 = vpop.f32.mrf.mxu0
      %v2951 = vadd.f32 0.0, %v2950
      %v2952 = vpop.f32.mrf.mxu0
      %v2953 = vadd.f32 0.0, %v2952
      %2954 = vmatprep.mubr.bf16.mxu0 0
      %2955 = vmatmul.mubr.bf16.gmra.mxu0 %v1402
      %v2956 = vpop.f32.mrf.mxu0
      %v2957 = vadd.f32 0.0, %v2956
      %v2958 = vpop.f32.mrf.mxu0
      %v2959 = vadd.f32 0.0, %v2958
      %v2960 = vpop.f32.mrf.mxu0
      %v2961 = vadd.f32 0.0, %v2960
      %v2962 = vpop.f32.mrf.mxu0
      %v2963 = vadd.f32 0.0, %v2962
      %2964 = vmatprep.mubr.bf16.mxu0 0
      %2965 = vmatmul.mubr.bf16.gmra.mxu0 %v1403
      %v2966 = vpop.f32.mrf.mxu0
      %v2967 = vadd.f32 0.0, %v2966
      %v2968 = vpop.f32.mrf.mxu0
      %v2969 = vadd.f32 0.0, %v2968
      %v2970 = vpop.f32.mrf.mxu0
      %v2971 = vadd.f32 0.0, %v2970
      %v2972 = vpop.f32.mrf.mxu0
      %v2973 = vadd.f32 0.0, %v2972
      %2974 = vmatprep.mubr.bf16.mxu0 0
      %2975 = vmatmul.mubr.bf16.gmra.mxu0 %v1404
      %v2976 = vpop.f32.mrf.mxu0
      %v2977 = vadd.f32 0.0, %v2976
      %v2978 = vpop.f32.mrf.mxu0
      %v2979 = vadd.f32 0.0, %v2978
      %v2980 = vpop.f32.mrf.mxu0
      %v2981 = vadd.f32 0.0, %v2980
      %v2982 = vpop.f32.mrf.mxu0
      %v2983 = vadd.f32 0.0, %v2982
      %2984 = vmatprep.mubr.bf16.mxu0 0
      %2985 = vmatmul.mubr.bf16.gmra.mxu0 %v1405
      %v2986 = vpop.f32.mrf.mxu0
      %v2987 = vadd.f32 0.0, %v2986
      %v2988 = vpop.f32.mrf.mxu0
      %v2989 = vadd.f32 0.0, %v2988
      %v2990 = vpop.f32.mrf.mxu0
      %v2991 = vadd.f32 0.0, %v2990
      %v2992 = vpop.f32.mrf.mxu0
      %v2993 = vadd.f32 0.0, %v2992
      %2994 = vmatprep.mubr.bf16.mxu0 0
      %2995 = vmatmul.mubr.bf16.gmra.mxu0 %v1406
      %v2996 = vpop.f32.mrf.mxu0
      %v2997 = vadd.f32 0.0, %v2996
      %v2998 = vpop.f32.mrf.mxu0
      %v2999 = vadd.f32 0.0, %v2998
      %v3000 = vpop.f32.mrf.mxu0
      %v3001 = vadd.f32 0.0, %v3000
      %v3002 = vpop.f32.mrf.mxu0
      %v3003 = vadd.f32 0.0, %v3002
      %3004 = vmatprep.mubr.bf16.mxu0 0
      %3005 = vmatmul.mubr.bf16.gmra.mxu0 %v1407
      %v3006 = vpop.f32.mrf.mxu0
      %v3007 = vadd.f32 0.0, %v3006
      %v3008 = vpop.f32.mrf.mxu0
      %v3009 = vadd.f32 0.0, %v3008
      %v3010 = vpop.f32.mrf.mxu0
      %v3011 = vadd.f32 0.0, %v3010
      %v3012 = vpop.f32.mrf.mxu0
      %v3013 = vadd.f32 0.0, %v3012
      %3014 = vmatprep.mubr.bf16.mxu0 0
      %3015 = vmatmul.mubr.bf16.gmra.mxu0 %v1408
      %v3016 = vpop.f32.mrf.mxu0
      %v3017 = vadd.f32 0.0, %v3016
      %v3018 = vpop.f32.mrf.mxu0
      %v3019 = vadd.f32 0.0, %v3018
      %v3020 = vpop.f32.mrf.mxu0
      %v3021 = vadd.f32 0.0, %v3020
      %v3022 = vpop.f32.mrf.mxu0
      %v3023 = vadd.f32 0.0, %v3022
      %3024 = vmatprep.mubr.bf16.mxu0 0
      %3025 = vmatmul.mubr.bf16.gmra.mxu0 %v1409
      %v3026 = vpop.f32.mrf.mxu0
      %v3027 = vadd.f32 0.0, %v3026
      %v3028 = vpop.f32.mrf.mxu0
      %v3029 = vadd.f32 0.0, %v3028
      %v3030 = vpop.f32.mrf.mxu0
      %v3031 = vadd.f32 0.0, %v3030
      %v3032 = vpop.f32.mrf.mxu0
      %v3033 = vadd.f32 0.0, %v3032
      %3034 = vmatprep.mubr.bf16.mxu0 0
      %3035 = vmatmul.mubr.bf16.gmra.mxu0 %v1410
      %v3036 = vpop.f32.mrf.mxu0
      %v3037 = vadd.f32 0.0, %v3036
      %v3038 = vpop.f32.mrf.mxu0
      %v3039 = vadd.f32 0.0, %v3038
      %v3040 = vpop.f32.mrf.mxu0
      %v3041 = vadd.f32 0.0, %v3040
      %v3042 = vpop.f32.mrf.mxu0
      %v3043 = vadd.f32 0.0, %v3042
      %3044 = vmatprep.mubr.bf16.mxu0 0
      %3045 = vmatmul.mubr.bf16.gmra.mxu0 %v1411
      %v3046 = vpop.f32.mrf.mxu0
      %v3047 = vadd.f32 0.0, %v3046
      %v3048 = vpop.f32.mrf.mxu0
      %v3049 = vadd.f32 0.0, %v3048
      %v3050 = vpop.f32.mrf.mxu0
      %v3051 = vadd.f32 0.0, %v3050
      %v3052 = vpop.f32.mrf.mxu0
      %v3053 = vadd.f32 0.0, %v3052
      %3054 = vmatprep.mubr.bf16.mxu0 0
      %3055 = vmatmul.mubr.bf16.gmra.mxu0 %v1412
      %v3056 = vpop.f32.mrf.mxu0
      %v3057 = vadd.f32 0.0, %v3056
      %v3058 = vpop.f32.mrf.mxu0
      %v3059 = vadd.f32 0.0, %v3058
      %v3060 = vpop.f32.mrf.mxu0
      %v3061 = vadd.f32 0.0, %v3060
      %v3062 = vpop.f32.mrf.mxu0
      %v3063 = vadd.f32 0.0, %v3062
      %3064 = vmatprep.mubr.bf16.mxu0 0
      %3065 = vmatmul.mubr.bf16.gmra.mxu0 %v1413
      %v3066 = vpop.f32.mrf.mxu0
      %v3067 = vadd.f32 0.0, %v3066
      %v3068 = vpop.f32.mrf.mxu0
      %v3069 = vadd.f32 0.0, %v3068
      %v3070 = vpop.f32.mrf.mxu0
      %v3071 = vadd.f32 0.0, %v3070
      %v3072 = vpop.f32.mrf.mxu0
      %v3073 = vadd.f32 0.0, %v3072
      %3074 = vmatprep.mubr.bf16.mxu0 0
      %3075 = vmatmul.mubr.bf16.gmra.mxu0 %v1414
      %v3076 = vpop.f32.mrf.mxu0
      %v3077 = vadd.f32 0.0, %v3076
      %v3078 = vpop.f32.mrf.mxu0
      %v3079 = vadd.f32 0.0, %v3078
      %v3080 = vpop.f32.mrf.mxu0
      %v3081 = vadd.f32 0.0, %v3080
      %v3082 = vpop.f32.mrf.mxu0
      %v3083 = vadd.f32 0.0, %v3082
      %3084 = vmatprep.mubr.bf16.mxu0 0
      %3085 = vmatmul.mubr.bf16.gmra.mxu0 %v1415
      %v3086 = vpop.f32.mrf.mxu0
      %v3087 = vadd.f32 0.0, %v3086
      %v3088 = vpop.f32.mrf.mxu0
      %v3089 = vadd.f32 0.0, %v3088
      %v3090 = vpop.f32.mrf.mxu0
      %v3091 = vadd.f32 0.0, %v3090
      %v3092 = vpop.f32.mrf.mxu0
      %v3093 = vadd.f32 0.0, %v3092
      %3094 = vmatprep.mubr.bf16.mxu0 0
      %3095 = vmatmul.mubr.bf16.gmra.mxu0 %v1416
      %v3096 = vpop.f32.mrf.mxu0
      %v3097 = vadd.f32 0.0, %v3096
      %v3098 = vpop.f32.mrf.mxu0
      %v3099 = vadd.f32 0.0, %v3098
      %v3100 = vpop.f32.mrf.mxu0
      %v3101 = vadd.f32 0.0, %v3100
      %v3102 = vpop.f32.mrf.mxu0
      %v3103 = vadd.f32 0.0, %v3102
      %3104 = vmatprep.mubr.bf16.mxu0 0
      %3105 = vmatmul.mubr.bf16.gmra.mxu0 %v1417
      %v3106 = vpop.f32.mrf.mxu0
      %v3107 = vadd.f32 0.0, %v3106
      %v3108 = vpop.f32.mrf.mxu0
      %v3109 = vadd.f32 0.0, %v3108
      %v3110 = vpop.f32.mrf.mxu0
      %v3111 = vadd.f32 0.0, %v3110
      %v3112 = vpop.f32.mrf.mxu0
      %v3113 = vadd.f32 0.0, %v3112
      %3114 = vmatprep.mubr.bf16.mxu0 0
      %3115 = vmatmul.mubr.bf16.gmra.mxu0 %v1418
      %v3116 = vpop.f32.mrf.mxu0
      %v3117 = vadd.f32 0.0, %v3116
      %v3118 = vpop.f32.mrf.mxu0
      %v3119 = vadd.f32 0.0, %v3118
      %v3120 = vpop.f32.mrf.mxu0
      %v3121 = vadd.f32 0.0, %v3120
      %v3122 = vpop.f32.mrf.mxu0
      %v3123 = vadd.f32 0.0, %v3122
      %3124 = vmatprep.mubr.bf16.mxu0 0
      %3125 = vmatmul.mubr.bf16.gmra.mxu0 %v1419
      %v3126 = vpop.f32.mrf.mxu0
      %v3127 = vadd.f32 0.0, %v3126
      %v3128 = vpop.f32.mrf.mxu0
      %v3129 = vadd.f32 0.0, %v3128
      %v3130 = vpop.f32.mrf.mxu0
      %v3131 = vadd.f32 0.0, %v3130
      %v3132 = vpop.f32.mrf.mxu0
      %v3133 = vadd.f32 0.0, %v3132
      %3134 = vmatprep.mubr.bf16.mxu0 0
      %3135 = vmatmul.mubr.bf16.gmra.mxu0 %v1420
      %v3136 = vpop.f32.mrf.mxu0
      %v3137 = vadd.f32 0.0, %v3136
      %v3138 = vpop.f32.mrf.mxu0
      %v3139 = vadd.f32 0.0, %v3138
      %v3140 = vpop.f32.mrf.mxu0
      %v3141 = vadd.f32 0.0, %v3140
      %v3142 = vpop.f32.mrf.mxu0
      %v3143 = vadd.f32 0.0, %v3142
      %3144 = vmatprep.mubr.bf16.mxu0 0
      %3145 = vmatmul.mubr.bf16.gmra.mxu0 %v1421
      %v3146 = vpop.f32.mrf.mxu0
      %v3147 = vadd.f32 0.0, %v3146
      %v3148 = vpop.f32.mrf.mxu0
      %v3149 = vadd.f32 0.0, %v3148
      %v3150 = vpop.f32.mrf.mxu0
      %v3151 = vadd.f32 0.0, %v3150
      %v3152 = vpop.f32.mrf.mxu0
      %v3153 = vadd.f32 0.0, %v3152
      %3154 = vmatprep.mubr.bf16.mxu0 0
      %3155 = vmatmul.mubr.bf16.gmra.mxu0 %v1422
      %v3156 = vpop.f32.mrf.mxu0
      %v3157 = vadd.f32 0.0, %v3156
      %v3158 = vpop.f32.mrf.mxu0
      %v3159 = vadd.f32 0.0, %v3158
      %v3160 = vpop.f32.mrf.mxu0
      %v3161 = vadd.f32 0.0, %v3160
      %v3162 = vpop.f32.mrf.mxu0
      %v3163 = vadd.f32 0.0, %v3162
      %3164 = vmatprep.mubr.bf16.mxu0 0
      %3165 = vmatmul.mubr.bf16.gmra.mxu0 %v1423
      %v3166 = vpop.f32.mrf.mxu0
      %v3167 = vadd.f32 0.0, %v3166
      %v3168 = vpop.f32.mrf.mxu0
      %v3169 = vadd.f32 0.0, %v3168
      %v3170 = vpop.f32.mrf.mxu0
      %v3171 = vadd.f32 0.0, %v3170
      %v3172 = vpop.f32.mrf.mxu0
      %v3173 = vadd.f32 0.0, %v3172
      %3174 = vmatprep.mubr.bf16.mxu0 0
      %3175 = vmatmul.mubr.bf16.gmra.mxu0 %v1424
      %v3176 = vpop.f32.mrf.mxu0
      %v3177 = vadd.f32 0.0, %v3176
      %v3178 = vpop.f32.mrf.mxu0
      %v3179 = vadd.f32 0.0, %v3178
      %v3180 = vpop.f32.mrf.mxu0
      %v3181 = vadd.f32 0.0, %v3180
      %v3182 = vpop.f32.mrf.mxu0
      %v3183 = vadd.f32 0.0, %v3182
      %3184 = vmatprep.mubr.bf16.mxu0 0
      %3185 = vmatmul.mubr.bf16.gmra.mxu0 %v1425
      %v3186 = vpop.f32.mrf.mxu0
      %v3187 = vadd.f32 0.0, %v3186
      %v3188 = vpop.f32.mrf.mxu0
      %v3189 = vadd.f32 0.0, %v3188
      %v3190 = vpop.f32.mrf.mxu0
      %v3191 = vadd.f32 0.0, %v3190
      %v3192 = vpop.f32.mrf.mxu0
      %v3193 = vadd.f32 0.0, %v3192
      %3194 = vmatprep.mubr.bf16.mxu0 0
      %3195 = vmatmul.mubr.bf16.gmra.mxu0 %v1426
      %v3196 = vpop.f32.mrf.mxu0
      %v3197 = vadd.f32 0.0, %v3196
      %v3198 = vpop.f32.mrf.mxu0
      %v3199 = vadd.f32 0.0, %v3198
      %v3200 = vpop.f32.mrf.mxu0
      %v3201 = vadd.f32 0.0, %v3200
      %v3202 = vpop.f32.mrf.mxu0
      %v3203 = vadd.f32 0.0, %v3202
      %3204 = vmatprep.mubr.bf16.mxu0 0
      %3205 = vmatmul.mubr.bf16.gmra.mxu0 %v1427
      %v3206 = vpop.f32.mrf.mxu0
      %v3207 = vadd.f32 0.0, %v3206
      %v3208 = vpop.f32.mrf.mxu0
      %v3209 = vadd.f32 0.0, %v3208
      %v3210 = vpop.f32.mrf.mxu0
      %v3211 = vadd.f32 0.0, %v3210
      %v3212 = vpop.f32.mrf.mxu0
      %v3213 = vadd.f32 0.0, %v3212
      %3214 = vmatprep.mubr.bf16.mxu0 0
      %3215 = vmatmul.mubr.bf16.gmra.mxu0 %v1428
      %v3216 = vpop.f32.mrf.mxu0
      %v3217 = vadd.f32 0.0, %v3216
      %v3218 = vpop.f32.mrf.mxu0
      %v3219 = vadd.f32 0.0, %v3218
      %v3220 = vpop.f32.mrf.mxu0
      %v3221 = vadd.f32 0.0, %v3220
      %v3222 = vpop.f32.mrf.mxu0
      %v3223 = vadd.f32 0.0, %v3222
      %3224 = vdwg.mxu0
      %v3225 = vpack.c.bf16 %v1852, %v1848
      %v3226 = vpack.c.bf16 %v1854, %v1850
      %v3227 = vpack.c.bf16 %v2205, %v2201
      %v3228 = vpack.c.bf16 %v2207, %v2203
      %v3229 = vpack.c.bf16 %v2558, %v2554
      %v3230 = vpack.c.bf16 %v2560, %v2556
      %v3231 = vpack.c.bf16 %v2911, %v2907
      %v3232 = vpack.c.bf16 %v2913, %v2909
      %v3233 = vpack.c.bf16 %v1862, %v1858
      %v3234 = vpack.c.bf16 %v1864, %v1860
      %v3235 = vpack.c.bf16 %v2215, %v2211
      %v3236 = vpack.c.bf16 %v2217, %v2213
      %v3237 = vpack.c.bf16 %v2568, %v2564
      %v3238 = vpack.c.bf16 %v2570, %v2566
      %v3239 = vpack.c.bf16 %v2921, %v2917
      %v3240 = vpack.c.bf16 %v2923, %v2919
      %v3241 = vpack.c.bf16 %v1872, %v1868
      %v3242 = vpack.c.bf16 %v1874, %v1870
      %v3243 = vpack.c.bf16 %v2225, %v2221
      %v3244 = vpack.c.bf16 %v2227, %v2223
      %v3245 = vpack.c.bf16 %v2578, %v2574
      %v3246 = vpack.c.bf16 %v2580, %v2576
      %v3247 = vpack.c.bf16 %v2931, %v2927
      %v3248 = vpack.c.bf16 %v2933, %v2929
      %v3249 = vpack.c.bf16 %v1882, %v1878
      %v3250 = vpack.c.bf16 %v1884, %v1880
      %v3251 = vpack.c.bf16 %v2235, %v2231
      %v3252 = vpack.c.bf16 %v2237, %v2233
      %v3253 = vpack.c.bf16 %v2588, %v2584
      %v3254 = vpack.c.bf16 %v2590, %v2586
      %v3255 = vpack.c.bf16 %v2941, %v2937
      %v3256 = vpack.c.bf16 %v2943, %v2939
      %v3257 = vpack.c.bf16 %v1892, %v1888
      %v3258 = vpack.c.bf16 %v1894, %v1890
      %v3259 = vpack.c.bf16 %v2245, %v2241
      %v3260 = vpack.c.bf16 %v2247, %v2243
      %v3261 = vpack.c.bf16 %v2598, %v2594
      %v3262 = vpack.c.bf16 %v2600, %v2596
      %v3263 = vpack.c.bf16 %v2951, %v2947
      %v3264 = vpack.c.bf16 %v2953, %v2949
      %v3265 = vpack.c.bf16 %v1902, %v1898
      %v3266 = vpack.c.bf16 %v1904, %v1900
      %v3267 = vpack.c.bf16 %v2255, %v2251
      %v3268 = vpack.c.bf16 %v2257, %v2253
      %v3269 = vpack.c.bf16 %v2608, %v2604
      %v3270 = vpack.c.bf16 %v2610, %v2606
      %v3271 = vpack.c.bf16 %v2961, %v2957
      %v3272 = vpack.c.bf16 %v2963, %v2959
      %v3273 = vpack.c.bf16 %v1912, %v1908
      %v3274 = vpack.c.bf16 %v1914, %v1910
      %v3275 = vpack.c.bf16 %v2265, %v2261
      %v3276 = vpack.c.bf16 %v2267, %v2263
      %v3277 = vpack.c.bf16 %v2618, %v2614
      %v3278 = vpack.c.bf16 %v2620, %v2616
      %v3279 = vpack.c.bf16 %v2971, %v2967
      %v3280 = vpack.c.bf16 %v2973, %v2969
      %v3281 = vpack.c.bf16 %v1922, %v1918
      %v3282 = vpack.c.bf16 %v1924, %v1920
      %v3283 = vpack.c.bf16 %v2275, %v2271
      %v3284 = vpack.c.bf16 %v2277, %v2273
      %v3285 = vpack.c.bf16 %v2628, %v2624
      %v3286 = vpack.c.bf16 %v2630, %v2626
      %v3287 = vpack.c.bf16 %v2981, %v2977
      %v3288 = vpack.c.bf16 %v2983, %v2979
      %v3289 = vpack.c.bf16 %v1932, %v1928
      %v3290 = vpack.c.bf16 %v1934, %v1930
      %v3291 = vpack.c.bf16 %v2285, %v2281
      %v3292 = vpack.c.bf16 %v2287, %v2283
      %v3293 = vpack.c.bf16 %v2638, %v2634
      %v3294 = vpack.c.bf16 %v2640, %v2636
      %v3295 = vpack.c.bf16 %v2991, %v2987
      %v3296 = vpack.c.bf16 %v2993, %v2989
      %v3297 = vpack.c.bf16 %v1942, %v1938
      %v3298 = vpack.c.bf16 %v1944, %v1940
      %v3299 = vpack.c.bf16 %v2295, %v2291
      %v3300 = vpack.c.bf16 %v2297, %v2293
      %v3301 = vpack.c.bf16 %v2648, %v2644
      %v3302 = vpack.c.bf16 %v2650, %v2646
      %v3303 = vpack.c.bf16 %v3001, %v2997
      %v3304 = vpack.c.bf16 %v3003, %v2999
      %v3305 = vpack.c.bf16 %v1952, %v1948
      %v3306 = vpack.c.bf16 %v1954, %v1950
      %v3307 = vpack.c.bf16 %v2305, %v2301
      %v3308 = vpack.c.bf16 %v2307, %v2303
      %v3309 = vpack.c.bf16 %v2658, %v2654
      %v3310 = vpack.c.bf16 %v2660, %v2656
      %v3311 = vpack.c.bf16 %v3011, %v3007
      %v3312 = vpack.c.bf16 %v3013, %v3009
      %v3313 = vpack.c.bf16 %v1962, %v1958
      %v3314 = vpack.c.bf16 %v1964, %v1960
      %v3315 = vpack.c.bf16 %v2315, %v2311
      %v3316 = vpack.c.bf16 %v2317, %v2313
      %v3317 = vpack.c.bf16 %v2668, %v2664
      %v3318 = vpack.c.bf16 %v2670, %v2666
      %v3319 = vpack.c.bf16 %v3021, %v3017
      %v3320 = vpack.c.bf16 %v3023, %v3019
      %v3321 = vpack.c.bf16 %v1972, %v1968
      %v3322 = vpack.c.bf16 %v1974, %v1970
      %v3323 = vpack.c.bf16 %v2325, %v2321
      %v3324 = vpack.c.bf16 %v2327, %v2323
      %v3325 = vpack.c.bf16 %v2678, %v2674
      %v3326 = vpack.c.bf16 %v2680, %v2676
      %v3327 = vpack.c.bf16 %v3031, %v3027
      %v3328 = vpack.c.bf16 %v3033, %v3029
      %v3329 = vpack.c.bf16 %v1982, %v1978
      %v3330 = vpack.c.bf16 %v1984, %v1980
      %v3331 = vpack.c.bf16 %v2335, %v2331
      %v3332 = vpack.c.bf16 %v2337, %v2333
      %v3333 = vpack.c.bf16 %v2688, %v2684
      %v3334 = vpack.c.bf16 %v2690, %v2686
      %v3335 = vpack.c.bf16 %v3041, %v3037
      %v3336 = vpack.c.bf16 %v3043, %v3039
      %v3337 = vpack.c.bf16 %v1992, %v1988
      %v3338 = vpack.c.bf16 %v1994, %v1990
      %v3339 = vpack.c.bf16 %v2345, %v2341
      %v3340 = vpack.c.bf16 %v2347, %v2343
      %v3341 = vpack.c.bf16 %v2698, %v2694
      %v3342 = vpack.c.bf16 %v2700, %v2696
      %v3343 = vpack.c.bf16 %v3051, %v3047
      %v3344 = vpack.c.bf16 %v3053, %v3049
      %v3345 = vpack.c.bf16 %v2002, %v1998
      %v3346 = vpack.c.bf16 %v2004, %v2000
      %v3347 = vpack.c.bf16 %v2355, %v2351
      %v3348 = vpack.c.bf16 %v2357, %v2353
      %v3349 = vpack.c.bf16 %v2708, %v2704
      %v3350 = vpack.c.bf16 %v2710, %v2706
      %v3351 = vpack.c.bf16 %v3061, %v3057
      %v3352 = vpack.c.bf16 %v3063, %v3059
      %v3353 = vpack.c.bf16 %v2012, %v2008
      %v3354 = vpack.c.bf16 %v2014, %v2010
      %v3355 = vpack.c.bf16 %v2365, %v2361
      %v3356 = vpack.c.bf16 %v2367, %v2363
      %v3357 = vpack.c.bf16 %v2718, %v2714
      %v3358 = vpack.c.bf16 %v2720, %v2716
      %v3359 = vpack.c.bf16 %v3071, %v3067
      %v3360 = vpack.c.bf16 %v3073, %v3069
      %v3361 = vpack.c.bf16 %v2022, %v2018
      %v3362 = vpack.c.bf16 %v2024, %v2020
      %v3363 = vpack.c.bf16 %v2375, %v2371
      %v3364 = vpack.c.bf16 %v2377, %v2373
      %v3365 = vpack.c.bf16 %v2728, %v2724
      %v3366 = vpack.c.bf16 %v2730, %v2726
      %v3367 = vpack.c.bf16 %v3081, %v3077
      %v3368 = vpack.c.bf16 %v3083, %v3079
      %v3369 = vpack.c.bf16 %v2032, %v2028
      %v3370 = vpack.c.bf16 %v2034, %v2030
      %v3371 = vpack.c.bf16 %v2385, %v2381
      %v3372 = vpack.c.bf16 %v2387, %v2383
      %v3373 = vpack.c.bf16 %v2738, %v2734
      %v3374 = vpack.c.bf16 %v2740, %v2736
      %v3375 = vpack.c.bf16 %v3091, %v3087
      %v3376 = vpack.c.bf16 %v3093, %v3089
      %v3377 = vpack.c.bf16 %v2042, %v2038
      %v3378 = vpack.c.bf16 %v2044, %v2040
      %v3379 = vpack.c.bf16 %v2395, %v2391
      %v3380 = vpack.c.bf16 %v2397, %v2393
      %v3381 = vpack.c.bf16 %v2748, %v2744
      %v3382 = vpack.c.bf16 %v2750, %v2746
      %v3383 = vpack.c.bf16 %v3101, %v3097
      %v3384 = vpack.c.bf16 %v3103, %v3099
      %v3385 = vpack.c.bf16 %v2052, %v2048
      %v3386 = vpack.c.bf16 %v2054, %v2050
      %v3387 = vpack.c.bf16 %v2405, %v2401
      %v3388 = vpack.c.bf16 %v2407, %v2403
      %v3389 = vpack.c.bf16 %v2758, %v2754
      %v3390 = vpack.c.bf16 %v2760, %v2756
      %v3391 = vpack.c.bf16 %v3111, %v3107
      %v3392 = vpack.c.bf16 %v3113, %v3109
      %v3393 = vpack.c.bf16 %v2062, %v2058
      %v3394 = vpack.c.bf16 %v2064, %v2060
      %v3395 = vpack.c.bf16 %v2415, %v2411
      %v3396 = vpack.c.bf16 %v2417, %v2413
      %v3397 = vpack.c.bf16 %v2768, %v2764
      %v3398 = vpack.c.bf16 %v2770, %v2766
      %v3399 = vpack.c.bf16 %v3121, %v3117
      %v3400 = vpack.c.bf16 %v3123, %v3119
      %v3401 = vpack.c.bf16 %v2072, %v2068
      %v3402 = vpack.c.bf16 %v2074, %v2070
      %v3403 = vpack.c.bf16 %v2425, %v2421
      %v3404 = vpack.c.bf16 %v2427, %v2423
      %v3405 = vpack.c.bf16 %v2778, %v2774
      %v3406 = vpack.c.bf16 %v2780, %v2776
      %v3407 = vpack.c.bf16 %v3131, %v3127
      %v3408 = vpack.c.bf16 %v3133, %v3129
      %v3409 = vpack.c.bf16 %v2082, %v2078
      %v3410 = vpack.c.bf16 %v2084, %v2080
      %v3411 = vpack.c.bf16 %v2435, %v2431
      %v3412 = vpack.c.bf16 %v2437, %v2433
      %v3413 = vpack.c.bf16 %v2788, %v2784
      %v3414 = vpack.c.bf16 %v2790, %v2786
      %v3415 = vpack.c.bf16 %v3141, %v3137
      %v3416 = vpack.c.bf16 %v3143, %v3139
      %v3417 = vpack.c.bf16 %v2092, %v2088
      %v3418 = vpack.c.bf16 %v2094, %v2090
      %v3419 = vpack.c.bf16 %v2445, %v2441
      %v3420 = vpack.c.bf16 %v2447, %v2443
      %v3421 = vpack.c.bf16 %v2798, %v2794
      %v3422 = vpack.c.bf16 %v2800, %v2796
      %v3423 = vpack.c.bf16 %v3151, %v3147
      %v3424 = vpack.c.bf16 %v3153, %v3149
      %v3425 = vpack.c.bf16 %v2102, %v2098
      %v3426 = vpack.c.bf16 %v2104, %v2100
      %v3427 = vpack.c.bf16 %v2455, %v2451
      %v3428 = vpack.c.bf16 %v2457, %v2453
      %v3429 = vpack.c.bf16 %v2808, %v2804
      %v3430 = vpack.c.bf16 %v2810, %v2806
      %v3431 = vpack.c.bf16 %v3161, %v3157
      %v3432 = vpack.c.bf16 %v3163, %v3159
      %v3433 = vpack.c.bf16 %v2112, %v2108
      %v3434 = vpack.c.bf16 %v2114, %v2110
      %v3435 = vpack.c.bf16 %v2465, %v2461
      %v3436 = vpack.c.bf16 %v2467, %v2463
      %v3437 = vpack.c.bf16 %v2818, %v2814
      %v3438 = vpack.c.bf16 %v2820, %v2816
      %v3439 = vpack.c.bf16 %v3171, %v3167
      %v3440 = vpack.c.bf16 %v3173, %v3169
      %v3441 = vpack.c.bf16 %v2122, %v2118
      %v3442 = vpack.c.bf16 %v2124, %v2120
      %v3443 = vpack.c.bf16 %v2475, %v2471
      %v3444 = vpack.c.bf16 %v2477, %v2473
      %v3445 = vpack.c.bf16 %v2828, %v2824
      %v3446 = vpack.c.bf16 %v2830, %v2826
      %v3447 = vpack.c.bf16 %v3181, %v3177
      %v3448 = vpack.c.bf16 %v3183, %v3179
      %v3449 = vpack.c.bf16 %v2132, %v2128
      %v3450 = vpack.c.bf16 %v2134, %v2130
      %v3451 = vpack.c.bf16 %v2485, %v2481
      %v3452 = vpack.c.bf16 %v2487, %v2483
      %v3453 = vpack.c.bf16 %v2838, %v2834
      %v3454 = vpack.c.bf16 %v2840, %v2836
      %v3455 = vpack.c.bf16 %v3191, %v3187
      %v3456 = vpack.c.bf16 %v3193, %v3189
      %v3457 = vpack.c.bf16 %v2142, %v2138
      %v3458 = vpack.c.bf16 %v2144, %v2140
      %v3459 = vpack.c.bf16 %v2495, %v2491
      %v3460 = vpack.c.bf16 %v2497, %v2493
      %v3461 = vpack.c.bf16 %v2848, %v2844
      %v3462 = vpack.c.bf16 %v2850, %v2846
      %v3463 = vpack.c.bf16 %v3201, %v3197
      %v3464 = vpack.c.bf16 %v3203, %v3199
      %v3465 = vpack.c.bf16 %v2152, %v2148
      %v3466 = vpack.c.bf16 %v2154, %v2150
      %v3467 = vpack.c.bf16 %v2505, %v2501
      %v3468 = vpack.c.bf16 %v2507, %v2503
      %v3469 = vpack.c.bf16 %v2858, %v2854
      %v3470 = vpack.c.bf16 %v2860, %v2856
      %v3471 = vpack.c.bf16 %v3211, %v3207
      %v3472 = vpack.c.bf16 %v3213, %v3209
      %v3473 = vpack.c.bf16 %v2162, %v2158
      %v3474 = vpack.c.bf16 %v2164, %v2160
      %v3475 = vpack.c.bf16 %v2515, %v2511
      %v3476 = vpack.c.bf16 %v2517, %v2513
      %v3477 = vpack.c.bf16 %v2868, %v2864
      %v3478 = vpack.c.bf16 %v2870, %v2866
      %v3479 = vpack.c.bf16 %v3221, %v3217
      %v3480 = vpack.c.bf16 %v3223, %v3219
      %v3481 = vld [vmem:[%s6] sm:$0xff]
      %v3483 = vlaneseq
      %v3484 = vshrl.u32 %v3483, 7
      %v3485 = vsub.s32 0, %v3484
      %v3486 = vrot.slane %v3481, %v3485
      %v3487 = vlaneseq
      %v3488 = vshrl.u32 %v3487, 7
      %v3489 = vsub.s32 1, %v3488
      %v3490 = vrot.slane %v3481, %v3489
      %v3491 = vlaneseq
      %v3492 = vshrl.u32 %v3491, 7
      %v3493 = vsub.s32 2, %v3492
      %v3494 = vrot.slane %v3481, %v3493
      %v3495 = vlaneseq
      %v3496 = vshrl.u32 %v3495, 7
      %v3497 = vsub.s32 3, %v3496
      %v3498 = vrot.slane %v3481, %v3497
      %v3499 = vlaneseq
      %v3500 = vshrl.u32 %v3499, 7
      %v3501 = vsub.s32 4, %v3500
      %v3502 = vrot.slane %v3481, %v3501
      %v3503 = vlaneseq
      %v3504 = vshrl.u32 %v3503, 7
      %v3505 = vsub.s32 5, %v3504
      %v3506 = vrot.slane %v3481, %v3505
      %v3507 = vlaneseq
      %v3508 = vshrl.u32 %v3507, 7
      %v3509 = vsub.s32 6, %v3508
      %v3510 = vrot.slane %v3481, %v3509
      %v3511 = vlaneseq
      %v3512 = vshrl.u32 %v3511, 7
      %v3513 = vsub.s32 7, %v3512
      %v3514 = vrot.slane %v3481, %v3513
      %v3523 = vpack.c.bf16 %v3486, %v3486
      %v3524 = vpack.c.bf16 %v3490, %v3490
      %v3525 = vpack.c.bf16 %v3494, %v3494
      %v3526 = vpack.c.bf16 %v3498, %v3498
      %v3527 = vpack.c.bf16 %v3502, %v3502
      %v3528 = vpack.c.bf16 %v3506, %v3506
      %v3529 = vpack.c.bf16 %v3510, %v3510
      %v3530 = vpack.c.bf16 %v3514, %v3514
      %v3532 = vpack.i.b16 %v3523, %v3523
      %v3534 = vlaneseq
      %v3535 = vshrl.u32 %v3534, 7
      %v3536 = vsub.s32 0, %v3535
      %v3537 = vrot.slane %v3532, %v3536
      %v3539 = vpack.i.b16 %v3524, %v3524
      %v3541 = vlaneseq
      %v3542 = vshrl.u32 %v3541, 7
      %v3543 = vsub.s32 0, %v3542
      %v3544 = vrot.slane %v3539, %v3543
      %v3546 = vpack.i.b16 %v3525, %v3525
      %v3548 = vlaneseq
      %v3549 = vshrl.u32 %v3548, 7
      %v3550 = vsub.s32 0, %v3549
      %v3551 = vrot.slane %v3546, %v3550
      %v3553 = vpack.i.b16 %v3526, %v3526
      %v3555 = vlaneseq
      %v3556 = vshrl.u32 %v3555, 7
      %v3557 = vsub.s32 0, %v3556
      %v3558 = vrot.slane %v3553, %v3557
      %v3560 = vpack.i.b16 %v3527, %v3527
      %v3562 = vlaneseq
      %v3563 = vshrl.u32 %v3562, 7
      %v3564 = vsub.s32 0, %v3563
      %v3565 = vrot.slane %v3560, %v3564
      %v3567 = vpack.i.b16 %v3528, %v3528
      %v3569 = vlaneseq
      %v3570 = vshrl.u32 %v3569, 7
      %v3571 = vsub.s32 0, %v3570
      %v3572 = vrot.slane %v3567, %v3571
      %v3574 = vpack.i.b16 %v3529, %v3529
      %v3576 = vlaneseq
      %v3577 = vshrl.u32 %v3576, 7
      %v3578 = vsub.s32 0, %v3577
      %v3579 = vrot.slane %v3574, %v3578
      %v3581 = vpack.i.b16 %v3530, %v3530
      %v3583 = vlaneseq
      %v3584 = vshrl.u32 %v3583, 7
      %v3585 = vsub.s32 0, %v3584
      %v3586 = vrot.slane %v3581, %v3585
      %v3587 = vadd.bf16 %v3225, %v3537
      %v3588 = vadd.bf16 %v3226, %v3544
      %v3589 = vadd.bf16 %v3227, %v3551
      %v3590 = vadd.bf16 %v3228, %v3558
      %v3591 = vadd.bf16 %v3229, %v3565
      %v3592 = vadd.bf16 %v3230, %v3572
      %v3593 = vadd.bf16 %v3231, %v3579
      %v3594 = vadd.bf16 %v3232, %v3586
      %v3595 = vadd.bf16 %v3233, %v3537
      %v3596 = vadd.bf16 %v3234, %v3544
      %v3597 = vadd.bf16 %v3235, %v3551
      %v3598 = vadd.bf16 %v3236, %v3558
      %v3599 = vadd.bf16 %v3237, %v3565
      %v3600 = vadd.bf16 %v3238, %v3572
      %v3601 = vadd.bf16 %v3239, %v3579
      %v3602 = vadd.bf16 %v3240, %v3586
      %v3603 = vadd.bf16 %v3241, %v3537
      %v3604 = vadd.bf16 %v3242, %v3544
      %v3605 = vadd.bf16 %v3243, %v3551
      %v3606 = vadd.bf16 %v3244, %v3558
      %v3607 = vadd.bf16 %v3245, %v3565
      %v3608 = vadd.bf16 %v3246, %v3572
      %v3609 = vadd.bf16 %v3247, %v3579
      %v3610 = vadd.bf16 %v3248, %v3586
      %v3611 = vadd.bf16 %v3249, %v3537
      %v3612 = vadd.bf16 %v3250, %v3544
      %v3613 = vadd.bf16 %v3251, %v3551
      %v3614 = vadd.bf16 %v3252, %v3558
      %v3615 = vadd.bf16 %v3253, %v3565
      %v3616 = vadd.bf16 %v3254, %v3572
      %v3617 = vadd.bf16 %v3255, %v3579
      %v3618 = vadd.bf16 %v3256, %v3586
      %v3619 = vadd.bf16 %v3257, %v3537
      %v3620 = vadd.bf16 %v3258, %v3544
      %v3621 = vadd.bf16 %v3259, %v3551
      %v3622 = vadd.bf16 %v3260, %v3558
      %v3623 = vadd.bf16 %v3261, %v3565
      %v3624 = vadd.bf16 %v3262, %v3572
      %v3625 = vadd.bf16 %v3263, %v3579
      %v3626 = vadd.bf16 %v3264, %v3586
      %v3627 = vadd.bf16 %v3265, %v3537
      %v3628 = vadd.bf16 %v3266, %v3544
      %v3629 = vadd.bf16 %v3267, %v3551
      %v3630 = vadd.bf16 %v3268, %v3558
      %v3631 = vadd.bf16 %v3269, %v3565
      %v3632 = vadd.bf16 %v3270, %v3572
      %v3633 = vadd.bf16 %v3271, %v3579
      %v3634 = vadd.bf16 %v3272, %v3586
      %v3635 = vadd.bf16 %v3273, %v3537
      %v3636 = vadd.bf16 %v3274, %v3544
      %v3637 = vadd.bf16 %v3275, %v3551
      %v3638 = vadd.bf16 %v3276, %v3558
      %v3639 = vadd.bf16 %v3277, %v3565
      %v3640 = vadd.bf16 %v3278, %v3572
      %v3641 = vadd.bf16 %v3279, %v3579
      %v3642 = vadd.bf16 %v3280, %v3586
      %v3643 = vadd.bf16 %v3281, %v3537
      %v3644 = vadd.bf16 %v3282, %v3544
      %v3645 = vadd.bf16 %v3283, %v3551
      %v3646 = vadd.bf16 %v3284, %v3558
      %v3647 = vadd.bf16 %v3285, %v3565
      %v3648 = vadd.bf16 %v3286, %v3572
      %v3649 = vadd.bf16 %v3287, %v3579
      %v3650 = vadd.bf16 %v3288, %v3586
      %v3651 = vadd.bf16 %v3289, %v3537
      %v3652 = vadd.bf16 %v3290, %v3544
      %v3653 = vadd.bf16 %v3291, %v3551
      %v3654 = vadd.bf16 %v3292, %v3558
      %v3655 = vadd.bf16 %v3293, %v3565
      %v3656 = vadd.bf16 %v3294, %v3572
      %v3657 = vadd.bf16 %v3295, %v3579
      %v3658 = vadd.bf16 %v3296, %v3586
      %v3659 = vadd.bf16 %v3297, %v3537
      %v3660 = vadd.bf16 %v3298, %v3544
      %v3661 = vadd.bf16 %v3299, %v3551
      %v3662 = vadd.bf16 %v3300, %v3558
      %v3663 = vadd.bf16 %v3301, %v3565
      %v3664 = vadd.bf16 %v3302, %v3572
      %v3665 = vadd.bf16 %v3303, %v3579
      %v3666 = vadd.bf16 %v3304, %v3586
      %v3667 = vadd.bf16 %v3305, %v3537
      %v3668 = vadd.bf16 %v3306, %v3544
      %v3669 = vadd.bf16 %v3307, %v3551
      %v3670 = vadd.bf16 %v3308, %v3558
      %v3671 = vadd.bf16 %v3309, %v3565
      %v3672 = vadd.bf16 %v3310, %v3572
      %v3673 = vadd.bf16 %v3311, %v3579
      %v3674 = vadd.bf16 %v3312, %v3586
      %v3675 = vadd.bf16 %v3313, %v3537
      %v3676 = vadd.bf16 %v3314, %v3544
      %v3677 = vadd.bf16 %v3315, %v3551
      %v3678 = vadd.bf16 %v3316, %v3558
      %v3679 = vadd.bf16 %v3317, %v3565
      %v3680 = vadd.bf16 %v3318, %v3572
      %v3681 = vadd.bf16 %v3319, %v3579
      %v3682 = vadd.bf16 %v3320, %v3586
      %v3683 = vadd.bf16 %v3321, %v3537
      %v3684 = vadd.bf16 %v3322, %v3544
      %v3685 = vadd.bf16 %v3323, %v3551
      %v3686 = vadd.bf16 %v3324, %v3558
      %v3687 = vadd.bf16 %v3325, %v3565
      %v3688 = vadd.bf16 %v3326, %v3572
      %v3689 = vadd.bf16 %v3327, %v3579
      %v3690 = vadd.bf16 %v3328, %v3586
      %v3691 = vadd.bf16 %v3329, %v3537
      %v3692 = vadd.bf16 %v3330, %v3544
      %v3693 = vadd.bf16 %v3331, %v3551
      %v3694 = vadd.bf16 %v3332, %v3558
      %v3695 = vadd.bf16 %v3333, %v3565
      %v3696 = vadd.bf16 %v3334, %v3572
      %v3697 = vadd.bf16 %v3335, %v3579
      %v3698 = vadd.bf16 %v3336, %v3586
      %v3699 = vadd.bf16 %v3337, %v3537
      %v3700 = vadd.bf16 %v3338, %v3544
      %v3701 = vadd.bf16 %v3339, %v3551
      %v3702 = vadd.bf16 %v3340, %v3558
      %v3703 = vadd.bf16 %v3341, %v3565
      %v3704 = vadd.bf16 %v3342, %v3572
      %v3705 = vadd.bf16 %v3343, %v3579
      %v3706 = vadd.bf16 %v3344, %v3586
      %v3707 = vadd.bf16 %v3345, %v3537
      %v3708 = vadd.bf16 %v3346, %v3544
      %v3709 = vadd.bf16 %v3347, %v3551
      %v3710 = vadd.bf16 %v3348, %v3558
      %v3711 = vadd.bf16 %v3349, %v3565
      %v3712 = vadd.bf16 %v3350, %v3572
      %v3713 = vadd.bf16 %v3351, %v3579
      %v3714 = vadd.bf16 %v3352, %v3586
      %v3715 = vadd.bf16 %v3353, %v3537
      %v3716 = vadd.bf16 %v3354, %v3544
      %v3717 = vadd.bf16 %v3355, %v3551
      %v3718 = vadd.bf16 %v3356, %v3558
      %v3719 = vadd.bf16 %v3357, %v3565
      %v3720 = vadd.bf16 %v3358, %v3572
      %v3721 = vadd.bf16 %v3359, %v3579
      %v3722 = vadd.bf16 %v3360, %v3586
      %v3723 = vadd.bf16 %v3361, %v3537
      %v3724 = vadd.bf16 %v3362, %v3544
      %v3725 = vadd.bf16 %v3363, %v3551
      %v3726 = vadd.bf16 %v3364, %v3558
      %v3727 = vadd.bf16 %v3365, %v3565
      %v3728 = vadd.bf16 %v3366, %v3572
      %v3729 = vadd.bf16 %v3367, %v3579
      %v3730 = vadd.bf16 %v3368, %v3586
      %v3731 = vadd.bf16 %v3369, %v3537
      %v3732 = vadd.bf16 %v3370, %v3544
      %v3733 = vadd.bf16 %v3371, %v3551
      %v3734 = vadd.bf16 %v3372, %v3558
      %v3735 = vadd.bf16 %v3373, %v3565
      %v3736 = vadd.bf16 %v3374, %v3572
      %v3737 = vadd.bf16 %v3375, %v3579
      %v3738 = vadd.bf16 %v3376, %v3586
      %v3739 = vadd.bf16 %v3377, %v3537
      %v3740 = vadd.bf16 %v3378, %v3544
      %v3741 = vadd.bf16 %v3379, %v3551
      %v3742 = vadd.bf16 %v3380, %v3558
      %v3743 = vadd.bf16 %v3381, %v3565
      %v3744 = vadd.bf16 %v3382, %v3572
      %v3745 = vadd.bf16 %v3383, %v3579
      %v3746 = vadd.bf16 %v3384, %v3586
      %v3747 = vadd.bf16 %v3385, %v3537
      %v3748 = vadd.bf16 %v3386, %v3544
      %v3749 = vadd.bf16 %v3387, %v3551
      %v3750 = vadd.bf16 %v3388, %v3558
      %v3751 = vadd.bf16 %v3389, %v3565
      %v3752 = vadd.bf16 %v3390, %v3572
      %v3753 = vadd.bf16 %v3391, %v3579
      %v3754 = vadd.bf16 %v3392, %v3586
      %v3755 = vadd.bf16 %v3393, %v3537
      %v3756 = vadd.bf16 %v3394, %v3544
      %v3757 = vadd.bf16 %v3395, %v3551
      %v3758 = vadd.bf16 %v3396, %v3558
      %v3759 = vadd.bf16 %v3397, %v3565
      %v3760 = vadd.bf16 %v3398, %v3572
      %v3761 = vadd.bf16 %v3399, %v3579
      %v3762 = vadd.bf16 %v3400, %v3586
      %v3763 = vadd.bf16 %v3401, %v3537
      %v3764 = vadd.bf16 %v3402, %v3544
      %v3765 = vadd.bf16 %v3403, %v3551
      %v3766 = vadd.bf16 %v3404, %v3558
      %v3767 = vadd.bf16 %v3405, %v3565
      %v3768 = vadd.bf16 %v3406, %v3572
      %v3769 = vadd.bf16 %v3407, %v3579
      %v3770 = vadd.bf16 %v3408, %v3586
      %v3771 = vadd.bf16 %v3409, %v3537
      %v3772 = vadd.bf16 %v3410, %v3544
      %v3773 = vadd.bf16 %v3411, %v3551
      %v3774 = vadd.bf16 %v3412, %v3558
      %v3775 = vadd.bf16 %v3413, %v3565
      %v3776 = vadd.bf16 %v3414, %v3572
      %v3777 = vadd.bf16 %v3415, %v3579
      %v3778 = vadd.bf16 %v3416, %v3586
      %v3779 = vadd.bf16 %v3417, %v3537
      %v3780 = vadd.bf16 %v3418, %v3544
      %v3781 = vadd.bf16 %v3419, %v3551
      %v3782 = vadd.bf16 %v3420, %v3558
      %v3783 = vadd.bf16 %v3421, %v3565
      %v3784 = vadd.bf16 %v3422, %v3572
      %v3785 = vadd.bf16 %v3423, %v3579
      %v3786 = vadd.bf16 %v3424, %v3586
      %v3787 = vadd.bf16 %v3425, %v3537
      %v3788 = vadd.bf16 %v3426, %v3544
      %v3789 = vadd.bf16 %v3427, %v3551
      %v3790 = vadd.bf16 %v3428, %v3558
      %v3791 = vadd.bf16 %v3429, %v3565
      %v3792 = vadd.bf16 %v3430, %v3572
      %v3793 = vadd.bf16 %v3431, %v3579
      %v3794 = vadd.bf16 %v3432, %v3586
      %v3795 = vadd.bf16 %v3433, %v3537
      %v3796 = vadd.bf16 %v3434, %v3544
      %v3797 = vadd.bf16 %v3435, %v3551
      %v3798 = vadd.bf16 %v3436, %v3558
      %v3799 = vadd.bf16 %v3437, %v3565
      %v3800 = vadd.bf16 %v3438, %v3572
      %v3801 = vadd.bf16 %v3439, %v3579
      %v3802 = vadd.bf16 %v3440, %v3586
      %v3803 = vadd.bf16 %v3441, %v3537
      %v3804 = vadd.bf16 %v3442, %v3544
      %v3805 = vadd.bf16 %v3443, %v3551
      %v3806 = vadd.bf16 %v3444, %v3558
      %v3807 = vadd.bf16 %v3445, %v3565
      %v3808 = vadd.bf16 %v3446, %v3572
      %v3809 = vadd.bf16 %v3447, %v3579
      %v3810 = vadd.bf16 %v3448, %v3586
      %v3811 = vadd.bf16 %v3449, %v3537
      %v3812 = vadd.bf16 %v3450, %v3544
      %v3813 = vadd.bf16 %v3451, %v3551
      %v3814 = vadd.bf16 %v3452, %v3558
      %v3815 = vadd.bf16 %v3453, %v3565
      %v3816 = vadd.bf16 %v3454, %v3572
      %v3817 = vadd.bf16 %v3455, %v3579
      %v3818 = vadd.bf16 %v3456, %v3586
      %v3819 = vadd.bf16 %v3457, %v3537
      %v3820 = vadd.bf16 %v3458, %v3544
      %v3821 = vadd.bf16 %v3459, %v3551
      %v3822 = vadd.bf16 %v3460, %v3558
      %v3823 = vadd.bf16 %v3461, %v3565
      %v3824 = vadd.bf16 %v3462, %v3572
      %v3825 = vadd.bf16 %v3463, %v3579
      %v3826 = vadd.bf16 %v3464, %v3586
      %v3827 = vadd.bf16 %v3465, %v3537
      %v3828 = vadd.bf16 %v3466, %v3544
      %v3829 = vadd.bf16 %v3467, %v3551
      %v3830 = vadd.bf16 %v3468, %v3558
      %v3831 = vadd.bf16 %v3469, %v3565
      %v3832 = vadd.bf16 %v3470, %v3572
      %v3833 = vadd.bf16 %v3471, %v3579
      %v3834 = vadd.bf16 %v3472, %v3586
      %v3835 = vadd.bf16 %v3473, %v3537
      %v3836 = vadd.bf16 %v3474, %v3544
      %v3837 = vadd.bf16 %v3475, %v3551
      %v3838 = vadd.bf16 %v3476, %v3558
      %v3839 = vadd.bf16 %v3477, %v3565
      %v3840 = vadd.bf16 %v3478, %v3572
      %v3841 = vadd.bf16 %v3479, %v3579
      %v3842 = vadd.bf16 %v3480, %v3586
      %v3843 = vmax.bf16 %v3587, 0
      %v3844 = vmax.bf16 %v3588, 0
      %v3845 = vmax.bf16 %v3589, 0
      %v3846 = vmax.bf16 %v3590, 0
      %v3847 = vmax.bf16 %v3591, 0
      %v3848 = vmax.bf16 %v3592, 0
      %v3849 = vmax.bf16 %v3593, 0
      %v3850 = vmax.bf16 %v3594, 0
      %v3851 = vmax.bf16 %v3595, 0
      %v3852 = vmax.bf16 %v3596, 0
      %v3853 = vmax.bf16 %v3597, 0
      %v3854 = vmax.bf16 %v3598, 0
      %v3855 = vmax.bf16 %v3599, 0
      %v3856 = vmax.bf16 %v3600, 0
      %v3857 = vmax.bf16 %v3601, 0
      %v3858 = vmax.bf16 %v3602, 0
      %v3859 = vmax.bf16 %v3603, 0
      %v3860 = vmax.bf16 %v3604, 0
      %v3861 = vmax.bf16 %v3605, 0
      %v3862 = vmax.bf16 %v3606, 0
      %v3863 = vmax.bf16 %v3607, 0
      %v3864 = vmax.bf16 %v3608, 0
      %v3865 = vmax.bf16 %v3609, 0
      %v3866 = vmax.bf16 %v3610, 0
      %v3867 = vmax.bf16 %v3611, 0
      %v3868 = vmax.bf16 %v3612, 0
      %v3869 = vmax.bf16 %v3613, 0
      %v3870 = vmax.bf16 %v3614, 0
      %v3871 = vmax.bf16 %v3615, 0
      %v3872 = vmax.bf16 %v3616, 0
      %v3873 = vmax.bf16 %v3617, 0
      %v3874 = vmax.bf16 %v3618, 0
      %v3875 = vmax.bf16 %v3619, 0
      %v3876 = vmax.bf16 %v3620, 0
      %v3877 = vmax.bf16 %v3621, 0
      %v3878 = vmax.bf16 %v3622, 0
      %v3879 = vmax.bf16 %v3623, 0
      %v3880 = vmax.bf16 %v3624, 0
      %v3881 = vmax.bf16 %v3625, 0
      %v3882 = vmax.bf16 %v3626, 0
      %v3883 = vmax.bf16 %v3627, 0
      %v3884 = vmax.bf16 %v3628, 0
      %v3885 = vmax.bf16 %v3629, 0
      %v3886 = vmax.bf16 %v3630, 0
      %v3887 = vmax.bf16 %v3631, 0
      %v3888 = vmax.bf16 %v3632, 0
      %v3889 = vmax.bf16 %v3633, 0
      %v3890 = vmax.bf16 %v3634, 0
      %v3891 = vmax.bf16 %v3635, 0
      %v3892 = vmax.bf16 %v3636, 0
      %v3893 = vmax.bf16 %v3637, 0
      %v3894 = vmax.bf16 %v3638, 0
      %v3895 = vmax.bf16 %v3639, 0
      %v3896 = vmax.bf16 %v3640, 0
      %v3897 = vmax.bf16 %v3641, 0
      %v3898 = vmax.bf16 %v3642, 0
      %v3899 = vmax.bf16 %v3643, 0
      %v3900 = vmax.bf16 %v3644, 0
      %v3901 = vmax.bf16 %v3645, 0
      %v3902 = vmax.bf16 %v3646, 0
      %v3903 = vmax.bf16 %v3647, 0
      %v3904 = vmax.bf16 %v3648, 0
      %v3905 = vmax.bf16 %v3649, 0
      %v3906 = vmax.bf16 %v3650, 0
      %v3907 = vmax.bf16 %v3651, 0
      %v3908 = vmax.bf16 %v3652, 0
      %v3909 = vmax.bf16 %v3653, 0
      %v3910 = vmax.bf16 %v3654, 0
      %v3911 = vmax.bf16 %v3655, 0
      %v3912 = vmax.bf16 %v3656, 0
      %v3913 = vmax.bf16 %v3657, 0
      %v3914 = vmax.bf16 %v3658, 0
      %v3915 = vmax.bf16 %v3659, 0
      %v3916 = vmax.bf16 %v3660, 0
      %v3917 = vmax.bf16 %v3661, 0
      %v3918 = vmax.bf16 %v3662, 0
      %v3919 = vmax.bf16 %v3663, 0
      %v3920 = vmax.bf16 %v3664, 0
      %v3921 = vmax.bf16 %v3665, 0
      %v3922 = vmax.bf16 %v3666, 0
      %v3923 = vmax.bf16 %v3667, 0
      %v3924 = vmax.bf16 %v3668, 0
      %v3925 = vmax.bf16 %v3669, 0
      %v3926 = vmax.bf16 %v3670, 0
      %v3927 = vmax.bf16 %v3671, 0
      %v3928 = vmax.bf16 %v3672, 0
      %v3929 = vmax.bf16 %v3673, 0
      %v3930 = vmax.bf16 %v3674, 0
      %v3931 = vmax.bf16 %v3675, 0
      %v3932 = vmax.bf16 %v3676, 0
      %v3933 = vmax.bf16 %v3677, 0
      %v3934 = vmax.bf16 %v3678, 0
      %v3935 = vmax.bf16 %v3679, 0
      %v3936 = vmax.bf16 %v3680, 0
      %v3937 = vmax.bf16 %v3681, 0
      %v3938 = vmax.bf16 %v3682, 0
      %v3939 = vmax.bf16 %v3683, 0
      %v3940 = vmax.bf16 %v3684, 0
      %v3941 = vmax.bf16 %v3685, 0
      %v3942 = vmax.bf16 %v3686, 0
      %v3943 = vmax.bf16 %v3687, 0
      %v3944 = vmax.bf16 %v3688, 0
      %v3945 = vmax.bf16 %v3689, 0
      %v3946 = vmax.bf16 %v3690, 0
      %v3947 = vmax.bf16 %v3691, 0
      %v3948 = vmax.bf16 %v3692, 0
      %v3949 = vmax.bf16 %v3693, 0
      %v3950 = vmax.bf16 %v3694, 0
      %v3951 = vmax.bf16 %v3695, 0
      %v3952 = vmax.bf16 %v3696, 0
      %v3953 = vmax.bf16 %v3697, 0
      %v3954 = vmax.bf16 %v3698, 0
      %v3955 = vmax.bf16 %v3699, 0
      %v3956 = vmax.bf16 %v3700, 0
      %v3957 = vmax.bf16 %v3701, 0
      %v3958 = vmax.bf16 %v3702, 0
      %v3959 = vmax.bf16 %v3703, 0
      %v3960 = vmax.bf16 %v3704, 0
      %v3961 = vmax.bf16 %v3705, 0
      %v3962 = vmax.bf16 %v3706, 0
      %v3963 = vmax.bf16 %v3707, 0
      %v3964 = vmax.bf16 %v3708, 0
      %v3965 = vmax.bf16 %v3709, 0
      %v3966 = vmax.bf16 %v3710, 0
      %v3967 = vmax.bf16 %v3711, 0
      %v3968 = vmax.bf16 %v3712, 0
      %v3969 = vmax.bf16 %v3713, 0
      %v3970 = vmax.bf16 %v3714, 0
      %v3971 = vmax.bf16 %v3715, 0
      %v3972 = vmax.bf16 %v3716, 0
      %v3973 = vmax.bf16 %v3717, 0
      %v3974 = vmax.bf16 %v3718, 0
      %v3975 = vmax.bf16 %v3719, 0
      %v3976 = vmax.bf16 %v3720, 0
      %v3977 = vmax.bf16 %v3721, 0
      %v3978 = vmax.bf16 %v3722, 0
      %v3979 = vmax.bf16 %v3723, 0
      %v3980 = vmax.bf16 %v3724, 0
      %v3981 = vmax.bf16 %v3725, 0
      %v3982 = vmax.bf16 %v3726, 0
      %v3983 = vmax.bf16 %v3727, 0
      %v3984 = vmax.bf16 %v3728, 0
      %v3985 = vmax.bf16 %v3729, 0
      %v3986 = vmax.bf16 %v3730, 0
      %v3987 = vmax.bf16 %v3731, 0
      %v3988 = vmax.bf16 %v3732, 0
      %v3989 = vmax.bf16 %v3733, 0
      %v3990 = vmax.bf16 %v3734, 0
      %v3991 = vmax.bf16 %v3735, 0
      %v3992 = vmax.bf16 %v3736, 0
      %v3993 = vmax.bf16 %v3737, 0
      %v3994 = vmax.bf16 %v3738, 0
      %v3995 = vmax.bf16 %v3739, 0
      %v3996 = vmax.bf16 %v3740, 0
      %v3997 = vmax.bf16 %v3741, 0
      %v3998 = vmax.bf16 %v3742, 0
      %v3999 = vmax.bf16 %v3743, 0
      %v4000 = vmax.bf16 %v3744, 0
      %v4001 = vmax.bf16 %v3745, 0
      %v4002 = vmax.bf16 %v3746, 0
      %v4003 = vmax.bf16 %v3747, 0
      %v4004 = vmax.bf16 %v3748, 0
      %v4005 = vmax.bf16 %v3749, 0
      %v4006 = vmax.bf16 %v3750, 0
      %v4007 = vmax.bf16 %v3751, 0
      %v4008 = vmax.bf16 %v3752, 0
      %v4009 = vmax.bf16 %v3753, 0
      %v4010 = vmax.bf16 %v3754, 0
      %v4011 = vmax.bf16 %v3755, 0
      %v4012 = vmax.bf16 %v3756, 0
      %v4013 = vmax.bf16 %v3757, 0
      %v4014 = vmax.bf16 %v3758, 0
      %v4015 = vmax.bf16 %v3759, 0
      %v4016 = vmax.bf16 %v3760, 0
      %v4017 = vmax.bf16 %v3761, 0
      %v4018 = vmax.bf16 %v3762, 0
      %v4019 = vmax.bf16 %v3763, 0
      %v4020 = vmax.bf16 %v3764, 0
      %v4021 = vmax.bf16 %v3765, 0
      %v4022 = vmax.bf16 %v3766, 0
      %v4023 = vmax.bf16 %v3767, 0
      %v4024 = vmax.bf16 %v3768, 0
      %v4025 = vmax.bf16 %v3769, 0
      %v4026 = vmax.bf16 %v3770, 0
      %v4027 = vmax.bf16 %v3771, 0
      %v4028 = vmax.bf16 %v3772, 0
      %v4029 = vmax.bf16 %v3773, 0
      %v4030 = vmax.bf16 %v3774, 0
      %v4031 = vmax.bf16 %v3775, 0
      %v4032 = vmax.bf16 %v3776, 0
      %v4033 = vmax.bf16 %v3777, 0
      %v4034 = vmax.bf16 %v3778, 0
      %v4035 = vmax.bf16 %v3779, 0
      %v4036 = vmax.bf16 %v3780, 0
      %v4037 = vmax.bf16 %v3781, 0
      %v4038 = vmax.bf16 %v3782, 0
      %v4039 = vmax.bf16 %v3783, 0
      %v4040 = vmax.bf16 %v3784, 0
      %v4041 = vmax.bf16 %v3785, 0
      %v4042 = vmax.bf16 %v3786, 0
      %v4043 = vmax.bf16 %v3787, 0
      %v4044 = vmax.bf16 %v3788, 0
      %v4045 = vmax.bf16 %v3789, 0
      %v4046 = vmax.bf16 %v3790, 0
      %v4047 = vmax.bf16 %v3791, 0
      %v4048 = vmax.bf16 %v3792, 0
      %v4049 = vmax.bf16 %v3793, 0
      %v4050 = vmax.bf16 %v3794, 0
      %v4051 = vmax.bf16 %v3795, 0
      %v4052 = vmax.bf16 %v3796, 0
      %v4053 = vmax.bf16 %v3797, 0
      %v4054 = vmax.bf16 %v3798, 0
      %v4055 = vmax.bf16 %v3799, 0
      %v4056 = vmax.bf16 %v3800, 0
      %v4057 = vmax.bf16 %v3801, 0
      %v4058 = vmax.bf16 %v3802, 0
      %v4059 = vmax.bf16 %v3803, 0
      %v4060 = vmax.bf16 %v3804, 0
      %v4061 = vmax.bf16 %v3805, 0
      %v4062 = vmax.bf16 %v3806, 0
      %v4063 = vmax.bf16 %v3807, 0
      %v4064 = vmax.bf16 %v3808, 0
      %v4065 = vmax.bf16 %v3809, 0
      %v4066 = vmax.bf16 %v3810, 0
      %v4067 = vmax.bf16 %v3811, 0
      %v4068 = vmax.bf16 %v3812, 0
      %v4069 = vmax.bf16 %v3813, 0
      %v4070 = vmax.bf16 %v3814, 0
      %v4071 = vmax.bf16 %v3815, 0
      %v4072 = vmax.bf16 %v3816, 0
      %v4073 = vmax.bf16 %v3817, 0
      %v4074 = vmax.bf16 %v3818, 0
      %v4075 = vmax.bf16 %v3819, 0
      %v4076 = vmax.bf16 %v3820, 0
      %v4077 = vmax.bf16 %v3821, 0
      %v4078 = vmax.bf16 %v3822, 0
      %v4079 = vmax.bf16 %v3823, 0
      %v4080 = vmax.bf16 %v3824, 0
      %v4081 = vmax.bf16 %v3825, 0
      %v4082 = vmax.bf16 %v3826, 0
      %v4083 = vmax.bf16 %v3827, 0
      %v4084 = vmax.bf16 %v3828, 0
      %v4085 = vmax.bf16 %v3829, 0
      %v4086 = vmax.bf16 %v3830, 0
      %v4087 = vmax.bf16 %v3831, 0
      %v4088 = vmax.bf16 %v3832, 0
      %v4089 = vmax.bf16 %v3833, 0
      %v4090 = vmax.bf16 %v3834, 0
      %v4091 = vmax.bf16 %v3835, 0
      %v4092 = vmax.bf16 %v3836, 0
      %v4093 = vmax.bf16 %v3837, 0
      %v4094 = vmax.bf16 %v3838, 0
      %v4095 = vmax.bf16 %v3839, 0
      %v4096 = vmax.bf16 %v3840, 0
      %v4097 = vmax.bf16 %v3841, 0
      %v4098 = vmax.bf16 %v3842, 0
      %v4355 = vunpack.c.l.b16 %v3843
      %v4356 = vunpack.c.l.b16 %v3844
      %v4357 = vunpack.c.l.b16 %v3845
      %v4358 = vunpack.c.l.b16 %v3846
      %v4359 = vunpack.c.l.b16 %v3847
      %v4360 = vunpack.c.l.b16 %v3848
      %v4361 = vunpack.c.l.b16 %v3849
      %v4362 = vunpack.c.l.b16 %v3850
      %v4363 = vunpack.c.h.b16 %v3843
      %v4364 = vunpack.c.h.b16 %v3844
      %v4365 = vunpack.c.h.b16 %v3845
      %v4366 = vunpack.c.h.b16 %v3846
      %v4367 = vunpack.c.h.b16 %v3847
      %v4368 = vunpack.c.h.b16 %v3848
      %v4369 = vunpack.c.h.b16 %v3849
      %v4370 = vunpack.c.h.b16 %v3850
      %v4371 = vunpack.c.l.b16 %v3851
      %v4372 = vunpack.c.l.b16 %v3852
      %v4373 = vunpack.c.l.b16 %v3853
      %v4374 = vunpack.c.l.b16 %v3854
      %v4375 = vunpack.c.l.b16 %v3855
      %v4376 = vunpack.c.l.b16 %v3856
      %v4377 = vunpack.c.l.b16 %v3857
      %v4378 = vunpack.c.l.b16 %v3858
      %v4379 = vunpack.c.h.b16 %v3851
      %v4380 = vunpack.c.h.b16 %v3852
      %v4381 = vunpack.c.h.b16 %v3853
      %v4382 = vunpack.c.h.b16 %v3854
      %v4383 = vunpack.c.h.b16 %v3855
      %v4384 = vunpack.c.h.b16 %v3856
      %v4385 = vunpack.c.h.b16 %v3857
      %v4386 = vunpack.c.h.b16 %v3858
      %v4387 = vunpack.c.l.b16 %v3859
      %v4388 = vunpack.c.l.b16 %v3860
      %v4389 = vunpack.c.l.b16 %v3861
      %v4390 = vunpack.c.l.b16 %v3862
      %v4391 = vunpack.c.l.b16 %v3863
      %v4392 = vunpack.c.l.b16 %v3864
      %v4393 = vunpack.c.l.b16 %v3865
      %v4394 = vunpack.c.l.b16 %v3866
      %v4395 = vunpack.c.h.b16 %v3859
      %v4396 = vunpack.c.h.b16 %v3860
      %v4397 = vunpack.c.h.b16 %v3861
      %v4398 = vunpack.c.h.b16 %v3862
      %v4399 = vunpack.c.h.b16 %v3863
      %v4400 = vunpack.c.h.b16 %v3864
      %v4401 = vunpack.c.h.b16 %v3865
      %v4402 = vunpack.c.h.b16 %v3866
      %v4403 = vunpack.c.l.b16 %v3867
      %v4404 = vunpack.c.l.b16 %v3868
      %v4405 = vunpack.c.l.b16 %v3869
      %v4406 = vunpack.c.l.b16 %v3870
      %v4407 = vunpack.c.l.b16 %v3871
      %v4408 = vunpack.c.l.b16 %v3872
      %v4409 = vunpack.c.l.b16 %v3873
      %v4410 = vunpack.c.l.b16 %v3874
      %v4411 = vunpack.c.h.b16 %v3867
      %v4412 = vunpack.c.h.b16 %v3868
      %v4413 = vunpack.c.h.b16 %v3869
      %v4414 = vunpack.c.h.b16 %v3870
      %v4415 = vunpack.c.h.b16 %v3871
      %v4416 = vunpack.c.h.b16 %v3872
      %v4417 = vunpack.c.h.b16 %v3873
      %v4418 = vunpack.c.h.b16 %v3874
      %v4419 = vunpack.c.l.b16 %v3875
      %v4420 = vunpack.c.l.b16 %v3876
      %v4421 = vunpack.c.l.b16 %v3877
      %v4422 = vunpack.c.l.b16 %v3878
      %v4423 = vunpack.c.l.b16 %v3879
      %v4424 = vunpack.c.l.b16 %v3880
      %v4425 = vunpack.c.l.b16 %v3881
      %v4426 = vunpack.c.l.b16 %v3882
      %v4427 = vunpack.c.h.b16 %v3875
      %v4428 = vunpack.c.h.b16 %v3876
      %v4429 = vunpack.c.h.b16 %v3877
      %v4430 = vunpack.c.h.b16 %v3878
      %v4431 = vunpack.c.h.b16 %v3879
      %v4432 = vunpack.c.h.b16 %v3880
      %v4433 = vunpack.c.h.b16 %v3881
      %v4434 = vunpack.c.h.b16 %v3882
      %v4435 = vunpack.c.l.b16 %v3883
      %v4436 = vunpack.c.l.b16 %v3884
      %v4437 = vunpack.c.l.b16 %v3885
      %v4438 = vunpack.c.l.b16 %v3886
      %v4439 = vunpack.c.l.b16 %v3887
      %v4440 = vunpack.c.l.b16 %v3888
      %v4441 = vunpack.c.l.b16 %v3889
      %v4442 = vunpack.c.l.b16 %v3890
      %v4443 = vunpack.c.h.b16 %v3883
      %v4444 = vunpack.c.h.b16 %v3884
      %v4445 = vunpack.c.h.b16 %v3885
      %v4446 = vunpack.c.h.b16 %v3886
      %v4447 = vunpack.c.h.b16 %v3887
      %v4448 = vunpack.c.h.b16 %v3888
      %v4449 = vunpack.c.h.b16 %v3889
      %v4450 = vunpack.c.h.b16 %v3890
      %v4451 = vunpack.c.l.b16 %v3891
      %v4452 = vunpack.c.l.b16 %v3892
      %v4453 = vunpack.c.l.b16 %v3893
      %v4454 = vunpack.c.l.b16 %v3894
      %v4455 = vunpack.c.l.b16 %v3895
      %v4456 = vunpack.c.l.b16 %v3896
      %v4457 = vunpack.c.l.b16 %v3897
      %v4458 = vunpack.c.l.b16 %v3898
      %v4459 = vunpack.c.h.b16 %v3891
      %v4460 = vunpack.c.h.b16 %v3892
      %v4461 = vunpack.c.h.b16 %v3893
      %v4462 = vunpack.c.h.b16 %v3894
      %v4463 = vunpack.c.h.b16 %v3895
      %v4464 = vunpack.c.h.b16 %v3896
      %v4465 = vunpack.c.h.b16 %v3897
      %v4466 = vunpack.c.h.b16 %v3898
      %v4467 = vunpack.c.l.b16 %v3899
      %v4468 = vunpack.c.l.b16 %v3900
      %v4469 = vunpack.c.l.b16 %v3901
      %v4470 = vunpack.c.l.b16 %v3902
      %v4471 = vunpack.c.l.b16 %v3903
      %v4472 = vunpack.c.l.b16 %v3904
      %v4473 = vunpack.c.l.b16 %v3905
      %v4474 = vunpack.c.l.b16 %v3906
      %v4475 = vunpack.c.h.b16 %v3899
      %v4476 = vunpack.c.h.b16 %v3900
      %v4477 = vunpack.c.h.b16 %v3901
      %v4478 = vunpack.c.h.b16 %v3902
      %v4479 = vunpack.c.h.b16 %v3903
      %v4480 = vunpack.c.h.b16 %v3904
      %v4481 = vunpack.c.h.b16 %v3905
      %v4482 = vunpack.c.h.b16 %v3906
      %v4483 = vunpack.c.l.b16 %v3907
      %v4484 = vunpack.c.l.b16 %v3908
      %v4485 = vunpack.c.l.b16 %v3909
      %v4486 = vunpack.c.l.b16 %v3910
      %v4487 = vunpack.c.l.b16 %v3911
      %v4488 = vunpack.c.l.b16 %v3912
      %v4489 = vunpack.c.l.b16 %v3913
      %v4490 = vunpack.c.l.b16 %v3914
      %v4491 = vunpack.c.h.b16 %v3907
      %v4492 = vunpack.c.h.b16 %v3908
      %v4493 = vunpack.c.h.b16 %v3909
      %v4494 = vunpack.c.h.b16 %v3910
      %v4495 = vunpack.c.h.b16 %v3911
      %v4496 = vunpack.c.h.b16 %v3912
      %v4497 = vunpack.c.h.b16 %v3913
      %v4498 = vunpack.c.h.b16 %v3914
      %v4499 = vunpack.c.l.b16 %v3915
      %v4500 = vunpack.c.l.b16 %v3916
      %v4501 = vunpack.c.l.b16 %v3917
      %v4502 = vunpack.c.l.b16 %v3918
      %v4503 = vunpack.c.l.b16 %v3919
      %v4504 = vunpack.c.l.b16 %v3920
      %v4505 = vunpack.c.l.b16 %v3921
      %v4506 = vunpack.c.l.b16 %v3922
      %v4507 = vunpack.c.h.b16 %v3915
      %v4508 = vunpack.c.h.b16 %v3916
      %v4509 = vunpack.c.h.b16 %v3917
      %v4510 = vunpack.c.h.b16 %v3918
      %v4511 = vunpack.c.h.b16 %v3919
      %v4512 = vunpack.c.h.b16 %v3920
      %v4513 = vunpack.c.h.b16 %v3921
      %v4514 = vunpack.c.h.b16 %v3922
      %v4515 = vunpack.c.l.b16 %v3923
      %v4516 = vunpack.c.l.b16 %v3924
      %v4517 = vunpack.c.l.b16 %v3925
      %v4518 = vunpack.c.l.b16 %v3926
      %v4519 = vunpack.c.l.b16 %v3927
      %v4520 = vunpack.c.l.b16 %v3928
      %v4521 = vunpack.c.l.b16 %v3929
      %v4522 = vunpack.c.l.b16 %v3930
      %v4523 = vunpack.c.h.b16 %v3923
      %v4524 = vunpack.c.h.b16 %v3924
      %v4525 = vunpack.c.h.b16 %v3925
      %v4526 = vunpack.c.h.b16 %v3926
      %v4527 = vunpack.c.h.b16 %v3927
      %v4528 = vunpack.c.h.b16 %v3928
      %v4529 = vunpack.c.h.b16 %v3929
      %v4530 = vunpack.c.h.b16 %v3930
      %v4531 = vunpack.c.l.b16 %v3931
      %v4532 = vunpack.c.l.b16 %v3932
      %v4533 = vunpack.c.l.b16 %v3933
      %v4534 = vunpack.c.l.b16 %v3934
      %v4535 = vunpack.c.l.b16 %v3935
      %v4536 = vunpack.c.l.b16 %v3936
      %v4537 = vunpack.c.l.b16 %v3937
      %v4538 = vunpack.c.l.b16 %v3938
      %v4539 = vunpack.c.h.b16 %v3931
      %v4540 = vunpack.c.h.b16 %v3932
      %v4541 = vunpack.c.h.b16 %v3933
      %v4542 = vunpack.c.h.b16 %v3934
      %v4543 = vunpack.c.h.b16 %v3935
      %v4544 = vunpack.c.h.b16 %v3936
      %v4545 = vunpack.c.h.b16 %v3937
      %v4546 = vunpack.c.h.b16 %v3938
      %v4547 = vunpack.c.l.b16 %v3939
      %v4548 = vunpack.c.l.b16 %v3940
      %v4549 = vunpack.c.l.b16 %v3941
      %v4550 = vunpack.c.l.b16 %v3942
      %v4551 = vunpack.c.l.b16 %v3943
      %v4552 = vunpack.c.l.b16 %v3944
      %v4553 = vunpack.c.l.b16 %v3945
      %v4554 = vunpack.c.l.b16 %v3946
      %v4555 = vunpack.c.h.b16 %v3939
      %v4556 = vunpack.c.h.b16 %v3940
      %v4557 = vunpack.c.h.b16 %v3941
      %v4558 = vunpack.c.h.b16 %v3942
      %v4559 = vunpack.c.h.b16 %v3943
      %v4560 = vunpack.c.h.b16 %v3944
      %v4561 = vunpack.c.h.b16 %v3945
      %v4562 = vunpack.c.h.b16 %v3946
      %v4563 = vunpack.c.l.b16 %v3947
      %v4564 = vunpack.c.l.b16 %v3948
      %v4565 = vunpack.c.l.b16 %v3949
      %v4566 = vunpack.c.l.b16 %v3950
      %v4567 = vunpack.c.l.b16 %v3951
      %v4568 = vunpack.c.l.b16 %v3952
      %v4569 = vunpack.c.l.b16 %v3953
      %v4570 = vunpack.c.l.b16 %v3954
      %v4571 = vunpack.c.h.b16 %v3947
      %v4572 = vunpack.c.h.b16 %v3948
      %v4573 = vunpack.c.h.b16 %v3949
      %v4574 = vunpack.c.h.b16 %v3950
      %v4575 = vunpack.c.h.b16 %v3951
      %v4576 = vunpack.c.h.b16 %v3952
      %v4577 = vunpack.c.h.b16 %v3953
      %v4578 = vunpack.c.h.b16 %v3954
      %v4579 = vunpack.c.l.b16 %v3955
      %v4580 = vunpack.c.l.b16 %v3956
      %v4581 = vunpack.c.l.b16 %v3957
      %v4582 = vunpack.c.l.b16 %v3958
      %v4583 = vunpack.c.l.b16 %v3959
      %v4584 = vunpack.c.l.b16 %v3960
      %v4585 = vunpack.c.l.b16 %v3961
      %v4586 = vunpack.c.l.b16 %v3962
      %v4587 = vunpack.c.h.b16 %v3955
      %v4588 = vunpack.c.h.b16 %v3956
      %v4589 = vunpack.c.h.b16 %v3957
      %v4590 = vunpack.c.h.b16 %v3958
      %v4591 = vunpack.c.h.b16 %v3959
      %v4592 = vunpack.c.h.b16 %v3960
      %v4593 = vunpack.c.h.b16 %v3961
      %v4594 = vunpack.c.h.b16 %v3962
      %v4595 = vunpack.c.l.b16 %v3963
      %v4596 = vunpack.c.l.b16 %v3964
      %v4597 = vunpack.c.l.b16 %v3965
      %v4598 = vunpack.c.l.b16 %v3966
      %v4599 = vunpack.c.l.b16 %v3967
      %v4600 = vunpack.c.l.b16 %v3968
      %v4601 = vunpack.c.l.b16 %v3969
      %v4602 = vunpack.c.l.b16 %v3970
      %v4603 = vunpack.c.h.b16 %v3963
      %v4604 = vunpack.c.h.b16 %v3964
      %v4605 = vunpack.c.h.b16 %v3965
      %v4606 = vunpack.c.h.b16 %v3966
      %v4607 = vunpack.c.h.b16 %v3967
      %v4608 = vunpack.c.h.b16 %v3968
      %v4609 = vunpack.c.h.b16 %v3969
      %v4610 = vunpack.c.h.b16 %v3970
      %v4611 = vunpack.c.l.b16 %v3971
      %v4612 = vunpack.c.l.b16 %v3972
      %v4613 = vunpack.c.l.b16 %v3973
      %v4614 = vunpack.c.l.b16 %v3974
      %v4615 = vunpack.c.l.b16 %v3975
      %v4616 = vunpack.c.l.b16 %v3976
      %v4617 = vunpack.c.l.b16 %v3977
      %v4618 = vunpack.c.l.b16 %v3978
      %v4619 = vunpack.c.h.b16 %v3971
      %v4620 = vunpack.c.h.b16 %v3972
      %v4621 = vunpack.c.h.b16 %v3973
      %v4622 = vunpack.c.h.b16 %v3974
      %v4623 = vunpack.c.h.b16 %v3975
      %v4624 = vunpack.c.h.b16 %v3976
      %v4625 = vunpack.c.h.b16 %v3977
      %v4626 = vunpack.c.h.b16 %v3978
      %v4627 = vunpack.c.l.b16 %v3979
      %v4628 = vunpack.c.l.b16 %v3980
      %v4629 = vunpack.c.l.b16 %v3981
      %v4630 = vunpack.c.l.b16 %v3982
      %v4631 = vunpack.c.l.b16 %v3983
      %v4632 = vunpack.c.l.b16 %v3984
      %v4633 = vunpack.c.l.b16 %v3985
      %v4634 = vunpack.c.l.b16 %v3986
      %v4635 = vunpack.c.h.b16 %v3979
      %v4636 = vunpack.c.h.b16 %v3980
      %v4637 = vunpack.c.h.b16 %v3981
      %v4638 = vunpack.c.h.b16 %v3982
      %v4639 = vunpack.c.h.b16 %v3983
      %v4640 = vunpack.c.h.b16 %v3984
      %v4641 = vunpack.c.h.b16 %v3985
      %v4642 = vunpack.c.h.b16 %v3986
      %v4643 = vunpack.c.l.b16 %v3987
      %v4644 = vunpack.c.l.b16 %v3988
      %v4645 = vunpack.c.l.b16 %v3989
      %v4646 = vunpack.c.l.b16 %v3990
      %v4647 = vunpack.c.l.b16 %v3991
      %v4648 = vunpack.c.l.b16 %v3992
      %v4649 = vunpack.c.l.b16 %v3993
      %v4650 = vunpack.c.l.b16 %v3994
      %v4651 = vunpack.c.h.b16 %v3987
      %v4652 = vunpack.c.h.b16 %v3988
      %v4653 = vunpack.c.h.b16 %v3989
      %v4654 = vunpack.c.h.b16 %v3990
      %v4655 = vunpack.c.h.b16 %v3991
      %v4656 = vunpack.c.h.b16 %v3992
      %v4657 = vunpack.c.h.b16 %v3993
      %v4658 = vunpack.c.h.b16 %v3994
      %v4659 = vunpack.c.l.b16 %v3995
      %v4660 = vunpack.c.l.b16 %v3996
      %v4661 = vunpack.c.l.b16 %v3997
      %v4662 = vunpack.c.l.b16 %v3998
      %v4663 = vunpack.c.l.b16 %v3999
      %v4664 = vunpack.c.l.b16 %v4000
      %v4665 = vunpack.c.l.b16 %v4001
      %v4666 = vunpack.c.l.b16 %v4002
      %v4667 = vunpack.c.h.b16 %v3995
      %v4668 = vunpack.c.h.b16 %v3996
      %v4669 = vunpack.c.h.b16 %v3997
      %v4670 = vunpack.c.h.b16 %v3998
      %v4671 = vunpack.c.h.b16 %v3999
      %v4672 = vunpack.c.h.b16 %v4000
      %v4673 = vunpack.c.h.b16 %v4001
      %v4674 = vunpack.c.h.b16 %v4002
      %v4675 = vunpack.c.l.b16 %v4003
      %v4676 = vunpack.c.l.b16 %v4004
      %v4677 = vunpack.c.l.b16 %v4005
      %v4678 = vunpack.c.l.b16 %v4006
      %v4679 = vunpack.c.l.b16 %v4007
      %v4680 = vunpack.c.l.b16 %v4008
      %v4681 = vunpack.c.l.b16 %v4009
      %v4682 = vunpack.c.l.b16 %v4010
      %v4683 = vunpack.c.h.b16 %v4003
      %v4684 = vunpack.c.h.b16 %v4004
      %v4685 = vunpack.c.h.b16 %v4005
      %v4686 = vunpack.c.h.b16 %v4006
      %v4687 = vunpack.c.h.b16 %v4007
      %v4688 = vunpack.c.h.b16 %v4008
      %v4689 = vunpack.c.h.b16 %v4009
      %v4690 = vunpack.c.h.b16 %v4010
      %v4691 = vunpack.c.l.b16 %v4011
      %v4692 = vunpack.c.l.b16 %v4012
      %v4693 = vunpack.c.l.b16 %v4013
      %v4694 = vunpack.c.l.b16 %v4014
      %v4695 = vunpack.c.l.b16 %v4015
      %v4696 = vunpack.c.l.b16 %v4016
      %v4697 = vunpack.c.l.b16 %v4017
      %v4698 = vunpack.c.l.b16 %v4018
      %v4699 = vunpack.c.h.b16 %v4011
      %v4700 = vunpack.c.h.b16 %v4012
      %v4701 = vunpack.c.h.b16 %v4013
      %v4702 = vunpack.c.h.b16 %v4014
      %v4703 = vunpack.c.h.b16 %v4015
      %v4704 = vunpack.c.h.b16 %v4016
      %v4705 = vunpack.c.h.b16 %v4017
      %v4706 = vunpack.c.h.b16 %v4018
      %v4707 = vunpack.c.l.b16 %v4019
      %v4708 = vunpack.c.l.b16 %v4020
      %v4709 = vunpack.c.l.b16 %v4021
      %v4710 = vunpack.c.l.b16 %v4022
      %v4711 = vunpack.c.l.b16 %v4023
      %v4712 = vunpack.c.l.b16 %v4024
      %v4713 = vunpack.c.l.b16 %v4025
      %v4714 = vunpack.c.l.b16 %v4026
      %v4715 = vunpack.c.h.b16 %v4019
      %v4716 = vunpack.c.h.b16 %v4020
      %v4717 = vunpack.c.h.b16 %v4021
      %v4718 = vunpack.c.h.b16 %v4022
      %v4719 = vunpack.c.h.b16 %v4023
      %v4720 = vunpack.c.h.b16 %v4024
      %v4721 = vunpack.c.h.b16 %v4025
      %v4722 = vunpack.c.h.b16 %v4026
      %v4723 = vunpack.c.l.b16 %v4027
      %v4724 = vunpack.c.l.b16 %v4028
      %v4725 = vunpack.c.l.b16 %v4029
      %v4726 = vunpack.c.l.b16 %v4030
      %v4727 = vunpack.c.l.b16 %v4031
      %v4728 = vunpack.c.l.b16 %v4032
      %v4729 = vunpack.c.l.b16 %v4033
      %v4730 = vunpack.c.l.b16 %v4034
      %v4731 = vunpack.c.h.b16 %v4027
      %v4732 = vunpack.c.h.b16 %v4028
      %v4733 = vunpack.c.h.b16 %v4029
      %v4734 = vunpack.c.h.b16 %v4030
      %v4735 = vunpack.c.h.b16 %v4031
      %v4736 = vunpack.c.h.b16 %v4032
      %v4737 = vunpack.c.h.b16 %v4033
      %v4738 = vunpack.c.h.b16 %v4034
      %v4739 = vunpack.c.l.b16 %v4035
      %v4740 = vunpack.c.l.b16 %v4036
      %v4741 = vunpack.c.l.b16 %v4037
      %v4742 = vunpack.c.l.b16 %v4038
      %v4743 = vunpack.c.l.b16 %v4039
      %v4744 = vunpack.c.l.b16 %v4040
      %v4745 = vunpack.c.l.b16 %v4041
      %v4746 = vunpack.c.l.b16 %v4042
      %v4747 = vunpack.c.h.b16 %v4035
      %v4748 = vunpack.c.h.b16 %v4036
      %v4749 = vunpack.c.h.b16 %v4037
      %v4750 = vunpack.c.h.b16 %v4038
      %v4751 = vunpack.c.h.b16 %v4039
      %v4752 = vunpack.c.h.b16 %v4040
      %v4753 = vunpack.c.h.b16 %v4041
      %v4754 = vunpack.c.h.b16 %v4042
      %v4755 = vunpack.c.l.b16 %v4043
      %v4756 = vunpack.c.l.b16 %v4044
      %v4757 = vunpack.c.l.b16 %v4045
      %v4758 = vunpack.c.l.b16 %v4046
      %v4759 = vunpack.c.l.b16 %v4047
      %v4760 = vunpack.c.l.b16 %v4048
      %v4761 = vunpack.c.l.b16 %v4049
      %v4762 = vunpack.c.l.b16 %v4050
      %v4763 = vunpack.c.h.b16 %v4043
      %v4764 = vunpack.c.h.b16 %v4044
      %v4765 = vunpack.c.h.b16 %v4045
      %v4766 = vunpack.c.h.b16 %v4046
      %v4767 = vunpack.c.h.b16 %v4047
      %v4768 = vunpack.c.h.b16 %v4048
      %v4769 = vunpack.c.h.b16 %v4049
      %v4770 = vunpack.c.h.b16 %v4050
      %v4771 = vunpack.c.l.b16 %v4051
      %v4772 = vunpack.c.l.b16 %v4052
      %v4773 = vunpack.c.l.b16 %v4053
      %v4774 = vunpack.c.l.b16 %v4054
      %v4775 = vunpack.c.l.b16 %v4055
      %v4776 = vunpack.c.l.b16 %v4056
      %v4777 = vunpack.c.l.b16 %v4057
      %v4778 = vunpack.c.l.b16 %v4058
      %v4779 = vunpack.c.h.b16 %v4051
      %v4780 = vunpack.c.h.b16 %v4052
      %v4781 = vunpack.c.h.b16 %v4053
      %v4782 = vunpack.c.h.b16 %v4054
      %v4783 = vunpack.c.h.b16 %v4055
      %v4784 = vunpack.c.h.b16 %v4056
      %v4785 = vunpack.c.h.b16 %v4057
      %v4786 = vunpack.c.h.b16 %v4058
      %v4787 = vunpack.c.l.b16 %v4059
      %v4788 = vunpack.c.l.b16 %v4060
      %v4789 = vunpack.c.l.b16 %v4061
      %v4790 = vunpack.c.l.b16 %v4062
      %v4791 = vunpack.c.l.b16 %v4063
      %v4792 = vunpack.c.l.b16 %v4064
      %v4793 = vunpack.c.l.b16 %v4065
      %v4794 = vunpack.c.l.b16 %v4066
      %v4795 = vunpack.c.h.b16 %v4059
      %v4796 = vunpack.c.h.b16 %v4060
      %v4797 = vunpack.c.h.b16 %v4061
      %v4798 = vunpack.c.h.b16 %v4062
      %v4799 = vunpack.c.h.b16 %v4063
      %v4800 = vunpack.c.h.b16 %v4064
      %v4801 = vunpack.c.h.b16 %v4065
      %v4802 = vunpack.c.h.b16 %v4066
      %v4803 = vunpack.c.l.b16 %v4067
      %v4804 = vunpack.c.l.b16 %v4068
      %v4805 = vunpack.c.l.b16 %v4069
      %v4806 = vunpack.c.l.b16 %v4070
      %v4807 = vunpack.c.l.b16 %v4071
      %v4808 = vunpack.c.l.b16 %v4072
      %v4809 = vunpack.c.l.b16 %v4073
      %v4810 = vunpack.c.l.b16 %v4074
      %v4811 = vunpack.c.h.b16 %v4067
      %v4812 = vunpack.c.h.b16 %v4068
      %v4813 = vunpack.c.h.b16 %v4069
      %v4814 = vunpack.c.h.b16 %v4070
      %v4815 = vunpack.c.h.b16 %v4071
      %v4816 = vunpack.c.h.b16 %v4072
      %v4817 = vunpack.c.h.b16 %v4073
      %v4818 = vunpack.c.h.b16 %v4074
      %v4819 = vunpack.c.l.b16 %v4075
      %v4820 = vunpack.c.l.b16 %v4076
      %v4821 = vunpack.c.l.b16 %v4077
      %v4822 = vunpack.c.l.b16 %v4078
      %v4823 = vunpack.c.l.b16 %v4079
      %v4824 = vunpack.c.l.b16 %v4080
      %v4825 = vunpack.c.l.b16 %v4081
      %v4826 = vunpack.c.l.b16 %v4082
      %v4827 = vunpack.c.h.b16 %v4075
      %v4828 = vunpack.c.h.b16 %v4076
      %v4829 = vunpack.c.h.b16 %v4077
      %v4830 = vunpack.c.h.b16 %v4078
      %v4831 = vunpack.c.h.b16 %v4079
      %v4832 = vunpack.c.h.b16 %v4080
      %v4833 = vunpack.c.h.b16 %v4081
      %v4834 = vunpack.c.h.b16 %v4082
      %v4835 = vunpack.c.l.b16 %v4083
      %v4836 = vunpack.c.l.b16 %v4084
      %v4837 = vunpack.c.l.b16 %v4085
      %v4838 = vunpack.c.l.b16 %v4086
      %v4839 = vunpack.c.l.b16 %v4087
      %v4840 = vunpack.c.l.b16 %v4088
      %v4841 = vunpack.c.l.b16 %v4089
      %v4842 = vunpack.c.l.b16 %v4090
      %v4843 = vunpack.c.h.b16 %v4083
      %v4844 = vunpack.c.h.b16 %v4084
      %v4845 = vunpack.c.h.b16 %v4085
      %v4846 = vunpack.c.h.b16 %v4086
      %v4847 = vunpack.c.h.b16 %v4087
      %v4848 = vunpack.c.h.b16 %v4088
      %v4849 = vunpack.c.h.b16 %v4089
      %v4850 = vunpack.c.h.b16 %v4090
      %v4851 = vunpack.c.l.b16 %v4091
      %v4852 = vunpack.c.l.b16 %v4092
      %v4853 = vunpack.c.l.b16 %v4093
      %v4854 = vunpack.c.l.b16 %v4094
      %v4855 = vunpack.c.l.b16 %v4095
      %v4856 = vunpack.c.l.b16 %v4096
      %v4857 = vunpack.c.l.b16 %v4097
      %v4858 = vunpack.c.l.b16 %v4098
      %v4859 = vunpack.c.h.b16 %v4091
      %v4860 = vunpack.c.h.b16 %v4092
      %v4861 = vunpack.c.h.b16 %v4093
      %v4862 = vunpack.c.h.b16 %v4094
      %v4863 = vunpack.c.h.b16 %v4095
      %v4864 = vunpack.c.h.b16 %v4096
      %v4865 = vunpack.c.h.b16 %v4097
      %v4866 = vunpack.c.h.b16 %v4098
      %v4867 = vpack.c.b16 %v4356, %v4355
      %v4868 = vpack.c.b16 %v4358, %v4357
      %v4869 = vpack.c.b16 %v4360, %v4359
      %v4870 = vpack.c.b16 %v4362, %v4361
      %v4871 = vpack.c.b16 %v4364, %v4363
      %v4872 = vpack.c.b16 %v4366, %v4365
      %v4873 = vpack.c.b16 %v4368, %v4367
      %v4874 = vpack.c.b16 %v4370, %v4369
      %v4875 = vpack.c.b16 %v4372, %v4371
      %v4876 = vpack.c.b16 %v4374, %v4373
      %v4877 = vpack.c.b16 %v4376, %v4375
      %v4878 = vpack.c.b16 %v4378, %v4377
      %v4879 = vpack.c.b16 %v4380, %v4379
      %v4880 = vpack.c.b16 %v4382, %v4381
      %v4881 = vpack.c.b16 %v4384, %v4383
      %v4882 = vpack.c.b16 %v4386, %v4385
      %v4883 = vpack.c.b16 %v4388, %v4387
      %v4884 = vpack.c.b16 %v4390, %v4389
      %v4885 = vpack.c.b16 %v4392, %v4391
      %v4886 = vpack.c.b16 %v4394, %v4393
      %v4887 = vpack.c.b16 %v4396, %v4395
      %v4888 = vpack.c.b16 %v4398, %v4397
      %v4889 = vpack.c.b16 %v4400, %v4399
      %v4890 = vpack.c.b16 %v4402, %v4401
      %v4891 = vpack.c.b16 %v4404, %v4403
      %v4892 = vpack.c.b16 %v4406, %v4405
      %v4893 = vpack.c.b16 %v4408, %v4407
      %v4894 = vpack.c.b16 %v4410, %v4409
      %v4895 = vpack.c.b16 %v4412, %v4411
      %v4896 = vpack.c.b16 %v4414, %v4413
      %v4897 = vpack.c.b16 %v4416, %v4415
      %v4898 = vpack.c.b16 %v4418, %v4417
      %v4899 = vpack.c.b16 %v4420, %v4419
      %v4900 = vpack.c.b16 %v4422, %v4421
      %v4901 = vpack.c.b16 %v4424, %v4423
      %v4902 = vpack.c.b16 %v4426, %v4425
      %v4903 = vpack.c.b16 %v4428, %v4427
      %v4904 = vpack.c.b16 %v4430, %v4429
      %v4905 = vpack.c.b16 %v4432, %v4431
      %v4906 = vpack.c.b16 %v4434, %v4433
      %v4907 = vpack.c.b16 %v4436, %v4435
      %v4908 = vpack.c.b16 %v4438, %v4437
      %v4909 = vpack.c.b16 %v4440, %v4439
      %v4910 = vpack.c.b16 %v4442, %v4441
      %v4911 = vpack.c.b16 %v4444, %v4443
      %v4912 = vpack.c.b16 %v4446, %v4445
      %v4913 = vpack.c.b16 %v4448, %v4447
      %v4914 = vpack.c.b16 %v4450, %v4449
      %v4915 = vpack.c.b16 %v4452, %v4451
      %v4916 = vpack.c.b16 %v4454, %v4453
      %v4917 = vpack.c.b16 %v4456, %v4455
      %v4918 = vpack.c.b16 %v4458, %v4457
      %v4919 = vpack.c.b16 %v4460, %v4459
      %v4920 = vpack.c.b16 %v4462, %v4461
      %v4921 = vpack.c.b16 %v4464, %v4463
      %v4922 = vpack.c.b16 %v4466, %v4465
      %v4923 = vpack.c.b16 %v4468, %v4467
      %v4924 = vpack.c.b16 %v4470, %v4469
      %v4925 = vpack.c.b16 %v4472, %v4471
      %v4926 = vpack.c.b16 %v4474, %v4473
      %v4927 = vpack.c.b16 %v4476, %v4475
      %v4928 = vpack.c.b16 %v4478, %v4477
      %v4929 = vpack.c.b16 %v4480, %v4479
      %v4930 = vpack.c.b16 %v4482, %v4481
      %v4931 = vpack.c.b16 %v4484, %v4483
      %v4932 = vpack.c.b16 %v4486, %v4485
      %v4933 = vpack.c.b16 %v4488, %v4487
      %v4934 = vpack.c.b16 %v4490, %v4489
      %v4935 = vpack.c.b16 %v4492, %v4491
      %v4936 = vpack.c.b16 %v4494, %v4493
      %v4937 = vpack.c.b16 %v4496, %v4495
      %v4938 = vpack.c.b16 %v4498, %v4497
      %v4939 = vpack.c.b16 %v4500, %v4499
      %v4940 = vpack.c.b16 %v4502, %v4501
      %v4941 = vpack.c.b16 %v4504, %v4503
      %v4942 = vpack.c.b16 %v4506, %v4505
      %v4943 = vpack.c.b16 %v4508, %v4507
      %v4944 = vpack.c.b16 %v4510, %v4509
      %v4945 = vpack.c.b16 %v4512, %v4511
      %v4946 = vpack.c.b16 %v4514, %v4513
      %v4947 = vpack.c.b16 %v4516, %v4515
      %v4948 = vpack.c.b16 %v4518, %v4517
      %v4949 = vpack.c.b16 %v4520, %v4519
      %v4950 = vpack.c.b16 %v4522, %v4521
      %v4951 = vpack.c.b16 %v4524, %v4523
      %v4952 = vpack.c.b16 %v4526, %v4525
      %v4953 = vpack.c.b16 %v4528, %v4527
      %v4954 = vpack.c.b16 %v4530, %v4529
      %v4955 = vpack.c.b16 %v4532, %v4531
      %v4956 = vpack.c.b16 %v4534, %v4533
      %v4957 = vpack.c.b16 %v4536, %v4535
      %v4958 = vpack.c.b16 %v4538, %v4537
      %v4959 = vpack.c.b16 %v4540, %v4539
      %v4960 = vpack.c.b16 %v4542, %v4541
      %v4961 = vpack.c.b16 %v4544, %v4543
      %v4962 = vpack.c.b16 %v4546, %v4545
      %v4963 = vpack.c.b16 %v4548, %v4547
      %v4964 = vpack.c.b16 %v4550, %v4549
      %v4965 = vpack.c.b16 %v4552, %v4551
      %v4966 = vpack.c.b16 %v4554, %v4553
      %v4967 = vpack.c.b16 %v4556, %v4555
      %v4968 = vpack.c.b16 %v4558, %v4557
      %v4969 = vpack.c.b16 %v4560, %v4559
      %v4970 = vpack.c.b16 %v4562, %v4561
      %v4971 = vpack.c.b16 %v4564, %v4563
      %v4972 = vpack.c.b16 %v4566, %v4565
      %v4973 = vpack.c.b16 %v4568, %v4567
      %v4974 = vpack.c.b16 %v4570, %v4569
      %v4975 = vpack.c.b16 %v4572, %v4571
      %v4976 = vpack.c.b16 %v4574, %v4573
      %v4977 = vpack.c.b16 %v4576, %v4575
      %v4978 = vpack.c.b16 %v4578, %v4577
      %v4979 = vpack.c.b16 %v4580, %v4579
      %v4980 = vpack.c.b16 %v4582, %v4581
      %v4981 = vpack.c.b16 %v4584, %v4583
      %v4982 = vpack.c.b16 %v4586, %v4585
      %v4983 = vpack.c.b16 %v4588, %v4587
      %v4984 = vpack.c.b16 %v4590, %v4589
      %v4985 = vpack.c.b16 %v4592, %v4591
      %v4986 = vpack.c.b16 %v4594, %v4593
      %v4987 = vpack.c.b16 %v4596, %v4595
      %v4988 = vpack.c.b16 %v4598, %v4597
      %v4989 = vpack.c.b16 %v4600, %v4599
      %v4990 = vpack.c.b16 %v4602, %v4601
      %v4991 = vpack.c.b16 %v4604, %v4603
      %v4992 = vpack.c.b16 %v4606, %v4605
      %v4993 = vpack.c.b16 %v4608, %v4607
      %v4994 = vpack.c.b16 %v4610, %v4609
      %v4995 = vpack.c.b16 %v4612, %v4611
      %v4996 = vpack.c.b16 %v4614, %v4613
      %v4997 = vpack.c.b16 %v4616, %v4615
      %v4998 = vpack.c.b16 %v4618, %v4617
      %v4999 = vpack.c.b16 %v4620, %v4619
      %v5000 = vpack.c.b16 %v4622, %v4621
      %v5001 = vpack.c.b16 %v4624, %v4623
      %v5002 = vpack.c.b16 %v4626, %v4625
      %v5003 = vpack.c.b16 %v4628, %v4627
      %v5004 = vpack.c.b16 %v4630, %v4629
      %v5005 = vpack.c.b16 %v4632, %v4631
      %v5006 = vpack.c.b16 %v4634, %v4633
      %v5007 = vpack.c.b16 %v4636, %v4635
      %v5008 = vpack.c.b16 %v4638, %v4637
      %v5009 = vpack.c.b16 %v4640, %v4639
      %v5010 = vpack.c.b16 %v4642, %v4641
      %v5011 = vpack.c.b16 %v4644, %v4643
      %v5012 = vpack.c.b16 %v4646, %v4645
      %v5013 = vpack.c.b16 %v4648, %v4647
      %v5014 = vpack.c.b16 %v4650, %v4649
      %v5015 = vpack.c.b16 %v4652, %v4651
      %v5016 = vpack.c.b16 %v4654, %v4653
      %v5017 = vpack.c.b16 %v4656, %v4655
      %v5018 = vpack.c.b16 %v4658, %v4657
      %v5019 = vpack.c.b16 %v4660, %v4659
      %v5020 = vpack.c.b16 %v4662, %v4661
      %v5021 = vpack.c.b16 %v4664, %v4663
      %v5022 = vpack.c.b16 %v4666, %v4665
      %v5023 = vpack.c.b16 %v4668, %v4667
      %v5024 = vpack.c.b16 %v4670, %v4669
      %v5025 = vpack.c.b16 %v4672, %v4671
      %v5026 = vpack.c.b16 %v4674, %v4673
      %v5027 = vpack.c.b16 %v4676, %v4675
      %v5028 = vpack.c.b16 %v4678, %v4677
      %v5029 = vpack.c.b16 %v4680, %v4679
      %v5030 = vpack.c.b16 %v4682, %v4681
      %v5031 = vpack.c.b16 %v4684, %v4683
      %v5032 = vpack.c.b16 %v4686, %v4685
      %v5033 = vpack.c.b16 %v4688, %v4687
      %v5034 = vpack.c.b16 %v4690, %v4689
      %v5035 = vpack.c.b16 %v4692, %v4691
      %v5036 = vpack.c.b16 %v4694, %v4693
      %v5037 = vpack.c.b16 %v4696, %v4695
      %v5038 = vpack.c.b16 %v4698, %v4697
      %v5039 = vpack.c.b16 %v4700, %v4699
      %v5040 = vpack.c.b16 %v4702, %v4701
      %v5041 = vpack.c.b16 %v4704, %v4703
      %v5042 = vpack.c.b16 %v4706, %v4705
      %v5043 = vpack.c.b16 %v4708, %v4707
      %v5044 = vpack.c.b16 %v4710, %v4709
      %v5045 = vpack.c.b16 %v4712, %v4711
      %v5046 = vpack.c.b16 %v4714, %v4713
      %v5047 = vpack.c.b16 %v4716, %v4715
      %v5048 = vpack.c.b16 %v4718, %v4717
      %v5049 = vpack.c.b16 %v4720, %v4719
      %v5050 = vpack.c.b16 %v4722, %v4721
      %v5051 = vpack.c.b16 %v4724, %v4723
      %v5052 = vpack.c.b16 %v4726, %v4725
      %v5053 = vpack.c.b16 %v4728, %v4727
      %v5054 = vpack.c.b16 %v4730, %v4729
      %v5055 = vpack.c.b16 %v4732, %v4731
      %v5056 = vpack.c.b16 %v4734, %v4733
      %v5057 = vpack.c.b16 %v4736, %v4735
      %v5058 = vpack.c.b16 %v4738, %v4737
      %v5059 = vpack.c.b16 %v4740, %v4739
      %v5060 = vpack.c.b16 %v4742, %v4741
      %v5061 = vpack.c.b16 %v4744, %v4743
      %v5062 = vpack.c.b16 %v4746, %v4745
      %v5063 = vpack.c.b16 %v4748, %v4747
      %v5064 = vpack.c.b16 %v4750, %v4749
      %v5065 = vpack.c.b16 %v4752, %v4751
      %v5066 = vpack.c.b16 %v4754, %v4753
      %v5067 = vpack.c.b16 %v4756, %v4755
      %v5068 = vpack.c.b16 %v4758, %v4757
      %v5069 = vpack.c.b16 %v4760, %v4759
      %v5070 = vpack.c.b16 %v4762, %v4761
      %v5071 = vpack.c.b16 %v4764, %v4763
      %v5072 = vpack.c.b16 %v4766, %v4765
      %v5073 = vpack.c.b16 %v4768, %v4767
      %v5074 = vpack.c.b16 %v4770, %v4769
      %v5075 = vpack.c.b16 %v4772, %v4771
      %v5076 = vpack.c.b16 %v4774, %v4773
      %v5077 = vpack.c.b16 %v4776, %v4775
      %v5078 = vpack.c.b16 %v4778, %v4777
      %v5079 = vpack.c.b16 %v4780, %v4779
      %v5080 = vpack.c.b16 %v4782, %v4781
      %v5081 = vpack.c.b16 %v4784, %v4783
      %v5082 = vpack.c.b16 %v4786, %v4785
      %v5083 = vpack.c.b16 %v4788, %v4787
      %v5084 = vpack.c.b16 %v4790, %v4789
      %v5085 = vpack.c.b16 %v4792, %v4791
      %v5086 = vpack.c.b16 %v4794, %v4793
      %v5087 = vpack.c.b16 %v4796, %v4795
      %v5088 = vpack.c.b16 %v4798, %v4797
      %v5089 = vpack.c.b16 %v4800, %v4799
      %v5090 = vpack.c.b16 %v4802, %v4801
      %v5091 = vpack.c.b16 %v4804, %v4803
      %v5092 = vpack.c.b16 %v4806, %v4805
      %v5093 = vpack.c.b16 %v4808, %v4807
      %v5094 = vpack.c.b16 %v4810, %v4809
      %v5095 = vpack.c.b16 %v4812, %v4811
      %v5096 = vpack.c.b16 %v4814, %v4813
      %v5097 = vpack.c.b16 %v4816, %v4815
      %v5098 = vpack.c.b16 %v4818, %v4817
      %v5099 = vpack.c.b16 %v4820, %v4819
      %v5100 = vpack.c.b16 %v4822, %v4821
      %v5101 = vpack.c.b16 %v4824, %v4823
      %v5102 = vpack.c.b16 %v4826, %v4825
      %v5103 = vpack.c.b16 %v4828, %v4827
      %v5104 = vpack.c.b16 %v4830, %v4829
      %v5105 = vpack.c.b16 %v4832, %v4831
      %v5106 = vpack.c.b16 %v4834, %v4833
      %v5107 = vpack.c.b16 %v4836, %v4835
      %v5108 = vpack.c.b16 %v4838, %v4837
      %v5109 = vpack.c.b16 %v4840, %v4839
      %v5110 = vpack.c.b16 %v4842, %v4841
      %v5111 = vpack.c.b16 %v4844, %v4843
      %v5112 = vpack.c.b16 %v4846, %v4845
      %v5113 = vpack.c.b16 %v4848, %v4847
      %v5114 = vpack.c.b16 %v4850, %v4849
      %v5115 = vpack.c.b16 %v4852, %v4851
      %v5116 = vpack.c.b16 %v4854, %v4853
      %v5117 = vpack.c.b16 %v4856, %v4855
      %v5118 = vpack.c.b16 %v4858, %v4857
      %v5119 = vpack.c.b16 %v4860, %v4859
      %v5120 = vpack.c.b16 %v4862, %v4861
      %v5121 = vpack.c.b16 %v4864, %v4863
      %v5122 = vpack.c.b16 %v4866, %v4865
      %v5379 = vmax.bf16 %v4867, %v4871
      %v5380 = vmax.bf16 %v5379, %v4875
      %v5381 = vmax.bf16 %v5380, %v4879
      %v5382 = vmax.bf16 %v5381, %v4883
      %v5383 = vmax.bf16 %v5382, %v4887
      %v5384 = vmax.bf16 %v5383, %v4891
      %v5385 = vmax.bf16 %v5384, %v4895
      %v5386 = vmax.bf16 %v5385, %v4899
      %v5387 = vmax.bf16 %v5386, %v4903
      %v5388 = vmax.bf16 %v5387, %v4907
      %v5389 = vmax.bf16 %v5388, %v4911
      %v5390 = vmax.bf16 %v5389, %v4915
      %v5391 = vmax.bf16 %v5390, %v4919
      %v5392 = vmax.bf16 %v5391, %v4923
      %v5393 = vmax.bf16 %v5392, %v4927
      %v5394 = vmax.bf16 %v5393, %v4931
      %v5395 = vmax.bf16 %v5394, %v4935
      %v5396 = vmax.bf16 %v5395, %v4939
      %v5397 = vmax.bf16 %v5396, %v4943
      %v5398 = vmax.bf16 %v5397, %v4947
      %v5399 = vmax.bf16 %v5398, %v4951
      %v5400 = vmax.bf16 %v5399, %v4955
      %v5401 = vmax.bf16 %v5400, %v4959
      %v5402 = vmax.bf16 %v5401, %v4963
      %v5403 = vmax.bf16 %v5402, %v4967
      %v5404 = vmax.bf16 %v5403, %v4971
      %v5405 = vmax.bf16 %v5404, %v4975
      %v5406 = vmax.bf16 %v5405, %v4979
      %v5407 = vmax.bf16 %v5406, %v4983
      %v5408 = vmax.bf16 %v5407, %v4987
      %v5409 = vmax.bf16 %v5408, %v4991
      %v5410 = vmax.bf16 %v5409, %v4995
      %v5411 = vmax.bf16 %v5410, %v4999
      %v5412 = vmax.bf16 %v5411, %v5003
      %v5413 = vmax.bf16 %v5412, %v5007
      %v5414 = vmax.bf16 %v5413, %v5011
      %v5415 = vmax.bf16 %v5414, %v5015
      %v5416 = vmax.bf16 %v5415, %v5019
      %v5417 = vmax.bf16 %v5416, %v5023
      %v5418 = vmax.bf16 %v5417, %v5027
      %v5419 = vmax.bf16 %v5418, %v5031
      %v5420 = vmax.bf16 %v5419, %v5035
      %v5421 = vmax.bf16 %v5420, %v5039
      %v5422 = vmax.bf16 %v5421, %v5043
      %v5423 = vmax.bf16 %v5422, %v5047
      %v5424 = vmax.bf16 %v5423, %v5051
      %v5425 = vmax.bf16 %v5424, %v5055
      %v5426 = vmax.bf16 %v5425, %v5059
      %v5427 = vmax.bf16 %v5426, %v5063
      %v5428 = vmax.bf16 %v5427, %v5067
      %v5429 = vmax.bf16 %v5428, %v5071
      %v5430 = vmax.bf16 %v5429, %v5075
      %v5431 = vmax.bf16 %v5430, %v5079
      %v5432 = vmax.bf16 %v5431, %v5083
      %v5433 = vmax.bf16 %v5432, %v5087
      %v5434 = vmax.bf16 %v5433, %v5091
      %v5435 = vmax.bf16 %v5434, %v5095
      %v5436 = vmax.bf16 %v5435, %v5099
      %v5437 = vmax.bf16 %v5436, %v5103
      %v5438 = vmax.bf16 %v5437, %v5107
      %v5439 = vmax.bf16 %v5438, %v5111
      %v5440 = vmax.bf16 %v5439, %v5115
      %v5441 = vmax.bf16 %v5440, %v5119
      %v5442 = vmax.bf16 %v4868, %v4872
      %v5443 = vmax.bf16 %v5442, %v4876
      %v5444 = vmax.bf16 %v5443, %v4880
      %v5445 = vmax.bf16 %v5444, %v4884
      %v5446 = vmax.bf16 %v5445, %v4888
      %v5447 = vmax.bf16 %v5446, %v4892
      %v5448 = vmax.bf16 %v5447, %v4896
      %v5449 = vmax.bf16 %v5448, %v4900
      %v5450 = vmax.bf16 %v5449, %v4904
      %v5451 = vmax.bf16 %v5450, %v4908
      %v5452 = vmax.bf16 %v5451, %v4912
      %v5453 = vmax.bf16 %v5452, %v4916
      %v5454 = vmax.bf16 %v5453, %v4920
      %v5455 = vmax.bf16 %v5454, %v4924
      %v5456 = vmax.bf16 %v5455, %v4928
      %v5457 = vmax.bf16 %v5456, %v4932
      %v5458 = vmax.bf16 %v5457, %v4936
      %v5459 = vmax.bf16 %v5458, %v4940
      %v5460 = vmax.bf16 %v5459, %v4944
      %v5461 = vmax.bf16 %v5460, %v4948
      %v5462 = vmax.bf16 %v5461, %v4952
      %v5463 = vmax.bf16 %v5462, %v4956
      %v5464 = vmax.bf16 %v5463, %v4960
      %v5465 = vmax.bf16 %v5464, %v4964
      %v5466 = vmax.bf16 %v5465, %v4968
      %v5467 = vmax.bf16 %v5466, %v4972
      %v5468 = vmax.bf16 %v5467, %v4976
      %v5469 = vmax.bf16 %v5468, %v4980
      %v5470 = vmax.bf16 %v5469, %v4984
      %v5471 = vmax.bf16 %v5470, %v4988
      %v5472 = vmax.bf16 %v5471, %v4992
      %v5473 = vmax.bf16 %v5472, %v4996
      %v5474 = vmax.bf16 %v5473, %v5000
      %v5475 = vmax.bf16 %v5474, %v5004
      %v5476 = vmax.bf16 %v5475, %v5008
      %v5477 = vmax.bf16 %v5476, %v5012
      %v5478 = vmax.bf16 %v5477, %v5016
      %v5479 = vmax.bf16 %v5478, %v5020
      %v5480 = vmax.bf16 %v5479, %v5024
      %v5481 = vmax.bf16 %v5480, %v5028
      %v5482 = vmax.bf16 %v5481, %v5032
      %v5483 = vmax.bf16 %v5482, %v5036
      %v5484 = vmax.bf16 %v5483, %v5040
      %v5485 = vmax.bf16 %v5484, %v5044
      %v5486 = vmax.bf16 %v5485, %v5048
      %v5487 = vmax.bf16 %v5486, %v5052
      %v5488 = vmax.bf16 %v5487, %v5056
      %v5489 = vmax.bf16 %v5488, %v5060
      %v5490 = vmax.bf16 %v5489, %v5064
      %v5491 = vmax.bf16 %v5490, %v5068
      %v5492 = vmax.bf16 %v5491, %v5072
      %v5493 = vmax.bf16 %v5492, %v5076
      %v5494 = vmax.bf16 %v5493, %v5080
      %v5495 = vmax.bf16 %v5494, %v5084
      %v5496 = vmax.bf16 %v5495, %v5088
      %v5497 = vmax.bf16 %v5496, %v5092
      %v5498 = vmax.bf16 %v5497, %v5096
      %v5499 = vmax.bf16 %v5498, %v5100
      %v5500 = vmax.bf16 %v5499, %v5104
      %v5501 = vmax.bf16 %v5500, %v5108
      %v5502 = vmax.bf16 %v5501, %v5112
      %v5503 = vmax.bf16 %v5502, %v5116
      %v5504 = vmax.bf16 %v5503, %v5120
      %v5505 = vmax.bf16 %v4869, %v4873
      %v5506 = vmax.bf16 %v5505, %v4877
      %v5507 = vmax.bf16 %v5506, %v4881
      %v5508 = vmax.bf16 %v5507, %v4885
      %v5509 = vmax.bf16 %v5508, %v4889
      %v5510 = vmax.bf16 %v5509, %v4893
      %v5511 = vmax.bf16 %v5510, %v4897
      %v5512 = vmax.bf16 %v5511, %v4901
      %v5513 = vmax.bf16 %v5512, %v4905
      %v5514 = vmax.bf16 %v5513, %v4909
      %v5515 = vmax.bf16 %v5514, %v4913
      %v5516 = vmax.bf16 %v5515, %v4917
      %v5517 = vmax.bf16 %v5516, %v4921
      %v5518 = vmax.bf16 %v5517, %v4925
      %v5519 = vmax.bf16 %v5518, %v4929
      %v5520 = vmax.bf16 %v5519, %v4933
      %v5521 = vmax.bf16 %v5520, %v4937
      %v5522 = vmax.bf16 %v5521, %v4941
      %v5523 = vmax.bf16 %v5522, %v4945
      %v5524 = vmax.bf16 %v5523, %v4949
      %v5525 = vmax.bf16 %v5524, %v4953
      %v5526 = vmax.bf16 %v5525, %v4957
      %v5527 = vmax.bf16 %v5526, %v4961
      %v5528 = vmax.bf16 %v5527, %v4965
      %v5529 = vmax.bf16 %v5528, %v4969
      %v5530 = vmax.bf16 %v5529, %v4973
      %v5531 = vmax.bf16 %v5530, %v4977
      %v5532 = vmax.bf16 %v5531, %v4981
      %v5533 = vmax.bf16 %v5532, %v4985
      %v5534 = vmax.bf16 %v5533, %v4989
      %v5535 = vmax.bf16 %v5534, %v4993
      %v5536 = vmax.bf16 %v5535, %v4997
      %v5537 = vmax.bf16 %v5536, %v5001
      %v5538 = vmax.bf16 %v5537, %v5005
      %v5539 = vmax.bf16 %v5538, %v5009
      %v5540 = vmax.bf16 %v5539, %v5013
      %v5541 = vmax.bf16 %v5540, %v5017
      %v5542 = vmax.bf16 %v5541, %v5021
      %v5543 = vmax.bf16 %v5542, %v5025
      %v5544 = vmax.bf16 %v5543, %v5029
      %v5545 = vmax.bf16 %v5544, %v5033
      %v5546 = vmax.bf16 %v5545, %v5037
      %v5547 = vmax.bf16 %v5546, %v5041
      %v5548 = vmax.bf16 %v5547, %v5045
      %v5549 = vmax.bf16 %v5548, %v5049
      %v5550 = vmax.bf16 %v5549, %v5053
      %v5551 = vmax.bf16 %v5550, %v5057
      %v5552 = vmax.bf16 %v5551, %v5061
      %v5553 = vmax.bf16 %v5552, %v5065
      %v5554 = vmax.bf16 %v5553, %v5069
      %v5555 = vmax.bf16 %v5554, %v5073
      %v5556 = vmax.bf16 %v5555, %v5077
      %v5557 = vmax.bf16 %v5556, %v5081
      %v5558 = vmax.bf16 %v5557, %v5085
      %v5559 = vmax.bf16 %v5558, %v5089
      %v5560 = vmax.bf16 %v5559, %v5093
      %v5561 = vmax.bf16 %v5560, %v5097
      %v5562 = vmax.bf16 %v5561, %v5101
      %v5563 = vmax.bf16 %v5562, %v5105
      %v5564 = vmax.bf16 %v5563, %v5109
      %v5565 = vmax.bf16 %v5564, %v5113
      %v5566 = vmax.bf16 %v5565, %v5117
      %v5567 = vmax.bf16 %v5566, %v5121
      %v5568 = vmax.bf16 %v4870, %v4874
      %v5569 = vmax.bf16 %v5568, %v4878
      %v5570 = vmax.bf16 %v5569, %v4882
      %v5571 = vmax.bf16 %v5570, %v4886
      %v5572 = vmax.bf16 %v5571, %v4890
      %v5573 = vmax.bf16 %v5572, %v4894
      %v5574 = vmax.bf16 %v5573, %v4898
      %v5575 = vmax.bf16 %v5574, %v4902
      %v5576 = vmax.bf16 %v5575, %v4906
      %v5577 = vmax.bf16 %v5576, %v4910
      %v5578 = vmax.bf16 %v5577, %v4914
      %v5579 = vmax.bf16 %v5578, %v4918
      %v5580 = vmax.bf16 %v5579, %v4922
      %v5581 = vmax.bf16 %v5580, %v4926
      %v5582 = vmax.bf16 %v5581, %v4930
      %v5583 = vmax.bf16 %v5582, %v4934
      %v5584 = vmax.bf16 %v5583, %v4938
      %v5585 = vmax.bf16 %v5584, %v4942
      %v5586 = vmax.bf16 %v5585, %v4946
      %v5587 = vmax.bf16 %v5586, %v4950
      %v5588 = vmax.bf16 %v5587, %v4954
      %v5589 = vmax.bf16 %v5588, %v4958
      %v5590 = vmax.bf16 %v5589, %v4962
      %v5591 = vmax.bf16 %v5590, %v4966
      %v5592 = vmax.bf16 %v5591, %v4970
      %v5593 = vmax.bf16 %v5592, %v4974
      %v5594 = vmax.bf16 %v5593, %v4978
      %v5595 = vmax.bf16 %v5594, %v4982
      %v5596 = vmax.bf16 %v5595, %v4986
      %v5597 = vmax.bf16 %v5596, %v4990
      %v5598 = vmax.bf16 %v5597, %v4994
      %v5599 = vmax.bf16 %v5598, %v4998
      %v5600 = vmax.bf16 %v5599, %v5002
      %v5601 = vmax.bf16 %v5600, %v5006
      %v5602 = vmax.bf16 %v5601, %v5010
      %v5603 = vmax.bf16 %v5602, %v5014
      %v5604 = vmax.bf16 %v5603, %v5018
      %v5605 = vmax.bf16 %v5604, %v5022
      %v5606 = vmax.bf16 %v5605, %v5026
      %v5607 = vmax.bf16 %v5606, %v5030
      %v5608 = vmax.bf16 %v5607, %v5034
      %v5609 = vmax.bf16 %v5608, %v5038
      %v5610 = vmax.bf16 %v5609, %v5042
      %v5611 = vmax.bf16 %v5610, %v5046
      %v5612 = vmax.bf16 %v5611, %v5050
      %v5613 = vmax.bf16 %v5612, %v5054
      %v5614 = vmax.bf16 %v5613, %v5058
      %v5615 = vmax.bf16 %v5614, %v5062
      %v5616 = vmax.bf16 %v5615, %v5066
      %v5617 = vmax.bf16 %v5616, %v5070
      %v5618 = vmax.bf16 %v5617, %v5074
      %v5619 = vmax.bf16 %v5618, %v5078
      %v5620 = vmax.bf16 %v5619, %v5082
      %v5621 = vmax.bf16 %v5620, %v5086
      %v5622 = vmax.bf16 %v5621, %v5090
      %v5623 = vmax.bf16 %v5622, %v5094
      %v5624 = vmax.bf16 %v5623, %v5098
      %v5625 = vmax.bf16 %v5624, %v5102
      %v5626 = vmax.bf16 %v5625, %v5106
      %v5627 = vmax.bf16 %v5626, %v5110
      %v5628 = vmax.bf16 %v5627, %v5114
      %v5629 = vmax.bf16 %v5628, %v5118
      %v5630 = vmax.bf16 %v5629, %v5122
      %v5631 = vld [vmem:[#allocation2] sm:$0xff]
      %v5632 = vld [vmem:[#allocation2 + $0x8] sm:$0xff]
      %v5633 = vld [vmem:[#allocation2 + $0x10] sm:$0xff]
      %v5634 = vld [vmem:[#allocation2 + $0x18] sm:$0xff]
      %v5635 = vmax.bf16 %v5631, %v5441
      %v5636 = vmax.bf16 %v5632, %v5504
      %v5637 = vmax.bf16 %v5633, %v5567
      %v5638 = vmax.bf16 %v5634, %v5630
      %5639 = vst [vmem:[#allocation2] sm:$0xff] %v5635
      %5640 = vst [vmem:[#allocation2 + $0x8] sm:$0xff] %v5636
      %5641 = vst [vmem:[#allocation2 + $0x10] sm:$0xff] %v5637
      %5642 = vst [vmem:[#allocation2 + $0x18] sm:$0xff] %v5638
      // Predicated region
      $region53: #{tpu_custom_call.1} parent=47 // pred_check
        %p5643 = pneg %p307
      $region54: #{tpu_custom_call.1} parent=47 // pred_check_branch
        %5645 = sbr.rel (%p5643) target = $region56
      $region55: #{tpu_custom_call.1} parent=47 // pred_region
        %v5646 = vld [vmem:[#allocation2] sm:$0xff]
        %v5647 = vld [vmem:[#allocation2 + $0x8] sm:$0xff]
        %v5648 = vld [vmem:[#allocation2 + $0x10] sm:$0xff]
        %v5649 = vld [vmem:[#allocation2 + $0x18] sm:$0xff]
        %v5654 = vunpack.c.l.b16 %v5646
        %v5655 = vunpack.c.h.b16 %v5646
        %v5656 = vunpack.c.l.b16 %v5647
        %v5657 = vunpack.c.h.b16 %v5647
        %v5658 = vunpack.c.l.b16 %v5648
        %v5659 = vunpack.c.h.b16 %v5648
        %v5660 = vunpack.c.l.b16 %v5649
        %v5661 = vunpack.c.h.b16 %v5649
        %v5662 = vpack.c.b16 %v5654, %v5654
        %v5663 = vpack.c.b16 %v5655, %v5655
        %v5664 = vpack.c.b16 %v5656, %v5656
        %v5665 = vpack.c.b16 %v5657, %v5657
        %v5666 = vpack.c.b16 %v5658, %v5658
        %v5667 = vpack.c.b16 %v5659, %v5659
        %v5668 = vpack.c.b16 %v5660, %v5660
        %v5669 = vpack.c.b16 %v5661, %v5661
        %vm5670 = vcmask 1043456
        %v5673 = vsel %vm5670, %v5662, 4286644096
        %v5675 = vunpack.i.l.bf16 %v5673
        %v5676 = vunpack.i.h.bf16 %v5673
        %v5677 = vmax.f32 %v5675, %v5676
        %v5678 = vrot.slane %v5677, 4
        %v5679 = vmax.f32 %v5677, %v5678
        %v5680 = vrot.slane %v5679, 2
        %v5681 = vmax.f32 %v5679, %v5680
        %v5682 = vrot.slane %v5681, 1
        %v5683 = vmax.f32 %v5681, %v5682
        %v5684 = vpack.i.bf16 %v5683, %v5683
        %v5686 = vsel %vm5670, %v5663, 4286644096
        %v5688 = vunpack.i.l.bf16 %v5686
        %v5689 = vunpack.i.h.bf16 %v5686
        %v5690 = vmax.f32 %v5688, %v5689
        %v5691 = vrot.slane %v5690, 4
        %v5692 = vmax.f32 %v5690, %v5691
        %v5693 = vrot.slane %v5692, 2
        %v5694 = vmax.f32 %v5692, %v5693
        %v5695 = vrot.slane %v5694, 1
        %v5696 = vmax.f32 %v5694, %v5695
        %v5697 = vpack.i.bf16 %v5696, %v5696
        %v5699 = vsel %vm5670, %v5664, 4286644096
        %v5701 = vunpack.i.l.bf16 %v5699
        %v5702 = vunpack.i.h.bf16 %v5699
        %v5703 = vmax.f32 %v5701, %v5702
        %v5704 = vrot.slane %v5703, 4
        %v5705 = vmax.f32 %v5703, %v5704
        %v5706 = vrot.slane %v5705, 2
        %v5707 = vmax.f32 %v5705, %v5706
        %v5708 = vrot.slane %v5707, 1
        %v5709 = vmax.f32 %v5707, %v5708
        %v5710 = vpack.i.bf16 %v5709, %v5709
        %v5712 = vsel %vm5670, %v5665, 4286644096
        %v5714 = vunpack.i.l.bf16 %v5712
        %v5715 = vunpack.i.h.bf16 %v5712
        %v5716 = vmax.f32 %v5714, %v5715
        %v5717 = vrot.slane %v5716, 4
        %v5718 = vmax.f32 %v5716, %v5717
        %v5719 = vrot.slane %v5718, 2
        %v5720 = vmax.f32 %v5718, %v5719
        %v5721 = vrot.slane %v5720, 1
        %v5722 = vmax.f32 %v5720, %v5721
        %v5723 = vpack.i.bf16 %v5722, %v5722
        %v5725 = vsel %vm5670, %v5666, 4286644096
        %v5727 = vunpack.i.l.bf16 %v5725
        %v5728 = vunpack.i.h.bf16 %v5725
        %v5729 = vmax.f32 %v5727, %v5728
        %v5730 = vrot.slane %v5729, 4
        %v5731 = vmax.f32 %v5729, %v5730
        %v5732 = vrot.slane %v5731, 2
        %v5733 = vmax.f32 %v5731, %v5732
        %v5734 = vrot.slane %v5733, 1
        %v5735 = vmax.f32 %v5733, %v5734
        %v5736 = vpack.i.bf16 %v5735, %v5735
        %v5738 = vsel %vm5670, %v5667, 4286644096
        %v5740 = vunpack.i.l.bf16 %v5738
        %v5741 = vunpack.i.h.bf16 %v5738
        %v5742 = vmax.f32 %v5740, %v5741
        %v5743 = vrot.slane %v5742, 4
        %v5744 = vmax.f32 %v5742, %v5743
        %v5745 = vrot.slane %v5744, 2
        %v5746 = vmax.f32 %v5744, %v5745
        %v5747 = vrot.slane %v5746, 1
        %v5748 = vmax.f32 %v5746, %v5747
        %v5749 = vpack.i.bf16 %v5748, %v5748
        %v5751 = vsel %vm5670, %v5668, 4286644096
        %v5753 = vunpack.i.l.bf16 %v5751
        %v5754 = vunpack.i.h.bf16 %v5751
        %v5755 = vmax.f32 %v5753, %v5754
        %v5756 = vrot.slane %v5755, 4
        %v5757 = vmax.f32 %v5755, %v5756
        %v5758 = vrot.slane %v5757, 2
        %v5759 = vmax.f32 %v5757, %v5758
        %v5760 = vrot.slane %v5759, 1
        %v5761 = vmax.f32 %v5759, %v5760
        %v5762 = vpack.i.bf16 %v5761, %v5761
        %v5764 = vsel %vm5670, %v5669, 4286644096
        %v5766 = vunpack.i.l.bf16 %v5764
        %v5767 = vunpack.i.h.bf16 %v5764
        %v5768 = vmax.f32 %v5766, %v5767
        %v5769 = vrot.slane %v5768, 4
        %v5770 = vmax.f32 %v5768, %v5769
        %v5771 = vrot.slane %v5770, 2
        %v5772 = vmax.f32 %v5770, %v5771
        %v5773 = vrot.slane %v5772, 1
        %v5774 = vmax.f32 %v5772, %v5773
        %v5775 = vpack.i.bf16 %v5774, %v5774
        %v5784 = vcombine.low %v5684, %v5697
        %v5785 = vcombine.low %v5710, %v5723
        %v5786 = vcombine.low %v5736, %v5749
        %v5787 = vcombine.low %v5762, %v5775
        %v5789 = vunpack.c.l.s4 1966171168
        %v5790 = vunpack.c.0.s8 %v5789
        %v5791 = vlaneseq
        %v5792 = vshrl.u32 %v5791, 7
        %v5793 = vsub.s32 %v5790, %v5792
        %v5794 = vrot.slane %v5784, %v5793
        %v5796 = vunpack.c.l.s4 1966171168
        %v5797 = vunpack.c.0.s8 %v5796
        %v5798 = vlaneseq
        %v5799 = vshrl.u32 %v5798, 7
        %v5800 = vsub.s32 %v5797, %v5799
        %v5801 = vrot.slane %v5785, %v5800
        %v5803 = vunpack.c.l.s4 1966171168
        %v5804 = vunpack.c.0.s8 %v5803
        %v5805 = vlaneseq
        %v5806 = vshrl.u32 %v5805, 7
        %v5807 = vsub.s32 %v5804, %v5806
        %v5808 = vrot.slane %v5786, %v5807
        %v5810 = vunpack.c.l.s4 1966171168
        %v5811 = vunpack.c.0.s8 %v5810
        %v5812 = vlaneseq
        %v5813 = vshrl.u32 %v5812, 7
        %v5814 = vsub.s32 %v5811, %v5813
        %v5815 = vrot.slane %v5787, %v5814
        %v5816 = vcombine.low %v5794, %v5801
        %v5817 = vcombine.low %v5808, %v5815
        %v5819 = vunpack.c.l.s4 1966171168
        %v5820 = vunpack.c.0.s8 %v5819
        %v5821 = vlaneseq
        %v5822 = vshrl.u32 %v5821, 7
        %v5823 = vsub.s32 %v5820, %v5822
        %v5824 = vrot.slane %v5816, %v5823
        %v5826 = vunpack.c.l.s4 1966171168
        %v5827 = vunpack.c.0.s8 %v5826
        %v5828 = vlaneseq
        %v5829 = vshrl.u32 %v5828, 7
        %v5830 = vsub.s32 %v5827, %v5829
        %v5831 = vrot.slane %v5817, %v5830
        %v5832 = vcombine.low %v5824, %v5831
        %vm5834 = vcmask 1040384
        %vm5835 = vsmask.f32 256
        %vm5836 = vmand %vm5834, %vm5835
        %vm5837 = vcmask 1041409
        %vm5838 = vsmask.f32 1280
        %vm5839 = vmand %vm5837, %vm5838
        %vm5840 = vmor %vm5839, %vm5836
        %vm5841 = vcmask 1042434
        %vm5842 = vsmask.f32 2304
        %vm5843 = vmand %vm5841, %vm5842
        %vm5844 = vmor %vm5843, %vm5840
        %vm5845 = vcmask 1043459
        %vm5846 = vsmask.f32 3328
        %vm5847 = vmand %vm5845, %vm5846
        %vm5848 = vmor %vm5847, %vm5844
        %vm5849 = vcmask 1044484
        %vm5850 = vsmask.f32 4352
        %vm5851 = vmand %vm5849, %vm5850
        %vm5852 = vmor %vm5851, %vm5848
        %vm5853 = vcmask 1045509
        %vm5854 = vsmask.f32 5376
        %vm5855 = vmand %vm5853, %vm5854
        %vm5856 = vmor %vm5855, %vm5852
        %vm5857 = vcmask 1046534
        %vm5858 = vsmask.f32 6400
        %vm5859 = vmand %vm5857, %vm5858
        %vm5860 = vmor %vm5859, %vm5856
        %vm5861 = vcmask 1047559
        %vm5862 = vsmask.f32 7424
        %vm5863 = vmand %vm5861, %vm5862
        %vm5864 = vmor %vm5863, %vm5860
        %v5865 = vld [vmem:[%s304] sm:$0xff]
        %v5866 = vsel %vm5864, %v5832, %v5865
        %5867 = vst [vmem:[%s304] sm:$0xff] %v5866
      $region56: #{tpu_custom_call.1} parent=47 // pred_fallthru
        _
      %p5868 = scmp.lt.s32.totalorder %s22, 1
      %s5869 = scalar_select %p5868, %s22, 1
      %s5870 = smul.addr %s5869, 8
      %s5871 = scalar_lea.vmem %s7, %s5870
      // Predicated region
      $region57: #{tpu_custom_call.1} parent=47 // pred_check
        %p5872 = pneg %p202
      $region58: #{tpu_custom_call.1} parent=47 // pred_check_branch
        %5874 = sbr.rel (%p5872) target = $region60
      $region59: #{tpu_custom_call.1} parent=47 // pred_region
        _
      $region60: #{tpu_custom_call.1} parent=47 // pred_fallthru
        _
    $region48: #{tpu_custom_call.1} parent=5 // pred_fallthru
      _
    %p5875 = scmp.le.s32.totalorder 2, %s13
    // Predicated region
    $region61: #{tpu_custom_call.1} parent=5 // pred_check
      %p5876 = pneg %p5875
    $region62: #{tpu_custom_call.1} parent=5 // pred_check_branch
      %5878 = sbr.rel (%p5876) target = $region64
    $region63: #{tpu_custom_call.1} parent=5 // pred_region
      %s5879 = ssub.s32 %s13, 2
      // Predicated region
      $region65: #{tpu_custom_call.1} parent=63 // pred_check
        %p5880 = pneg %p208
      $region66: #{tpu_custom_call.1} parent=63 // pred_check_branch
        %5882 = sbr.rel (%p5880) target = $region68
      $region67: #{tpu_custom_call.1} parent=63 // pred_region
        %p5883 = scmp.lt.s32.totalorder %s24, 1
        %s5884 = scalar_select %p5883, %s24, 1
        %s5885 = smul.addr %s5884, 8
        %s5886 = scalar_lea.vmem %s7, %s5885
      $region68: #{tpu_custom_call.1} parent=63 // pred_fallthru
        _
    $region64: #{tpu_custom_call.1} parent=5 // pred_fallthru
      _
  $region6: #{tpu_custom_call.1} parent=0 // loop_footer
    %s17 = sadd.s32 1, %s13
  $region7: #{tpu_custom_call.1} parent=0 // loop_footer_branch
    %12 = sbr.rel target = $region3
  $region8: #{tpu_custom_call.1} parent=0 // loop_exit
    _

</llo_original>
